<compile_context>
chip_gen: v7x
topology: tpu7x:2x2x1
jax: 0.10.0
libtpu: 0.0.40
codegen_flags: <defaults>
</compile_context>

<pallas_src>
import functools

import jax
import jax.numpy as jnp
from jax import lax
from jax.experimental import pallas as pl
from jax.experimental.pallas import tpu as pltpu


def _round_up(x, m):
    return (x + m - 1) // m * m


# ---------------------------------------------------------------------------
# Pallas kernel: 3x3x3 conv (stride 1, pad 1) + bias, one (n, d) plane per step
# ---------------------------------------------------------------------------
def _conv3x3x3_kernel(p0_ref, p1_ref, p2_ref, w_ref, b_ref, o_ref,
                      *, H, W, Cin, bh):
    """p{0,1,2}_ref: (H+2, W+2, Cin) bf16 -- padded input D-planes d, d+1, d+2
       w_ref:        (27*Cin, Cp)    bf16 -- packed filter, VMEM-resident for the grid
       b_ref:        (1, Cp)         f32
       o_ref:        (H*W, Cp)       f32  -- one output plane, channels padded to 128
    """
    planes = (p0_ref, p1_ref, p2_ref)
    w = w_ref[...]
    bias = b_ref[...]
    # Static unroll over row chunks keeps the (bh*W, 27*Cin) im2col patch small
    # enough for VMEM at large H*W; a single iteration for small planes.
    for h0 in range(0, H, bh):
        taps = []
        for kd in range(3):
            for kh in range(3):
                for kw in range(3):
                    taps.append(planes[kd][h0 + kh:h0 + kh + bh, kw:kw + W, :])
        patch = jnp.concatenate(taps, axis=-1)            # (bh, W, 27*Cin) bf16
        patch = patch.reshape(bh * W, 27 * Cin)
        acc = jnp.dot(patch, w, preferred_element_type=jnp.float32)   # (bh*W, Cp)
        o_ref[h0 * W:(h0 + bh) * W, :] = (acc + bias).astype(o_ref.dtype)


def _plane_spec(kd, H, W, Cin):
    # Block size 1 along the padded-D axis => block index == element index,
    # which is how the overlapping D-halo is expressed with plain BlockSpecs.
    return pl.BlockSpec((None, None, H + 2, W + 2, Cin),
                        lambda n, d: (n, d + kd, 0, 0, 0))


def conv3d_pallas(x_ndhwc, w, b, *, rows_per_chunk=1024):
    """3x3x3 convolution, stride 1, padding 1, + bias.  Channels-last layout.

    x_ndhwc: (N, D, H, W, Cin) float32
    w      : (Cout, Cin, 3, 3, 3)  (PyTorch OIDHW layout)
    b      : (Cout,)
    returns: (N, D, H, W, Cout) float32
    """
    N, D, H, W, Cin = x_ndhwc.shape
    Cout = w.shape[0]
    Cp = _round_up(Cout, 128)

    # 1-voxel halo pad + bf16 cast (MXU-native operands; accumulation stays f32).
    xp = jnp.pad(x_ndhwc, ((0, 0), (1, 1), (1, 1), (1, 1), (0, 0)))
    xp = xp.astype(jnp.bfloat16)

    # Pack the filter: (Cout, Cin, kd, kh, kw) -> (27*Cin, Cp), zero-padded lanes.
    wm = jnp.transpose(w, (2, 3, 4, 1, 0)).reshape(27 * Cin, Cout)
    wm = jnp.pad(wm, ((0, 0), (0, Cp - Cout))).astype(jnp.bfloat16)
    bp = jnp.pad(b, (0, Cp - Cout)).astype(jnp.float32).reshape(1, Cp)

    # Rows per in-kernel chunk (bounds the im2col operand held in VMEM).
    bh = min(H, max(1, rows_per_chunk // max(W, 1)))
    while H % bh:
        bh -= 1

    out = pl.pallas_call(
        functools.partial(_conv3x3x3_kernel, H=H, W=W, Cin=Cin, bh=bh),
        out_shape=jax.ShapeDtypeStruct((N, D, H * W, Cp), jnp.float32),
        grid_spec=pltpu.PrefetchScalarGridSpec(
            num_scalar_prefetch=0,
            grid=(N, D),
            in_specs=[
                _plane_spec(0, H, W, Cin),
                _plane_spec(1, H, W, Cin),
                _plane_spec(2, H, W, Cin),
                # Constant block index -> fetched once, VMEM-resident all grid.
                pl.BlockSpec((27 * Cin, Cp), lambda n, d: (0, 0)),
                pl.BlockSpec((1, Cp), lambda n, d: (0, 0)),
            ],
            out_specs=pl.BlockSpec((None, None, H * W, Cp),
                                   lambda n, d: (n, d, 0, 0)),
        ),
        compiler_params=pltpu.CompilerParams(
            dimension_semantics=("parallel", "parallel"),
            vmem_limit_bytes=48 * 1024 * 1024),
    )(xp, xp, xp, wm, bp)

    return out.reshape(N, D, H, W, Cp)[..., :Cout]


# ---------------------------------------------------------------------------
# JAX glue: GroupNorm(1, C), maxpool3d(k=2), forward chain
# ---------------------------------------------------------------------------
def group_norm_1g(x_ndhwc, gamma, beta, eps=1e-5):
    # GroupNorm with a single group == normalize over (D, H, W, C) per sample.
    mean = jnp.mean(x_ndhwc, axis=(1, 2, 3, 4), keepdims=True)
    var = jnp.mean(jnp.square(x_ndhwc - mean), axis=(1, 2, 3, 4), keepdims=True)
    xn = (x_ndhwc - mean) * lax.rsqrt(var + eps)
    return xn * gamma.reshape(1, 1, 1, 1, -1) + beta.reshape(1, 1, 1, 1, -1)


def maxpool3d_2x(x_ndhwc):
    return lax.reduce_window(x_ndhwc, -jnp.inf, lax.max,
                             (1, 2, 2, 2, 1), (1, 2, 2, 2, 1), "VALID")


def convd_forward(x_ncdhw, params, *, first=False):
    (w1, b1, g1, be1, w2, b2, g2, be2, w3, b3, g3, be3) = params
    x = jnp.transpose(x_ncdhw, (0, 2, 3, 4, 1)).astype(jnp.float32)  # -> NDHWC
    if not first:
        x = maxpool3d_2x(x)
    x = conv3d_pallas(x, w1, b1)
    x = group_norm_1g(x, g1, be1)
    y = conv3d_pallas(x, w2, b2)
    y = group_norm_1g(y, g2, be2)
    y = jax.nn.relu(y)
    # TODO(synk): F.dropout3d defaults to training=True (stochastic channel
    # dropout); evaluated here as identity (inference behaviour).
    z = conv3d_pallas(y, w3, b3)
    z = group_norm_1g(z, g3, be3)
    z = jax.nn.relu(z)
    return jnp.transpose(z, (0, 4, 1, 2, 3))                          # -> NCDHW


def init_params(key, inplanes, planes):
    def conv_init(k, cin, cout):
        kw_, kb_ = jax.random.split(k)
        bnd = 1.0 / float(cin * 27) ** 0.5
        w = jax.random.uniform(kw_, (cout, cin, 3, 3, 3), jnp.float32, -bnd, bnd)
        b = jax.random.uniform(kb_, (cout,), jnp.float32, -bnd, bnd)
        return w, b

    ks = jax.random.split(key, 9)
    w1, b1 = conv_init(ks[0], inplanes, planes)
    w2, b2 = conv_init(ks[1], planes, planes)
    w3, b3 = conv_init(ks[2], planes, planes)
    g1 = jax.random.uniform(ks[3], (planes,), jnp.float32, 0.5, 1.5)
    g2 = jax.random.uniform(ks[4], (planes,), jnp.float32, 0.5, 1.5)
    g3 = jax.random.uniform(ks[5], (planes,), jnp.float32, 0.5, 1.5)
    be1 = jax.random.uniform(ks[6], (planes,), jnp.float32, -0.2, 0.2)
    be2 = jax.random.uniform(ks[7], (planes,), jnp.float32, -0.2, 0.2)
    be3 = jax.random.uniform(ks[8], (planes,), jnp.float32, -0.2, 0.2)
    return (w1, b1, g1, be1, w2, b2, g2, be2, w3, b3, g3, be3)


# ---------------------------------------------------------------------------
# Pure-JAX reference (mirrors the kernel's bf16-operand / f32-accum policy)
# ---------------------------------------------------------------------------
def _conv3d_ref(x_ncdhw, w, b):
    y = lax.conv_general_dilated(
        x_ncdhw.astype(jnp.bfloat16), w.astype(jnp.bfloat16),
        window_strides=(1, 1, 1), padding=((1, 1), (1, 1), (1, 1)),
        dimension_numbers=("NCDHW", "OIDHW", "NCDHW"),
        preferred_element_type=jnp.float32)
    return y + b.reshape(1, -1, 1, 1, 1)


def _gn_ref(x, g, b, eps=1e-5):
    mean = jnp.mean(x, axis=(1, 2, 3, 4), keepdims=True)
    var = jnp.mean(jnp.square(x - mean), axis=(1, 2, 3, 4), keepdims=True)
    xn = (x - mean) * lax.rsqrt(var + eps)
    return xn * g.reshape(1, -1, 1, 1, 1) + b.reshape(1, -1, 1, 1, 1)


def _maxpool_ref(x):
    return lax.reduce_window(x, -jnp.inf, lax.max,
                             (1, 1, 2, 2, 2), (1, 1, 2, 2, 2), "VALID")


def convd_ref(x, params, *, first=False):
    (w1, b1, g1, be1, w2, b2, g2, be2, w3, b3, g3, be3) = params
    if not first:
        x = _maxpool_ref(x)
    x = _gn_ref(_conv3d_ref(x, w1, b1), g1, be1)
    y = jax.nn.relu(_gn_ref(_conv3d_ref(x, w2, b2), g2, be2))
    z = jax.nn.relu(_gn_ref(_conv3d_ref(y, w3, b3), g3, be3))
    return z


if __name__ == "__main__":
    key = jax.random.PRNGKey(0)
    kx, kp = jax.random.split(key)

    N, Cin, planes, S = 2, 4, 16, 16          # NCDHW input, pooled to 8^3 inside
    x = jax.random.normal(kx, (N, Cin, S, S, S), jnp.float32)
    params = init_params(kp, Cin, planes)

    fwd = jax.jit(functools.partial(convd_forward, first=False))
    out = jax.block_until_ready(fwd(x, params))

    ref = convd_ref(x, params, first=False)

    assert out.shape == (N, planes, S // 2, S // 2, S // 2), out.shape
    max_err = float(jnp.max(jnp.abs(out - ref)))
    assert jnp.allclose(out, ref, atol=5e-3, rtol=5e-3), max_err
    print("KERNEL_OK")
</pallas_src>

<mosaic_0001>
module attributes {stable_mosaic.version = 11 : i64} {
  func.func @_conv3x3x3_kernel(%arg0: i32, %arg1: i32, %arg2: memref<1x1x10x10x4xbf16, #tpu.memory_space<vmem>>, %arg3: memref<1x1x10x10x4xbf16, #tpu.memory_space<vmem>>, %arg4: memref<1x1x10x10x4xbf16, #tpu.memory_space<vmem>>, %arg5: memref<108x128xbf16, #tpu.memory_space<vmem>>, %arg6: memref<1x128xf32, #tpu.memory_space<vmem>>, %arg7: memref<1x1x64x128xf32, #tpu.memory_space<vmem>>) attributes {dimension_semantics = [#tpu.dimension_semantics<parallel>, #tpu.dimension_semantics<parallel>], iteration_bounds = array<i64: 2, 8>, scalar_prefetch = 0 : i64, scratch_operands = 0 : i64, tpu.core_type = #tpu.core_type<tc>, window_params = [{transform_indices = @transform_0, window_bounds = array<i64: 1, 1, 10, 10, 4>}, {transform_indices = @transform_1, window_bounds = array<i64: 1, 1, 10, 10, 4>}, {transform_indices = @transform_2, window_bounds = array<i64: 1, 1, 10, 10, 4>}, {pipeline_mode = #tpu.pipeline_mode<synchronous>, transform_indices = @transform_3, window_bounds = array<i64: 108, 128>}, {pipeline_mode = #tpu.pipeline_mode<synchronous>, transform_indices = @transform_4, window_bounds = array<i64: 1, 128>}, {transform_indices = @transform_5, window_bounds = array<i64: 1, 1, 64, 128>}]} {
    %c0 = arith.constant 0 : index
    %c0_0 = arith.constant 0 : index
    %0 = vector.load %arg5[%c0, %c0_0] : memref<108x128xbf16, #tpu.memory_space<vmem>>, vector<108x128xbf16>
    %c0_1 = arith.constant 0 : index
    %c0_2 = arith.constant 0 : index
    %1 = vector.load %arg6[%c0_1, %c0_2] : memref<1x128xf32, #tpu.memory_space<vmem>>, vector<1x128xf32>
    %c0_3 = arith.constant 0 : index
    %c0_4 = arith.constant 0 : index
    %c0_5 = arith.constant 0 : index
    %c0_6 = arith.constant 0 : index
    %c0_7 = arith.constant 0 : index
    %2 = vector.load %arg2[%c0_3, %c0_4, %c0_5, %c0_6, %c0_7] : memref<1x1x10x10x4xbf16, #tpu.memory_space<vmem>>, vector<1x1x8x8x4xbf16>
    %3 = vector.shape_cast %2 : vector<1x1x8x8x4xbf16> to vector<8x8x4xbf16>
    %c0_8 = arith.constant 0 : index
    %c0_9 = arith.constant 0 : index
    %c0_10 = arith.constant 0 : index
    %c1 = arith.constant 1 : index
    %c0_11 = arith.constant 0 : index
    %4 = vector.load %arg2[%c0_8, %c0_9, %c0_10, %c1, %c0_11] : memref<1x1x10x10x4xbf16, #tpu.memory_space<vmem>>, vector<1x1x8x8x4xbf16>
    %5 = vector.shape_cast %4 : vector<1x1x8x8x4xbf16> to vector<8x8x4xbf16>
    %c0_12 = arith.constant 0 : index
    %c0_13 = arith.constant 0 : index
    %c0_14 = arith.constant 0 : index
    %c2 = arith.constant 2 : index
    %c0_15 = arith.constant 0 : index
    %6 = vector.load %arg2[%c0_12, %c0_13, %c0_14, %c2, %c0_15] : memref<1x1x10x10x4xbf16, #tpu.memory_space<vmem>>, vector<1x1x8x8x4xbf16>
    %7 = vector.shape_cast %6 : vector<1x1x8x8x4xbf16> to vector<8x8x4xbf16>
    %c0_16 = arith.constant 0 : index
    %c0_17 = arith.constant 0 : index
    %c1_18 = arith.constant 1 : index
    %c0_19 = arith.constant 0 : index
    %c0_20 = arith.constant 0 : index
    %8 = vector.load %arg2[%c0_16, %c0_17, %c1_18, %c0_19, %c0_20] : memref<1x1x10x10x4xbf16, #tpu.memory_space<vmem>>, vector<1x1x8x8x4xbf16>
    %9 = vector.shape_cast %8 : vector<1x1x8x8x4xbf16> to vector<8x8x4xbf16>
    %c0_21 = arith.constant 0 : index
    %c0_22 = arith.constant 0 : index
    %c1_23 = arith.constant 1 : index
    %c1_24 = arith.constant 1 : index
    %c0_25 = arith.constant 0 : index
    %10 = vector.load %arg2[%c0_21, %c0_22, %c1_23, %c1_24, %c0_25] : memref<1x1x10x10x4xbf16, #tpu.memory_space<vmem>>, vector<1x1x8x8x4xbf16>
    %11 = vector.shape_cast %10 : vector<1x1x8x8x4xbf16> to vector<8x8x4xbf16>
    %c0_26 = arith.constant 0 : index
    %c0_27 = arith.constant 0 : index
    %c1_28 = arith.constant 1 : index
    %c2_29 = arith.constant 2 : index
    %c0_30 = arith.constant 0 : index
    %12 = vector.load %arg2[%c0_26, %c0_27, %c1_28, %c2_29, %c0_30] : memref<1x1x10x10x4xbf16, #tpu.memory_space<vmem>>, vector<1x1x8x8x4xbf16>
    %13 = vector.shape_cast %12 : vector<1x1x8x8x4xbf16> to vector<8x8x4xbf16>
    %c0_31 = arith.constant 0 : index
    %c0_32 = arith.constant 0 : index
    %c2_33 = arith.constant 2 : index
    %c0_34 = arith.constant 0 : index
    %c0_35 = arith.constant 0 : index
    %14 = vector.load %arg2[%c0_31, %c0_32, %c2_33, %c0_34, %c0_35] : memref<1x1x10x10x4xbf16, #tpu.memory_space<vmem>>, vector<1x1x8x8x4xbf16>
    %15 = vector.shape_cast %14 : vector<1x1x8x8x4xbf16> to vector<8x8x4xbf16>
    %c0_36 = arith.constant 0 : index
    %c0_37 = arith.constant 0 : index
    %c2_38 = arith.constant 2 : index
    %c1_39 = arith.constant 1 : index
    %c0_40 = arith.constant 0 : index
    %16 = vector.load %arg2[%c0_36, %c0_37, %c2_38, %c1_39, %c0_40] : memref<1x1x10x10x4xbf16, #tpu.memory_space<vmem>>, vector<1x1x8x8x4xbf16>
    %17 = vector.shape_cast %16 : vector<1x1x8x8x4xbf16> to vector<8x8x4xbf16>
    %c0_41 = arith.constant 0 : index
    %c0_42 = arith.constant 0 : index
    %c2_43 = arith.constant 2 : index
    %c2_44 = arith.constant 2 : index
    %c0_45 = arith.constant 0 : index
    %18 = vector.load %arg2[%c0_41, %c0_42, %c2_43, %c2_44, %c0_45] : memref<1x1x10x10x4xbf16, #tpu.memory_space<vmem>>, vector<1x1x8x8x4xbf16>
    %19 = vector.shape_cast %18 : vector<1x1x8x8x4xbf16> to vector<8x8x4xbf16>
    %c0_46 = arith.constant 0 : index
    %c0_47 = arith.constant 0 : index
    %c0_48 = arith.constant 0 : index
    %c0_49 = arith.constant 0 : index
    %c0_50 = arith.constant 0 : index
    %20 = vector.load %arg3[%c0_46, %c0_47, %c0_48, %c0_49, %c0_50] : memref<1x1x10x10x4xbf16, #tpu.memory_space<vmem>>, vector<1x1x8x8x4xbf16>
    %21 = vector.shape_cast %20 : vector<1x1x8x8x4xbf16> to vector<8x8x4xbf16>
    %c0_51 = arith.constant 0 : index
    %c0_52 = arith.constant 0 : index
    %c0_53 = arith.constant 0 : index
    %c1_54 = arith.constant 1 : index
    %c0_55 = arith.constant 0 : index
    %22 = vector.load %arg3[%c0_51, %c0_52, %c0_53, %c1_54, %c0_55] : memref<1x1x10x10x4xbf16, #tpu.memory_space<vmem>>, vector<1x1x8x8x4xbf16>
    %23 = vector.shape_cast %22 : vector<1x1x8x8x4xbf16> to vector<8x8x4xbf16>
    %c0_56 = arith.constant 0 : index
    %c0_57 = arith.constant 0 : index
    %c0_58 = arith.constant 0 : index
    %c2_59 = arith.constant 2 : index
    %c0_60 = arith.constant 0 : index
    %24 = vector.load %arg3[%c0_56, %c0_57, %c0_58, %c2_59, %c0_60] : memref<1x1x10x10x4xbf16, #tpu.memory_space<vmem>>, vector<1x1x8x8x4xbf16>
    %25 = vector.shape_cast %24 : vector<1x1x8x8x4xbf16> to vector<8x8x4xbf16>
    %c0_61 = arith.constant 0 : index
    %c0_62 = arith.constant 0 : index
    %c1_63 = arith.constant 1 : index
    %c0_64 = arith.constant 0 : index
    %c0_65 = arith.constant 0 : index
    %26 = vector.load %arg3[%c0_61, %c0_62, %c1_63, %c0_64, %c0_65] : memref<1x1x10x10x4xbf16, #tpu.memory_space<vmem>>, vector<1x1x8x8x4xbf16>
    %27 = vector.shape_cast %26 : vector<1x1x8x8x4xbf16> to vector<8x8x4xbf16>
    %c0_66 = arith.constant 0 : index
    %c0_67 = arith.constant 0 : index
    %c1_68 = arith.constant 1 : index
    %c1_69 = arith.constant 1 : index
    %c0_70 = arith.constant 0 : index
    %28 = vector.load %arg3[%c0_66, %c0_67, %c1_68, %c1_69, %c0_70] : memref<1x1x10x10x4xbf16, #tpu.memory_space<vmem>>, vector<1x1x8x8x4xbf16>
    %29 = vector.shape_cast %28 : vector<1x1x8x8x4xbf16> to vector<8x8x4xbf16>
    %c0_71 = arith.constant 0 : index
    %c0_72 = arith.constant 0 : index
    %c1_73 = arith.constant 1 : index
    %c2_74 = arith.constant 2 : index
    %c0_75 = arith.constant 0 : index
    %30 = vector.load %arg3[%c0_71, %c0_72, %c1_73, %c2_74, %c0_75] : memref<1x1x10x10x4xbf16, #tpu.memory_space<vmem>>, vector<1x1x8x8x4xbf16>
    %31 = vector.shape_cast %30 : vector<1x1x8x8x4xbf16> to vector<8x8x4xbf16>
    %c0_76 = arith.constant 0 : index
    %c0_77 = arith.constant 0 : index
    %c2_78 = arith.constant 2 : index
    %c0_79 = arith.constant 0 : index
    %c0_80 = arith.constant 0 : index
    %32 = vector.load %arg3[%c0_76, %c0_77, %c2_78, %c0_79, %c0_80] : memref<1x1x10x10x4xbf16, #tpu.memory_space<vmem>>, vector<1x1x8x8x4xbf16>
    %33 = vector.shape_cast %32 : vector<1x1x8x8x4xbf16> to vector<8x8x4xbf16>
    %c0_81 = arith.constant 0 : index
    %c0_82 = arith.constant 0 : index
    %c2_83 = arith.constant 2 : index
    %c1_84 = arith.constant 1 : index
    %c0_85 = arith.constant 0 : index
    %34 = vector.load %arg3[%c0_81, %c0_82, %c2_83, %c1_84, %c0_85] : memref<1x1x10x10x4xbf16, #tpu.memory_space<vmem>>, vector<1x1x8x8x4xbf16>
    %35 = vector.shape_cast %34 : vector<1x1x8x8x4xbf16> to vector<8x8x4xbf16>
    %c0_86 = arith.constant 0 : index
    %c0_87 = arith.constant 0 : index
    %c2_88 = arith.constant 2 : index
    %c2_89 = arith.constant 2 : index
    %c0_90 = arith.constant 0 : index
    %36 = vector.load %arg3[%c0_86, %c0_87, %c2_88, %c2_89, %c0_90] : memref<1x1x10x10x4xbf16, #tpu.memory_space<vmem>>, vector<1x1x8x8x4xbf16>
    %37 = vector.shape_cast %36 : vector<1x1x8x8x4xbf16> to vector<8x8x4xbf16>
    %c0_91 = arith.constant 0 : index
    %c0_92 = arith.constant 0 : index
    %c0_93 = arith.constant 0 : index
    %c0_94 = arith.constant 0 : index
    %c0_95 = arith.constant 0 : index
    %38 = vector.load %arg4[%c0_91, %c0_92, %c0_93, %c0_94, %c0_95] : memref<1x1x10x10x4xbf16, #tpu.memory_space<vmem>>, vector<1x1x8x8x4xbf16>
    %39 = vector.shape_cast %38 : vector<1x1x8x8x4xbf16> to vector<8x8x4xbf16>
    %c0_96 = arith.constant 0 : index
    %c0_97 = arith.constant 0 : index
    %c0_98 = arith.constant 0 : index
    %c1_99 = arith.constant 1 : index
    %c0_100 = arith.constant 0 : index
    %40 = vector.load %arg4[%c0_96, %c0_97, %c0_98, %c1_99, %c0_100] : memref<1x1x10x10x4xbf16, #tpu.memory_space<vmem>>, vector<1x1x8x8x4xbf16>
    %41 = vector.shape_cast %40 : vector<1x1x8x8x4xbf16> to vector<8x8x4xbf16>
    %c0_101 = arith.constant 0 : index
    %c0_102 = arith.constant 0 : index
    %c0_103 = arith.constant 0 : index
    %c2_104 = arith.constant 2 : index
    %c0_105 = arith.constant 0 : index
    %42 = vector.load %arg4[%c0_101, %c0_102, %c0_103, %c2_104, %c0_105] : memref<1x1x10x10x4xbf16, #tpu.memory_space<vmem>>, vector<1x1x8x8x4xbf16>
    %43 = vector.shape_cast %42 : vector<1x1x8x8x4xbf16> to vector<8x8x4xbf16>
    %c0_106 = arith.constant 0 : index
    %c0_107 = arith.constant 0 : index
    %c1_108 = arith.constant 1 : index
    %c0_109 = arith.constant 0 : index
    %c0_110 = arith.constant 0 : index
    %44 = vector.load %arg4[%c0_106, %c0_107, %c1_108, %c0_109, %c0_110] : memref<1x1x10x10x4xbf16, #tpu.memory_space<vmem>>, vector<1x1x8x8x4xbf16>
    %45 = vector.shape_cast %44 : vector<1x1x8x8x4xbf16> to vector<8x8x4xbf16>
    %c0_111 = arith.constant 0 : index
    %c0_112 = arith.constant 0 : index
    %c1_113 = arith.constant 1 : index
    %c1_114 = arith.constant 1 : index
    %c0_115 = arith.constant 0 : index
    %46 = vector.load %arg4[%c0_111, %c0_112, %c1_113, %c1_114, %c0_115] : memref<1x1x10x10x4xbf16, #tpu.memory_space<vmem>>, vector<1x1x8x8x4xbf16>
    %47 = vector.shape_cast %46 : vector<1x1x8x8x4xbf16> to vector<8x8x4xbf16>
    %c0_116 = arith.constant 0 : index
    %c0_117 = arith.constant 0 : index
    %c1_118 = arith.constant 1 : index
    %c2_119 = arith.constant 2 : index
    %c0_120 = arith.constant 0 : index
    %48 = vector.load %arg4[%c0_116, %c0_117, %c1_118, %c2_119, %c0_120] : memref<1x1x10x10x4xbf16, #tpu.memory_space<vmem>>, vector<1x1x8x8x4xbf16>
    %49 = vector.shape_cast %48 : vector<1x1x8x8x4xbf16> to vector<8x8x4xbf16>
    %c0_121 = arith.constant 0 : index
    %c0_122 = arith.constant 0 : index
    %c2_123 = arith.constant 2 : index
    %c0_124 = arith.constant 0 : index
    %c0_125 = arith.constant 0 : index
    %50 = vector.load %arg4[%c0_121, %c0_122, %c2_123, %c0_124, %c0_125] : memref<1x1x10x10x4xbf16, #tpu.memory_space<vmem>>, vector<1x1x8x8x4xbf16>
    %51 = vector.shape_cast %50 : vector<1x1x8x8x4xbf16> to vector<8x8x4xbf16>
    %c0_126 = arith.constant 0 : index
    %c0_127 = arith.constant 0 : index
    %c2_128 = arith.constant 2 : index
    %c1_129 = arith.constant 1 : index
    %c0_130 = arith.constant 0 : index
    %52 = vector.load %arg4[%c0_126, %c0_127, %c2_128, %c1_129, %c0_130] : memref<1x1x10x10x4xbf16, #tpu.memory_space<vmem>>, vector<1x1x8x8x4xbf16>
    %53 = vector.shape_cast %52 : vector<1x1x8x8x4xbf16> to vector<8x8x4xbf16>
    %c0_131 = arith.constant 0 : index
    %c0_132 = arith.constant 0 : index
    %c2_133 = arith.constant 2 : index
    %c2_134 = arith.constant 2 : index
    %c0_135 = arith.constant 0 : index
    %54 = vector.load %arg4[%c0_131, %c0_132, %c2_133, %c2_134, %c0_135] : memref<1x1x10x10x4xbf16, #tpu.memory_space<vmem>>, vector<1x1x8x8x4xbf16>
    %55 = vector.shape_cast %54 : vector<1x1x8x8x4xbf16> to vector<8x8x4xbf16>
    %56 = tpu.concatenate %3, %5, %7, %9, %11, %13, %15, %17, %19, %21, %23, %25, %27, %29, %31, %33 in 2 : vector<8x8x4xbf16>, vector<8x8x4xbf16>, vector<8x8x4xbf16>, vector<8x8x4xbf16>, vector<8x8x4xbf16>, vector<8x8x4xbf16>, vector<8x8x4xbf16>, vector<8x8x4xbf16>, vector<8x8x4xbf16>, vector<8x8x4xbf16>, vector<8x8x4xbf16>, vector<8x8x4xbf16>, vector<8x8x4xbf16>, vector<8x8x4xbf16>, vector<8x8x4xbf16>, vector<8x8x4xbf16> -> vector<8x8x64xbf16>
    %57 = tpu.concatenate %35, %37, %39, %41, %43, %45, %47, %49, %51, %53, %55 in 2 : vector<8x8x4xbf16>, vector<8x8x4xbf16>, vector<8x8x4xbf16>, vector<8x8x4xbf16>, vector<8x8x4xbf16>, vector<8x8x4xbf16>, vector<8x8x4xbf16>, vector<8x8x4xbf16>, vector<8x8x4xbf16>, vector<8x8x4xbf16>, vector<8x8x4xbf16> -> vector<8x8x44xbf16>
    %58 = tpu.concatenate %56, %57 in 2 : vector<8x8x64xbf16>, vector<8x8x44xbf16> -> vector<8x8x108xbf16>
    %59 = vector.shape_cast %58 : vector<8x8x108xbf16> to vector<64x108xbf16>
    %cst = arith.constant dense<0.000000e+00> : vector<64x128xf32>
    %60 = tpu.matmul %59, %0, %cst {dimension_numbers = #tpu.dot_dimension_numbers<[1], [0], [0], [1], [0, 0, 1, 1], [], []>} : vector<64x108xbf16>, vector<108x128xbf16>, vector<64x128xf32> -> vector<64x128xf32>
    %61 = vector.broadcast %1 : vector<1x128xf32> to vector<64x128xf32>
    %62 = arith.addf %60, %61 : vector<64x128xf32>
    %c0_136 = arith.constant 0 : index
    %c0_137 = arith.constant 0 : index
    %c0_138 = arith.constant 0 : index
    %c0_139 = arith.constant 0 : index
    %63 = vector.load %arg7[%c0_136, %c0_137, %c0_138, %c0_139] : memref<1x1x64x128xf32, #tpu.memory_space<vmem>>, vector<1x1x64x128xf32>
    %64 = vector.shape_cast %63 : vector<1x1x64x128xf32> to vector<64x128xf32>
    %65 = vector.shape_cast %62 : vector<64x128xf32> to vector<1x1x64x128xf32>
    tpu.vector_store %arg7[%c0_136, %c0_137, %c0_138, %c0_139], %65 {strides = array<i32>} : memref<1x1x64x128xf32, #tpu.memory_space<vmem>>, vector<1x1x64x128xf32>,
    return
  }
  func.func @transform_0(%arg0: i32, %arg1: i32) -> (i32, i32, i32, i32, i32) {
    %c0_i32 = arith.constant 0 : i32
    %0 = arith.addi %arg1, %c0_i32 : i32
    %c0_i32_0 = arith.constant 0 : i32
    %c0_i32_1 = arith.constant 0 : i32
    %c0_i32_2 = arith.constant 0 : i32
    %c0_i32_3 = arith.constant 0 : i32
    return %arg0, %0, %c0_i32_0, %c0_i32_1, %c0_i32_2 : i32, i32, i32, i32, i32
  }
  func.func @transform_1(%arg0: i32, %arg1: i32) -> (i32, i32, i32, i32, i32) {
    %c1_i32 = arith.constant 1 : i32
    %0 = arith.addi %arg1, %c1_i32 : i32
    %c0_i32 = arith.constant 0 : i32
    %c0_i32_0 = arith.constant 0 : i32
    %c0_i32_1 = arith.constant 0 : i32
    %c0_i32_2 = arith.constant 0 : i32
    return %arg0, %0, %c0_i32, %c0_i32_0, %c0_i32_1 : i32, i32, i32, i32, i32
  }
  func.func @transform_2(%arg0: i32, %arg1: i32) -> (i32, i32, i32, i32, i32) {
    %c2_i32 = arith.constant 2 : i32
    %0 = arith.addi %arg1, %c2_i32 : i32
    %c0_i32 = arith.constant 0 : i32
    %c0_i32_0 = arith.constant 0 : i32
    %c0_i32_1 = arith.constant 0 : i32
    %c0_i32_2 = arith.constant 0 : i32
    return %arg0, %0, %c0_i32, %c0_i32_0, %c0_i32_1 : i32, i32, i32, i32, i32
  }
  func.func @transform_3(%arg0: i32, %arg1: i32) -> (i32, i32) {
    %c0_i32 = arith.constant 0 : i32
    %c0_i32_0 = arith.constant 0 : i32
    %c0_i32_1 = arith.constant 0 : i32
    return %c0_i32, %c0_i32_0 : i32, i32
  }
  func.func @transform_4(%arg0: i32, %arg1: i32) -> (i32, i32) {
    %c0_i32 = arith.constant 0 : i32
    %c0_i32_0 = arith.constant 0 : i32
    %c0_i32_1 = arith.constant 0 : i32
    return %c0_i32, %c0_i32_0 : i32, i32
  }
  func.func @transform_5(%arg0: i32, %arg1: i32) -> (i32, i32, i32, i32) {
    %c0_i32 = arith.constant 0 : i32
    %c0_i32_0 = arith.constant 0 : i32
    %c0_i32_1 = arith.constant 0 : i32
    return %arg0, %arg1, %c0_i32, %c0_i32_0 : i32, i32, i32, i32
  }
}

module attributes {stable_mosaic.version = 11 : i64} {
  func.func @_conv3x3x3_kernel(%arg0: i32, %arg1: i32, %arg2: memref<1x1x10x10x16xbf16, #tpu.memory_space<vmem>>, %arg3: memref<1x1x10x10x16xbf16, #tpu.memory_space<vmem>>, %arg4: memref<1x1x10x10x16xbf16, #tpu.memory_space<vmem>>, %arg5: memref<432x128xbf16, #tpu.memory_space<vmem>>, %arg6: memref<1x128xf32, #tpu.memory_space<vmem>>, %arg7: memref<1x1x64x128xf32, #tpu.memory_space<vmem>>) attributes {dimension_semantics = [#tpu.dimension_semantics<parallel>, #tpu.dimension_semantics<parallel>], iteration_bounds = array<i64: 2, 8>, scalar_prefetch = 0 : i64, scratch_operands = 0 : i64, tpu.core_type = #tpu.core_type<tc>, window_params = [{transform_indices = @transform_0, window_bounds = array<i64: 1, 1, 10, 10, 16>}, {transform_indices = @transform_1, window_bounds = array<i64: 1, 1, 10, 10, 16>}, {transform_indices = @transform_2, window_bounds = array<i64: 1, 1, 10, 10, 16>}, {pipeline_mode = #tpu.pipeline_mode<synchronous>, transform_indices = @transform_3, window_bounds = array<i64: 432, 128>}, {pipeline_mode = #tpu.pipeline_mode<synchronous>, transform_indices = @transform_4, window_bounds = array<i64: 1, 128>}, {transform_indices = @transform_5, window_bounds = array<i64: 1, 1, 64, 128>}]} {
    %c0 = arith.constant 0 : index
    %c0_0 = arith.constant 0 : index
    %0 = vector.load %arg5[%c0, %c0_0] : memref<432x128xbf16, #tpu.memory_space<vmem>>, vector<432x128xbf16>
    %c0_1 = arith.constant 0 : index
    %c0_2 = arith.constant 0 : index
    %1 = vector.load %arg6[%c0_1, %c0_2] : memref<1x128xf32, #tpu.memory_space<vmem>>, vector<1x128xf32>
    %c0_3 = arith.constant 0 : index
    %c0_4 = arith.constant 0 : index
    %c0_5 = arith.constant 0 : index
    %c0_6 = arith.constant 0 : index
    %c0_7 = arith.constant 0 : index
    %2 = vector.load %arg2[%c0_3, %c0_4, %c0_5, %c0_6, %c0_7] : memref<1x1x10x10x16xbf16, #tpu.memory_space<vmem>>, vector<1x1x8x8x16xbf16>
    %3 = vector.shape_cast %2 : vector<1x1x8x8x16xbf16> to vector<8x8x16xbf16>
    %c0_8 = arith.constant 0 : index
    %c0_9 = arith.constant 0 : index
    %c0_10 = arith.constant 0 : index
    %c1 = arith.constant 1 : index
    %c0_11 = arith.constant 0 : index
    %4 = vector.load %arg2[%c0_8, %c0_9, %c0_10, %c1, %c0_11] : memref<1x1x10x10x16xbf16, #tpu.memory_space<vmem>>, vector<1x1x8x8x16xbf16>
    %5 = vector.shape_cast %4 : vector<1x1x8x8x16xbf16> to vector<8x8x16xbf16>
    %c0_12 = arith.constant 0 : index
    %c0_13 = arith.constant 0 : index
    %c0_14 = arith.constant 0 : index
    %c2 = arith.constant 2 : index
    %c0_15 = arith.constant 0 : index
    %6 = vector.load %arg2[%c0_12, %c0_13, %c0_14, %c2, %c0_15] : memref<1x1x10x10x16xbf16, #tpu.memory_space<vmem>>, vector<1x1x8x8x16xbf16>
    %7 = vector.shape_cast %6 : vector<1x1x8x8x16xbf16> to vector<8x8x16xbf16>
    %c0_16 = arith.constant 0 : index
    %c0_17 = arith.constant 0 : index
    %c1_18 = arith.constant 1 : index
    %c0_19 = arith.constant 0 : index
    %c0_20 = arith.constant 0 : index
    %8 = vector.load %arg2[%c0_16, %c0_17, %c1_18, %c0_19, %c0_20] : memref<1x1x10x10x16xbf16, #tpu.memory_space<vmem>>, vector<1x1x8x8x16xbf16>
    %9 = vector.shape_cast %8 : vector<1x1x8x8x16xbf16> to vector<8x8x16xbf16>
    %c0_21 = arith.constant 0 : index
    %c0_22 = arith.constant 0 : index
    %c1_23 = arith.constant 1 : index
    %c1_24 = arith.constant 1 : index
    %c0_25 = arith.constant 0 : index
    %10 = vector.load %arg2[%c0_21, %c0_22, %c1_23, %c1_24, %c0_25] : memref<1x1x10x10x16xbf16, #tpu.memory_space<vmem>>, vector<1x1x8x8x16xbf16>
    %11 = vector.shape_cast %10 : vector<1x1x8x8x16xbf16> to vector<8x8x16xbf16>
    %c0_26 = arith.constant 0 : index
    %c0_27 = arith.constant 0 : index
    %c1_28 = arith.constant 1 : index
    %c2_29 = arith.constant 2 : index
    %c0_30 = arith.constant 0 : index
    %12 = vector.load %arg2[%c0_26, %c0_27, %c1_28, %c2_29, %c0_30] : memref<1x1x10x10x16xbf16, #tpu.memory_space<vmem>>, vector<1x1x8x8x16xbf16>
    %13 = vector.shape_cast %12 : vector<1x1x8x8x16xbf16> to vector<8x8x16xbf16>
    %c0_31 = arith.constant 0 : index
    %c0_32 = arith.constant 0 : index
    %c2_33 = arith.constant 2 : index
    %c0_34 = arith.constant 0 : index
    %c0_35 = arith.constant 0 : index
    %14 = vector.load %arg2[%c0_31, %c0_32, %c2_33, %c0_34, %c0_35] : memref<1x1x10x10x16xbf16, #tpu.memory_space<vmem>>, vector<1x1x8x8x16xbf16>
    %15 = vector.shape_cast %14 : vector<1x1x8x8x16xbf16> to vector<8x8x16xbf16>
    %c0_36 = arith.constant 0 : index
    %c0_37 = arith.constant 0 : index
    %c2_38 = arith.constant 2 : index
    %c1_39 = arith.constant 1 : index
    %c0_40 = arith.constant 0 : index
    %16 = vector.load %arg2[%c0_36, %c0_37, %c2_38, %c1_39, %c0_40] : memref<1x1x10x10x16xbf16, #tpu.memory_space<vmem>>, vector<1x1x8x8x16xbf16>
    %17 = vector.shape_cast %16 : vector<1x1x8x8x16xbf16> to vector<8x8x16xbf16>
    %c0_41 = arith.constant 0 : index
    %c0_42 = arith.constant 0 : index
    %c2_43 = arith.constant 2 : index
    %c2_44 = arith.constant 2 : index
    %c0_45 = arith.constant 0 : index
    %18 = vector.load %arg2[%c0_41, %c0_42, %c2_43, %c2_44, %c0_45] : memref<1x1x10x10x16xbf16, #tpu.memory_space<vmem>>, vector<1x1x8x8x16xbf16>
    %19 = vector.shape_cast %18 : vector<1x1x8x8x16xbf16> to vector<8x8x16xbf16>
    %c0_46 = arith.constant 0 : index
    %c0_47 = arith.constant 0 : index
    %c0_48 = arith.constant 0 : index
    %c0_49 = arith.constant 0 : index
    %c0_50 = arith.constant 0 : index
    %20 = vector.load %arg3[%c0_46, %c0_47, %c0_48, %c0_49, %c0_50] : memref<1x1x10x10x16xbf16, #tpu.memory_space<vmem>>, vector<1x1x8x8x16xbf16>
    %21 = vector.shape_cast %20 : vector<1x1x8x8x16xbf16> to vector<8x8x16xbf16>
    %c0_51 = arith.constant 0 : index
    %c0_52 = arith.constant 0 : index
    %c0_53 = arith.constant 0 : index
    %c1_54 = arith.constant 1 : index
    %c0_55 = arith.constant 0 : index
    %22 = vector.load %arg3[%c0_51, %c0_52, %c0_53, %c1_54, %c0_55] : memref<1x1x10x10x16xbf16, #tpu.memory_space<vmem>>, vector<1x1x8x8x16xbf16>
    %23 = vector.shape_cast %22 : vector<1x1x8x8x16xbf16> to vector<8x8x16xbf16>
    %c0_56 = arith.constant 0 : index
    %c0_57 = arith.constant 0 : index
    %c0_58 = arith.constant 0 : index
    %c2_59 = arith.constant 2 : index
    %c0_60 = arith.constant 0 : index
    %24 = vector.load %arg3[%c0_56, %c0_57, %c0_58, %c2_59, %c0_60] : memref<1x1x10x10x16xbf16, #tpu.memory_space<vmem>>, vector<1x1x8x8x16xbf16>
    %25 = vector.shape_cast %24 : vector<1x1x8x8x16xbf16> to vector<8x8x16xbf16>
    %c0_61 = arith.constant 0 : index
    %c0_62 = arith.constant 0 : index
    %c1_63 = arith.constant 1 : index
    %c0_64 = arith.constant 0 : index
    %c0_65 = arith.constant 0 : index
    %26 = vector.load %arg3[%c0_61, %c0_62, %c1_63, %c0_64, %c0_65] : memref<1x1x10x10x16xbf16, #tpu.memory_space<vmem>>, vector<1x1x8x8x16xbf16>
    %27 = vector.shape_cast %26 : vector<1x1x8x8x16xbf16> to vector<8x8x16xbf16>
    %c0_66 = arith.constant 0 : index
    %c0_67 = arith.constant 0 : index
    %c1_68 = arith.constant 1 : index
    %c1_69 = arith.constant 1 : index
    %c0_70 = arith.constant 0 : index
    %28 = vector.load %arg3[%c0_66, %c0_67, %c1_68, %c1_69, %c0_70] : memref<1x1x10x10x16xbf16, #tpu.memory_space<vmem>>, vector<1x1x8x8x16xbf16>
    %29 = vector.shape_cast %28 : vector<1x1x8x8x16xbf16> to vector<8x8x16xbf16>
    %c0_71 = arith.constant 0 : index
    %c0_72 = arith.constant 0 : index
    %c1_73 = arith.constant 1 : index
    %c2_74 = arith.constant 2 : index
    %c0_75 = arith.constant 0 : index
    %30 = vector.load %arg3[%c0_71, %c0_72, %c1_73, %c2_74, %c0_75] : memref<1x1x10x10x16xbf16, #tpu.memory_space<vmem>>, vector<1x1x8x8x16xbf16>
    %31 = vector.shape_cast %30 : vector<1x1x8x8x16xbf16> to vector<8x8x16xbf16>
    %c0_76 = arith.constant 0 : index
    %c0_77 = arith.constant 0 : index
    %c2_78 = arith.constant 2 : index
    %c0_79 = arith.constant 0 : index
    %c0_80 = arith.constant 0 : index
    %32 = vector.load %arg3[%c0_76, %c0_77, %c2_78, %c0_79, %c0_80] : memref<1x1x10x10x16xbf16, #tpu.memory_space<vmem>>, vector<1x1x8x8x16xbf16>
    %33 = vector.shape_cast %32 : vector<1x1x8x8x16xbf16> to vector<8x8x16xbf16>
    %c0_81 = arith.constant 0 : index
    %c0_82 = arith.constant 0 : index
    %c2_83 = arith.constant 2 : index
    %c1_84 = arith.constant 1 : index
    %c0_85 = arith.constant 0 : index
    %34 = vector.load %arg3[%c0_81, %c0_82, %c2_83, %c1_84, %c0_85] : memref<1x1x10x10x16xbf16, #tpu.memory_space<vmem>>, vector<1x1x8x8x16xbf16>
    %35 = vector.shape_cast %34 : vector<1x1x8x8x16xbf16> to vector<8x8x16xbf16>
    %c0_86 = arith.constant 0 : index
    %c0_87 = arith.constant 0 : index
    %c2_88 = arith.constant 2 : index
    %c2_89 = arith.constant 2 : index
    %c0_90 = arith.constant 0 : index
    %36 = vector.load %arg3[%c0_86, %c0_87, %c2_88, %c2_89, %c0_90] : memref<1x1x10x10x16xbf16, #tpu.memory_space<vmem>>, vector<1x1x8x8x16xbf16>
    %37 = vector.shape_cast %36 : vector<1x1x8x8x16xbf16> to vector<8x8x16xbf16>
    %c0_91 = arith.constant 0 : index
    %c0_92 = arith.constant 0 : index
    %c0_93 = arith.constant 0 : index
    %c0_94 = arith.constant 0 : index
    %c0_95 = arith.constant 0 : index
    %38 = vector.load %arg4[%c0_91, %c0_92, %c0_93, %c0_94, %c0_95] : memref<1x1x10x10x16xbf16, #tpu.memory_space<vmem>>, vector<1x1x8x8x16xbf16>
    %39 = vector.shape_cast %38 : vector<1x1x8x8x16xbf16> to vector<8x8x16xbf16>
    %c0_96 = arith.constant 0 : index
    %c0_97 = arith.constant 0 : index
    %c0_98 = arith.constant 0 : index
    %c1_99 = arith.constant 1 : index
    %c0_100 = arith.constant 0 : index
    %40 = vector.load %arg4[%c0_96, %c0_97, %c0_98, %c1_99, %c0_100] : memref<1x1x10x10x16xbf16, #tpu.memory_space<vmem>>, vector<1x1x8x8x16xbf16>
    %41 = vector.shape_cast %40 : vector<1x1x8x8x16xbf16> to vector<8x8x16xbf16>
    %c0_101 = arith.constant 0 : index
    %c0_102 = arith.constant 0 : index
    %c0_103 = arith.constant 0 : index
    %c2_104 = arith.constant 2 : index
    %c0_105 = arith.constant 0 : index
    %42 = vector.load %arg4[%c0_101, %c0_102, %c0_103, %c2_104, %c0_105] : memref<1x1x10x10x16xbf16, #tpu.memory_space<vmem>>, vector<1x1x8x8x16xbf16>
    %43 = vector.shape_cast %42 : vector<1x1x8x8x16xbf16> to vector<8x8x16xbf16>
    %c0_106 = arith.constant 0 : index
    %c0_107 = arith.constant 0 : index
    %c1_108 = arith.constant 1 : index
    %c0_109 = arith.constant 0 : index
    %c0_110 = arith.constant 0 : index
    %44 = vector.load %arg4[%c0_106, %c0_107, %c1_108, %c0_109, %c0_110] : memref<1x1x10x10x16xbf16, #tpu.memory_space<vmem>>, vector<1x1x8x8x16xbf16>
    %45 = vector.shape_cast %44 : vector<1x1x8x8x16xbf16> to vector<8x8x16xbf16>
    %c0_111 = arith.constant 0 : index
    %c0_112 = arith.constant 0 : index
    %c1_113 = arith.constant 1 : index
    %c1_114 = arith.constant 1 : index
    %c0_115 = arith.constant 0 : index
    %46 = vector.load %arg4[%c0_111, %c0_112, %c1_113, %c1_114, %c0_115] : memref<1x1x10x10x16xbf16, #tpu.memory_space<vmem>>, vector<1x1x8x8x16xbf16>
    %47 = vector.shape_cast %46 : vector<1x1x8x8x16xbf16> to vector<8x8x16xbf16>
    %c0_116 = arith.constant 0 : index
    %c0_117 = arith.constant 0 : index
    %c1_118 = arith.constant 1 : index
    %c2_119 = arith.constant 2 : index
    %c0_120 = arith.constant 0 : index
    %48 = vector.load %arg4[%c0_116, %c0_117, %c1_118, %c2_119, %c0_120] : memref<1x1x10x10x16xbf16, #tpu.memory_space<vmem>>, vector<1x1x8x8x16xbf16>
    %49 = vector.shape_cast %48 : vector<1x1x8x8x16xbf16> to vector<8x8x16xbf16>
    %c0_121 = arith.constant 0 : index
    %c0_122 = arith.constant 0 : index
    %c2_123 = arith.constant 2 : index
    %c0_124 = arith.constant 0 : index
    %c0_125 = arith.constant 0 : index
    %50 = vector.load %arg4[%c0_121, %c0_122, %c2_123, %c0_124, %c0_125] : memref<1x1x10x10x16xbf16, #tpu.memory_space<vmem>>, vector<1x1x8x8x16xbf16>
    %51 = vector.shape_cast %50 : vector<1x1x8x8x16xbf16> to vector<8x8x16xbf16>
    %c0_126 = arith.constant 0 : index
    %c0_127 = arith.constant 0 : index
    %c2_128 = arith.constant 2 : index
    %c1_129 = arith.constant 1 : index
    %c0_130 = arith.constant 0 : index
    %52 = vector.load %arg4[%c0_126, %c0_127, %c2_128, %c1_129, %c0_130] : memref<1x1x10x10x16xbf16, #tpu.memory_space<vmem>>, vector<1x1x8x8x16xbf16>
    %53 = vector.shape_cast %52 : vector<1x1x8x8x16xbf16> to vector<8x8x16xbf16>
    %c0_131 = arith.constant 0 : index
    %c0_132 = arith.constant 0 : index
    %c2_133 = arith.constant 2 : index
    %c2_134 = arith.constant 2 : index
    %c0_135 = arith.constant 0 : index
    %54 = vector.load %arg4[%c0_131, %c0_132, %c2_133, %c2_134, %c0_135] : memref<1x1x10x10x16xbf16, #tpu.memory_space<vmem>>, vector<1x1x8x8x16xbf16>
    %55 = vector.shape_cast %54 : vector<1x1x8x8x16xbf16> to vector<8x8x16xbf16>
    %56 = tpu.concatenate %3, %5, %7, %9, %11, %13, %15, %17, %19, %21, %23, %25, %27, %29, %31, %33 in 2 : vector<8x8x16xbf16>, vector<8x8x16xbf16>, vector<8x8x16xbf16>, vector<8x8x16xbf16>, vector<8x8x16xbf16>, vector<8x8x16xbf16>, vector<8x8x16xbf16>, vector<8x8x16xbf16>, vector<8x8x16xbf16>, vector<8x8x16xbf16>, vector<8x8x16xbf16>, vector<8x8x16xbf16>, vector<8x8x16xbf16>, vector<8x8x16xbf16>, vector<8x8x16xbf16>, vector<8x8x16xbf16> -> vector<8x8x256xbf16>
    %57 = tpu.concatenate %35, %37, %39, %41, %43, %45, %47, %49, %51, %53, %55 in 2 : vector<8x8x16xbf16>, vector<8x8x16xbf16>, vector<8x8x16xbf16>, vector<8x8x16xbf16>, vector<8x8x16xbf16>, vector<8x8x16xbf16>, vector<8x8x16xbf16>, vector<8x8x16xbf16>, vector<8x8x16xbf16>, vector<8x8x16xbf16>, vector<8x8x16xbf16> -> vector<8x8x176xbf16>
    %58 = tpu.concatenate %56, %57 in 2 : vector<8x8x256xbf16>, vector<8x8x176xbf16> -> vector<8x8x432xbf16>
    %59 = vector.shape_cast %58 : vector<8x8x432xbf16> to vector<64x432xbf16>
    %cst = arith.constant dense<0.000000e+00> : vector<64x128xf32>
    %60 = tpu.matmul %59, %0, %cst {dimension_numbers = #tpu.dot_dimension_numbers<[1], [0], [0], [1], [0, 0, 1, 1], [], []>} : vector<64x432xbf16>, vector<432x128xbf16>, vector<64x128xf32> -> vector<64x128xf32>
    %61 = vector.broadcast %1 : vector<1x128xf32> to vector<64x128xf32>
    %62 = arith.addf %60, %61 : vector<64x128xf32>
    %c0_136 = arith.constant 0 : index
    %c0_137 = arith.constant 0 : index
    %c0_138 = arith.constant 0 : index
    %c0_139 = arith.constant 0 : index
    %63 = vector.load %arg7[%c0_136, %c0_137, %c0_138, %c0_139] : memref<1x1x64x128xf32, #tpu.memory_space<vmem>>, vector<1x1x64x128xf32>
    %64 = vector.shape_cast %63 : vector<1x1x64x128xf32> to vector<64x128xf32>
    %65 = vector.shape_cast %62 : vector<64x128xf32> to vector<1x1x64x128xf32>
    tpu.vector_store %arg7[%c0_136, %c0_137, %c0_138, %c0_139], %65 {strides = array<i32>} : memref<1x1x64x128xf32, #tpu.memory_space<vmem>>, vector<1x1x64x128xf32>,
    return
  }
  func.func @transform_0(%arg0: i32, %arg1: i32) -> (i32, i32, i32, i32, i32) {
    %c0_i32 = arith.constant 0 : i32
    %0 = arith.addi %arg1, %c0_i32 : i32
    %c0_i32_0 = arith.constant 0 : i32
    %c0_i32_1 = arith.constant 0 : i32
    %c0_i32_2 = arith.constant 0 : i32
    %c0_i32_3 = arith.constant 0 : i32
    return %arg0, %0, %c0_i32_0, %c0_i32_1, %c0_i32_2 : i32, i32, i32, i32, i32
  }
  func.func @transform_1(%arg0: i32, %arg1: i32) -> (i32, i32, i32, i32, i32) {
    %c1_i32 = arith.constant 1 : i32
    %0 = arith.addi %arg1, %c1_i32 : i32
    %c0_i32 = arith.constant 0 : i32
    %c0_i32_0 = arith.constant 0 : i32
    %c0_i32_1 = arith.constant 0 : i32
    %c0_i32_2 = arith.constant 0 : i32
    return %arg0, %0, %c0_i32, %c0_i32_0, %c0_i32_1 : i32, i32, i32, i32, i32
  }
  func.func @transform_2(%arg0: i32, %arg1: i32) -> (i32, i32, i32, i32, i32) {
    %c2_i32 = arith.constant 2 : i32
    %0 = arith.addi %arg1, %c2_i32 : i32
    %c0_i32 = arith.constant 0 : i32
    %c0_i32_0 = arith.constant 0 : i32
    %c0_i32_1 = arith.constant 0 : i32
    %c0_i32_2 = arith.constant 0 : i32
    return %arg0, %0, %c0_i32, %c0_i32_0, %c0_i32_1 : i32, i32, i32, i32, i32
  }
  func.func @transform_3(%arg0: i32, %arg1: i32) -> (i32, i32) {
    %c0_i32 = arith.constant 0 : i32
    %c0_i32_0 = arith.constant 0 : i32
    %c0_i32_1 = arith.constant 0 : i32
    return %c0_i32, %c0_i32_0 : i32, i32
  }
  func.func @transform_4(%arg0: i32, %arg1: i32) -> (i32, i32) {
    %c0_i32 = arith.constant 0 : i32
    %c0_i32_0 = arith.constant 0 : i32
    %c0_i32_1 = arith.constant 0 : i32
    return %c0_i32, %c0_i32_0 : i32, i32
  }
  func.func @transform_5(%arg0: i32, %arg1: i32) -> (i32, i32, i32, i32) {
    %c0_i32 = arith.constant 0 : i32
    %c0_i32_0 = arith.constant 0 : i32
    %c0_i32_1 = arith.constant 0 : i32
    return %arg0, %arg1, %c0_i32, %c0_i32_0 : i32, i32, i32, i32
  }
}

</mosaic_0001>

<llo_original>
// kernel: convd_forward.3
$region0: #{convd_forward.3}
  #allocation0 [shape = 'u32[]', space=smem, size = 0x4, offset = 0x4, fixed_abs, tag = 'smem constant byte address 0x4 - core index']
  #allocation1 [shape = 'u32[144,128]{1,0:T(1,128)}', space=vmem, size = 0x12000, scoped, tag = 'internal scratch']
  %s0 = inlined_call_operand.vmem [shape: bf16[2,10,10,10,4], index: 0, kind: input, shape index: {}, may-alias: {0,1,2}]
  %s1 = inlined_call_operand.vmem [shape: bf16[2,10,10,10,4], index: 1, kind: input, shape index: {}, may-alias: {0,1,2}]
  %s2 = inlined_call_operand.vmem [shape: bf16[2,10,10,10,4], index: 2, kind: input, shape index: {}, may-alias: {0,1,2}]
  %s3 = inlined_call_operand.vmem [shape: bf16[108,128], index: 3, kind: input, shape index: {}]
  %s4 = inlined_call_operand.vmem [shape: f32[1,128], index: 4, kind: input, shape index: {}]
  %s5 = inlined_call_operand.vmem [shape: f32[2,8,64,128], index: 5, kind: output, shape index: {}]
  %s6 = sld [smem:[#allocation0]]
  $region53: #{convd_forward.3} parent=0
    _
  %s8 = ssub.s32 1, %s6
  %s9 = scalar_select 0, %s8, %s6
  loop: start=0, step=1, limit=18
  $region2: #{convd_forward.3} parent=0 // loop_pre_header
    _
  $region3: #{convd_forward.3} parent=0 // loop_header
    %s11 = sphi 0, %s15
    %p12 = scmp.ge.s32.totalorder %s11, 18
    %s18 = sphi 0, %s30
    %s19 = sphi 0, %s26
    %s20 = sphi 0, %s18
    %s21 = sphi 0, %s19
    %s22 = sphi 0, %s20
    %s23 = sphi 0, %s21
    %s35 = sphi 0, %s37
    %s38 = sphi 0, %s35
    %s39 = sphi 0, %s38
    %s55 = sphi 0, %s39
    %s65 = sphi 0, %s67
    %s68 = sphi 0, %s65
    %s69 = sphi 0, %s68
    %s85 = sphi 0, %s69
    %s95 = sphi 0, %s97
    %s98 = sphi 0, %s95
    %s99 = sphi 0, %s98
    %s115 = sphi 0, %s99
    %s119 = sphi 0, %s119
    %s121 = sphi 0, %s119
    %s122 = sphi 0, %s121
    %s136 = sphi 0, %s122
    %s140 = sphi 0, %s140
    %s142 = sphi 0, %s140
    %s143 = sphi 0, %s142
    %s157 = sphi 0, %s143
    %s165 = sphi 0, %s167
    %s168 = sphi 0, %s165
    %s169 = sphi 0, %s168
    %s185 = sphi 0, %s169
  $region4: #{convd_forward.3} parent=0 // loop_header_branch
    %14 = sbr.rel (%p12) target = $region8
  $region5: #{convd_forward.3} parent=0 // loop_body
    %s16 = ssub.s32 %s11, 1
    %s17 = ssub.s32 %s11, 2
    %s24 = sadd.s32 1, %s19
    %p25 = scmp.ge.s32.totalorder %s24, 8
    %s26 = scalar_select %p25, 0, %s24
    %s27 = sadd.s32 1, %s18
    %s28 = scalar_select %p25, %s27, %s18
    %p29 = scmp.ge.s32.totalorder %s28, 2
    %s30 = scalar_select %p29, 0, %s28
    %s31 = ssub.s32 %s18, %s30
    %s32 = ssub.s32 %s19, %s26
    %s33 = sor.u32 %s31, %s32
    %p34 = scmp.eq.s32.totalorder %s33, 0
    %s36 = sadd.s32 %s35, 1
    %s37 = scalar_select %p34, %s35, %s36
    %p40 = pneg %p34
    %p41 = scmp.eq.s32.totalorder %s11, 15
    %p42 = por %p40, %p41
    %p43 = scmp.ne.s32.totalorder %s35, %s38
    %p44 = scmp.eq.s32.totalorder %s11, 0
    %p45 = por %p43, %p44
    %p46 = scmp.ne.s32.totalorder %s35, %s38
    %p47 = scmp.eq.s32.totalorder %s16, 15
    %p48 = por %p46, %p47
    %p49 = scmp.ne.s32.totalorder %s38, %s39
    %p50 = scmp.eq.s32.totalorder %s16, 0
    %p51 = por %p49, %p50
    %p52 = scmp.ne.s32.totalorder %s38, %s39
    %p53 = scmp.eq.s32.totalorder %s17, 15
    %p54 = por %p52, %p53
    %p56 = scmp.ne.s32.totalorder %s39, %s55
    %p57 = scmp.eq.s32.totalorder %s17, 0
    %p58 = por %p56, %p57
    %s59 = sadd.s32 %s19, 1
    %s60 = sadd.s32 %s26, 1
    %s61 = ssub.s32 %s18, %s30
    %s62 = ssub.s32 %s59, %s60
    %s63 = sor.u32 %s61, %s62
    %p64 = scmp.eq.s32.totalorder %s63, 0
    %s66 = sadd.s32 %s65, 1
    %s67 = scalar_select %p64, %s65, %s66
    %p70 = pneg %p64
    %p71 = scmp.eq.s32.totalorder %s11, 15
    %p72 = por %p70, %p71
    %p73 = scmp.ne.s32.totalorder %s65, %s68
    %p74 = scmp.eq.s32.totalorder %s11, 0
    %p75 = por %p73, %p74
    %p76 = scmp.ne.s32.totalorder %s65, %s68
    %p77 = scmp.eq.s32.totalorder %s16, 15
    %p78 = por %p76, %p77
    %p79 = scmp.ne.s32.totalorder %s68, %s69
    %p80 = scmp.eq.s32.totalorder %s16, 0
    %p81 = por %p79, %p80
    %p82 = scmp.ne.s32.totalorder %s68, %s69
    %p83 = scmp.eq.s32.totalorder %s17, 15
    %p84 = por %p82, %p83
    %p86 = scmp.ne.s32.totalorder %s69, %s85
    %p87 = scmp.eq.s32.totalorder %s17, 0
    %p88 = por %p86, %p87
    %s89 = sadd.s32 %s19, 2
    %s90 = sadd.s32 %s26, 2
    %s91 = ssub.s32 %s18, %s30
    %s92 = ssub.s32 %s89, %s90
    %s93 = sor.u32 %s91, %s92
    %p94 = scmp.eq.s32.totalorder %s93, 0
    %s96 = sadd.s32 %s95, 1
    %s97 = scalar_select %p94, %s95, %s96
    %p100 = pneg %p94
    %p101 = scmp.eq.s32.totalorder %s11, 15
    %p102 = por %p100, %p101
    %p103 = scmp.ne.s32.totalorder %s95, %s98
    %p104 = scmp.eq.s32.totalorder %s11, 0
    %p105 = por %p103, %p104
    %p106 = scmp.ne.s32.totalorder %s95, %s98
    %p107 = scmp.eq.s32.totalorder %s16, 15
    %p108 = por %p106, %p107
    %p109 = scmp.ne.s32.totalorder %s98, %s99
    %p110 = scmp.eq.s32.totalorder %s16, 0
    %p111 = por %p109, %p110
    %p112 = scmp.ne.s32.totalorder %s98, %s99
    %p113 = scmp.eq.s32.totalorder %s17, 15
    %p114 = por %p112, %p113
    %p116 = scmp.ne.s32.totalorder %s99, %s115
    %p117 = scmp.eq.s32.totalorder %s17, 0
    %p118 = por %p116, %p117
    %s120 = sadd.s32 %s119, 1
    %p123 = scmp.eq.s32.totalorder %s11, 15
    %p124 = scmp.ne.s32.totalorder %s119, %s121
    %p125 = scmp.eq.s32.totalorder %s11, 0
    %p126 = por %p124, %p125
    %p127 = scmp.ne.s32.totalorder %s119, %s121
    %p128 = scmp.eq.s32.totalorder %s16, 15
    %p129 = por %p127, %p128
    %p130 = scmp.ne.s32.totalorder %s121, %s122
    %p131 = scmp.eq.s32.totalorder %s16, 0
    %p132 = por %p130, %p131
    %p133 = scmp.ne.s32.totalorder %s121, %s122
    %p134 = scmp.eq.s32.totalorder %s17, 15
    %p135 = por %p133, %p134
    %p137 = scmp.ne.s32.totalorder %s122, %s136
    %p138 = scmp.eq.s32.totalorder %s17, 0
    %p139 = por %p137, %p138
    %s141 = sadd.s32 %s140, 1
    %p144 = scmp.eq.s32.totalorder %s11, 15
    %p145 = scmp.ne.s32.totalorder %s140, %s142
    %p146 = scmp.eq.s32.totalorder %s11, 0
    %p147 = por %p145, %p146
    %p148 = scmp.ne.s32.totalorder %s140, %s142
    %p149 = scmp.eq.s32.totalorder %s16, 15
    %p150 = por %p148, %p149
    %p151 = scmp.ne.s32.totalorder %s142, %s143
    %p152 = scmp.eq.s32.totalorder %s16, 0
    %p153 = por %p151, %p152
    %p154 = scmp.ne.s32.totalorder %s142, %s143
    %p155 = scmp.eq.s32.totalorder %s17, 15
    %p156 = por %p154, %p155
    %p158 = scmp.ne.s32.totalorder %s143, %s157
    %p159 = scmp.eq.s32.totalorder %s17, 0
    %p160 = por %p158, %p159
    %s161 = ssub.s32 %s18, %s30
    %s162 = ssub.s32 %s19, %s26
    %s163 = sor.u32 %s161, %s162
    %p164 = scmp.eq.s32.totalorder %s163, 0
    %s166 = sadd.s32 %s165, 1
    %s167 = scalar_select %p164, %s165, %s166
    %p170 = pneg %p164
    %p171 = scmp.eq.s32.totalorder %s11, 15
    %p172 = por %p170, %p171
    %p173 = scmp.ne.s32.totalorder %s165, %s168
    %p174 = scmp.eq.s32.totalorder %s11, 0
    %p175 = por %p173, %p174
    %p176 = scmp.ne.s32.totalorder %s165, %s168
    %p177 = scmp.eq.s32.totalorder %s16, 15
    %p178 = por %p176, %p177
    %p179 = scmp.ne.s32.totalorder %s168, %s169
    %p180 = scmp.eq.s32.totalorder %s16, 0
    %p181 = por %p179, %p180
    %p182 = scmp.ne.s32.totalorder %s168, %s169
    %p183 = scmp.eq.s32.totalorder %s17, 15
    %p184 = por %p182, %p183
    %p186 = scmp.ne.s32.totalorder %s169, %s185
    %p187 = scmp.eq.s32.totalorder %s17, 0
    %p188 = por %p186, %p187
    %p189 = scmp.le.s32.totalorder 1, %s11
    %p190 = scmp.lt.s32.totalorder %s11, 17
    %p191 = pnand %p189, %p190
    %p192 = pneg %p191
    // Predicated region
    $region9: #{convd_forward.3} parent=5 // pred_check
      _
    $region10: #{convd_forward.3} parent=5 // pred_check_branch
      %194 = sbr.rel (%p191) target = $region12
    $region11: #{convd_forward.3} parent=5 // pred_region
      %s195 = ssub.s32 %s11, 1
      // Predicated region
      $region13: #{convd_forward.3} parent=11 // pred_check
        %p196 = pneg %p132
      $region14: #{convd_forward.3} parent=11 // pred_check_branch
        %198 = sbr.rel (%p196) target = $region16
      $region15: #{convd_forward.3} parent=11 // pred_region
        _
      $region16: #{convd_forward.3} parent=11 // pred_fallthru
        _
      // Predicated region
      $region17: #{convd_forward.3} parent=11 // pred_check
        %p199 = pneg %p153
      $region18: #{convd_forward.3} parent=11 // pred_check_branch
        %201 = sbr.rel (%p199) target = $region20
      $region19: #{convd_forward.3} parent=11 // pred_region
        _
      $region20: #{convd_forward.3} parent=11 // pred_fallthru
        _
    $region12: #{convd_forward.3} parent=5 // pred_fallthru
      _
    %p202 = scmp.lt.s32.totalorder %s11, 16
    // Predicated region
    $region21: #{convd_forward.3} parent=5 // pred_check
      %p203 = pneg %p202
    $region22: #{convd_forward.3} parent=5 // pred_check_branch
      %205 = sbr.rel (%p203) target = $region24
    $region23: #{convd_forward.3} parent=5 // pred_region
      // Predicated region
      $region25: #{convd_forward.3} parent=23 // pred_check
        %p206 = pneg %p45
      $region26: #{convd_forward.3} parent=23 // pred_check_branch
        %208 = sbr.rel (%p206) target = $region28
      $region27: #{convd_forward.3} parent=23 // pred_region
        %p209 = scmp.lt.s32.totalorder %s18, 1
        %s210 = scalar_select %p209, %s18, 1
        %p211 = scmp.lt.s32.totalorder %s19, 9
        %s212 = scalar_select %p211, %s19, 9
        %s213 = smul.addr %s212, 20
        %s214 = smul.addr %s210, 200
        %s215 = sadd.s32 %s213, %s214
        %s216 = smul.addr %s215, 4
        %s217 = scalar_lea.vmem %s0, %s216
      $region28: #{convd_forward.3} parent=23 // pred_fallthru
        _
      // Predicated region
      $region29: #{convd_forward.3} parent=23 // pred_check
        %p218 = pneg %p75
      $region30: #{convd_forward.3} parent=23 // pred_check_branch
        %220 = sbr.rel (%p218) target = $region32
      $region31: #{convd_forward.3} parent=23 // pred_region
        %s221 = sadd.s32 %s19, 1
        %p222 = scmp.lt.s32.totalorder %s18, 1
        %s223 = scalar_select %p222, %s18, 1
        %p224 = scmp.lt.s32.totalorder %s221, 9
        %s225 = scalar_select %p224, %s221, 9
        %s226 = smul.addr %s225, 20
        %s227 = smul.addr %s223, 200
        %s228 = sadd.s32 %s226, %s227
        %s229 = smul.addr %s228, 4
        %s230 = scalar_lea.vmem %s1, %s229
        %s231 = sadd.s32 %s19, 1
      $region32: #{convd_forward.3} parent=23 // pred_fallthru
        _
      // Predicated region
      $region33: #{convd_forward.3} parent=23 // pred_check
        %p232 = pneg %p105
      $region34: #{convd_forward.3} parent=23 // pred_check_branch
        %234 = sbr.rel (%p232) target = $region36
      $region35: #{convd_forward.3} parent=23 // pred_region
        %s235 = sadd.s32 %s19, 2
        %p236 = scmp.lt.s32.totalorder %s18, 1
        %s237 = scalar_select %p236, %s18, 1
        %p238 = scmp.lt.s32.totalorder %s235, 9
        %s239 = scalar_select %p238, %s235, 9
        %s240 = smul.addr %s239, 20
        %s241 = smul.addr %s237, 200
        %s242 = sadd.s32 %s240, %s241
        %s243 = smul.addr %s242, 4
        %s244 = scalar_lea.vmem %s2, %s243
        %s245 = sadd.s32 %s19, 2
      $region36: #{convd_forward.3} parent=23 // pred_fallthru
        _
    $region24: #{convd_forward.3} parent=5 // pred_fallthru
      _
    %p246 = scmp.le.s32.totalorder 1, %s11
    %p247 = scmp.lt.s32.totalorder %s11, 17
    %p248 = pnand %p246, %p247
    %p249 = pneg %p248
    // Predicated region
    $region37: #{convd_forward.3} parent=5 // pred_check
      _
    $region38: #{convd_forward.3} parent=5 // pred_check_branch
      %251 = sbr.rel (%p248) target = $region40
    $region39: #{convd_forward.3} parent=5 // pred_region
      %s252 = ssub.s32 %s11, 1
      %p253 = scmp.lt.s32.totalorder %s20, 1
      %s254 = scalar_select %p253, %s20, 1
      %p255 = scmp.lt.s32.totalorder %s21, 9
      %s256 = scalar_select %p255, %s21, 9
      %s257 = smul.addr %s256, 20
      %s258 = smul.addr %s254, 200
      %s259 = sadd.s32 %s257, %s258
      %s260 = smul.addr %s259, 4
      %s261 = scalar_lea.vmem %s0, %s260
      %p262 = pneg %p51
      %p263 = pneg %p48
      %s264 = sadd.s32 %s21, 1
      %p265 = scmp.lt.s32.totalorder %s20, 1
      %s266 = scalar_select %p265, %s20, 1
      %p267 = scmp.lt.s32.totalorder %s264, 9
      %s268 = scalar_select %p267, %s264, 9
      %s269 = smul.addr %s268, 20
      %s270 = smul.addr %s266, 200
      %s271 = sadd.s32 %s269, %s270
      %s272 = smul.addr %s271, 4
      %s273 = scalar_lea.vmem %s1, %s272
      %p274 = pneg %p81
      %p275 = pneg %p78
      %s276 = sadd.s32 %s21, 2
      %p277 = scmp.lt.s32.totalorder %s20, 1
      %s278 = scalar_select %p277, %s20, 1
      %p279 = scmp.lt.s32.totalorder %s276, 9
      %s280 = scalar_select %p279, %s276, 9
      %s281 = smul.addr %s280, 20
      %s282 = smul.addr %s278, 200
      %s283 = sadd.s32 %s281, %s282
      %s284 = smul.addr %s283, 4
      %s285 = scalar_lea.vmem %s2, %s284
      %p286 = pneg %p111
      %p287 = pneg %p108
      %p288 = pneg %p132
      %p289 = pneg %p129
      %p290 = pneg %p153
      %p291 = pneg %p150
      %p292 = pneg %p181
      %p293 = pneg %p178
      %p294 = scmp.lt.s32.totalorder %s20, 1
      %s295 = scalar_select %p294, %s20, 1
      %p296 = scmp.lt.s32.totalorder %s21, 7
      %s297 = scalar_select %p296, %s21, 7
      %s298 = smul.addr %s297, 8
      %s299 = smul.addr %s295, 64
      %s300 = sadd.s32 %s298, %s299
      %s301 = smul.addr %s300, 8
      %s302 = scalar_lea.vmem %s5, %s301
      %p303 = scmp.lt.s32.totalorder %s20, 1
      %s304 = scalar_select %p303, %s20, 1
      %p305 = scmp.lt.s32.totalorder %s21, 9
      %s306 = scalar_select %p305, %s21, 9
      %s307 = smul.addr %s306, 20
      %s308 = smul.addr %s304, 200
      %s309 = sadd.s32 %s307, %s308
      %s310 = smul.addr %s309, 4
      %s311 = scalar_lea.vmem %s0, %s310
      %s312 = sadd.s32 %s21, 1
      %p313 = scmp.lt.s32.totalorder %s20, 1
      %s314 = scalar_select %p313, %s20, 1
      %p315 = scmp.lt.s32.totalorder %s312, 9
      %s316 = scalar_select %p315, %s312, 9
      %s317 = smul.addr %s316, 20
      %s318 = smul.addr %s314, 200
      %s319 = sadd.s32 %s317, %s318
      %s320 = smul.addr %s319, 4
      %s321 = scalar_lea.vmem %s1, %s320
      %s322 = sadd.s32 %s21, 1
      %s323 = sadd.s32 %s21, 2
      %p324 = scmp.lt.s32.totalorder %s20, 1
      %s325 = scalar_select %p324, %s20, 1
      %p326 = scmp.lt.s32.totalorder %s323, 9
      %s327 = scalar_select %p326, %s323, 9
      %s328 = smul.addr %s327, 20
      %s329 = smul.addr %s325, 200
      %s330 = sadd.s32 %s328, %s329
      %s331 = smul.addr %s330, 4
      %s332 = scalar_lea.vmem %s2, %s331
      %s333 = sadd.s32 %s21, 2
      %p334 = scmp.lt.s32.totalorder %s20, 1
      %s335 = scalar_select %p334, %s20, 1
      %p336 = scmp.lt.s32.totalorder %s21, 7
      %s337 = scalar_select %p336, %s21, 7
      %s338 = smul.addr %s337, 8
      %s339 = smul.addr %s335, 64
      %s340 = sadd.s32 %s338, %s339
      %s341 = smul.addr %s340, 8
      %s342 = scalar_lea.vmem %s5, %s341
      %v344 = vld [vmem:[%s3] sm:$0xf]
      %v345 = vld [vmem:[%s3 + $0x4] sm:$0xf]
      %v346 = vld [vmem:[%s3 + $0x8] sm:$0xf]
      %v347 = vld [vmem:[%s3 + $0xc] sm:$0xf]
      %v348 = vld [vmem:[%s3 + $0x10] sm:$0xf]
      %v349 = vld [vmem:[%s3 + $0x14] sm:$0xf]
      %v350 = vld [vmem:[%s3 + $0x18] sm:$0xf]
      %v351 = vld [vmem:[%s3 + $0x1c] sm:$0xf]
      %v352 = vld [vmem:[%s3 + $0x20] sm:$0xf]
      %v353 = vld [vmem:[%s3 + $0x24] sm:$0xf]
      %v354 = vld [vmem:[%s3 + $0x28] sm:$0xf]
      %v355 = vld [vmem:[%s3 + $0x2c] sm:$0xf]
      %v356 = vld [vmem:[%s3 + $0x30] sm:$0xf]
      %v357 = vld [vmem:[%s3 + $0x34] sm:$0x3]
      %v358 = vld [vmem:[%s4] sm:$0x1]
      %v359 = vld [vmem:[%s311] sm:$0xf]
      %v360 = vld [vmem:[%s311 + $0x8] sm:$0xf]
      %v361 = vld [vmem:[%s311 + $0x10] sm:$0xf]
      %v362 = vld [vmem:[%s311 + $0x18] sm:$0xf]
      %v363 = vld [vmem:[%s311 + $0x20] sm:$0xf]
      %v364 = vld [vmem:[%s311 + $0x28] sm:$0xf]
      %v365 = vld [vmem:[%s311 + $0x30] sm:$0xf]
      %v366 = vld [vmem:[%s311 + $0x38] sm:$0xf]
      %v367 = vld [vmem:[%s311 + $0x4] sm:$0x1]
      %v368 = vld [vmem:[%s311 + $0xc] sm:$0x1]
      %v369 = vld [vmem:[%s311 + $0x14] sm:$0x1]
      %v370 = vld [vmem:[%s311 + $0x1c] sm:$0x1]
      %v371 = vld [vmem:[%s311 + $0x24] sm:$0x1]
      %v372 = vld [vmem:[%s311 + $0x2c] sm:$0x1]
      %v373 = vld [vmem:[%s311 + $0x34] sm:$0x1]
      %v374 = vld [vmem:[%s311 + $0x3c] sm:$0x1]
      %v375 = vld [vmem:[%s311] sm:$0xe]
      %v376 = vld [vmem:[%s311 + $0x8] sm:$0xe]
      %v377 = vld [vmem:[%s311 + $0x10] sm:$0xe]
      %v378 = vld [vmem:[%s311 + $0x18] sm:$0xe]
      %v379 = vld [vmem:[%s311 + $0x20] sm:$0xe]
      %v380 = vld [vmem:[%s311 + $0x28] sm:$0xe]
      %v381 = vld [vmem:[%s311 + $0x30] sm:$0xe]
      %v382 = vld [vmem:[%s311 + $0x38] sm:$0xe]
      %s383 = scalar_lea.vmem %s311, 8
      %v384 = vld [vmem:[%s383] sm:$0xf]
      %v385 = vld [vmem:[%s383 + $0x8] sm:$0xf]
      %v386 = vld [vmem:[%s383 + $0x10] sm:$0xf]
      %v387 = vld [vmem:[%s383 + $0x18] sm:$0xf]
      %v388 = vld [vmem:[%s383 + $0x20] sm:$0xf]
      %v389 = vld [vmem:[%s383 + $0x28] sm:$0xf]
      %v390 = vld [vmem:[%s383 + $0x30] sm:$0xf]
      %v391 = vld [vmem:[%s383 + $0x38] sm:$0xf]
      %v392 = vld [vmem:[%s383 + $0x4] sm:$0x1]
      %v393 = vld [vmem:[%s383 + $0xc] sm:$0x1]
      %v394 = vld [vmem:[%s383 + $0x14] sm:$0x1]
      %v395 = vld [vmem:[%s383 + $0x1c] sm:$0x1]
      %v396 = vld [vmem:[%s383 + $0x24] sm:$0x1]
      %v397 = vld [vmem:[%s383 + $0x2c] sm:$0x1]
      %v398 = vld [vmem:[%s383 + $0x34] sm:$0x1]
      %v399 = vld [vmem:[%s383 + $0x3c] sm:$0x1]
      %v400 = vld [vmem:[%s383] sm:$0xe]
      %v401 = vld [vmem:[%s383 + $0x8] sm:$0xe]
      %v402 = vld [vmem:[%s383 + $0x10] sm:$0xe]
      %v403 = vld [vmem:[%s383 + $0x18] sm:$0xe]
      %v404 = vld [vmem:[%s383 + $0x20] sm:$0xe]
      %v405 = vld [vmem:[%s383 + $0x28] sm:$0xe]
      %v406 = vld [vmem:[%s383 + $0x30] sm:$0xe]
      %v407 = vld [vmem:[%s383 + $0x38] sm:$0xe]
      %s408 = scalar_lea.vmem %s311, 16
      %v409 = vld [vmem:[%s408] sm:$0xf]
      %v410 = vld [vmem:[%s408 + $0x8] sm:$0xf]
      %v411 = vld [vmem:[%s408 + $0x10] sm:$0xf]
      %v412 = vld [vmem:[%s408 + $0x18] sm:$0xf]
      %v413 = vld [vmem:[%s408 + $0x20] sm:$0xf]
      %v414 = vld [vmem:[%s408 + $0x28] sm:$0xf]
      %v415 = vld [vmem:[%s408 + $0x30] sm:$0xf]
      %v416 = vld [vmem:[%s408 + $0x38] sm:$0xf]
      %v417 = vld [vmem:[%s408 + $0x4] sm:$0x1]
      %v418 = vld [vmem:[%s408 + $0xc] sm:$0x1]
      %v419 = vld [vmem:[%s408 + $0x14] sm:$0x1]
      %v420 = vld [vmem:[%s408 + $0x1c] sm:$0x1]
      %v421 = vld [vmem:[%s408 + $0x24] sm:$0x1]
      %v422 = vld [vmem:[%s408 + $0x2c] sm:$0x1]
      %v423 = vld [vmem:[%s408 + $0x34] sm:$0x1]
      %v424 = vld [vmem:[%s408 + $0x3c] sm:$0x1]
      %v425 = vld [vmem:[%s408] sm:$0xe]
      %v426 = vld [vmem:[%s408 + $0x8] sm:$0xe]
      %v427 = vld [vmem:[%s408 + $0x10] sm:$0xe]
      %v428 = vld [vmem:[%s408 + $0x18] sm:$0xe]
      %v429 = vld [vmem:[%s408 + $0x20] sm:$0xe]
      %v430 = vld [vmem:[%s408 + $0x28] sm:$0xe]
      %v431 = vld [vmem:[%s408 + $0x30] sm:$0xe]
      %v432 = vld [vmem:[%s408 + $0x38] sm:$0xe]
      %v433 = vld [vmem:[%s321] sm:$0xf]
      %v434 = vld [vmem:[%s321 + $0x8] sm:$0xf]
      %v435 = vld [vmem:[%s321 + $0x10] sm:$0xf]
      %v436 = vld [vmem:[%s321 + $0x18] sm:$0xf]
      %v437 = vld [vmem:[%s321 + $0x20] sm:$0xf]
      %v438 = vld [vmem:[%s321 + $0x28] sm:$0xf]
      %v439 = vld [vmem:[%s321 + $0x30] sm:$0xf]
      %v440 = vld [vmem:[%s321 + $0x38] sm:$0xf]
      %v441 = vld [vmem:[%s321 + $0x4] sm:$0x1]
      %v442 = vld [vmem:[%s321 + $0xc] sm:$0x1]
      %v443 = vld [vmem:[%s321 + $0x14] sm:$0x1]
      %v444 = vld [vmem:[%s321 + $0x1c] sm:$0x1]
      %v445 = vld [vmem:[%s321 + $0x24] sm:$0x1]
      %v446 = vld [vmem:[%s321 + $0x2c] sm:$0x1]
      %v447 = vld [vmem:[%s321 + $0x34] sm:$0x1]
      %v448 = vld [vmem:[%s321 + $0x3c] sm:$0x1]
      %v449 = vld [vmem:[%s321] sm:$0xe]
      %v450 = vld [vmem:[%s321 + $0x8] sm:$0xe]
      %v451 = vld [vmem:[%s321 + $0x10] sm:$0xe]
      %v452 = vld [vmem:[%s321 + $0x18] sm:$0xe]
      %v453 = vld [vmem:[%s321 + $0x20] sm:$0xe]
      %v454 = vld [vmem:[%s321 + $0x28] sm:$0xe]
      %v455 = vld [vmem:[%s321 + $0x30] sm:$0xe]
      %v456 = vld [vmem:[%s321 + $0x38] sm:$0xe]
      %s457 = scalar_lea.vmem %s321, 8
      %v458 = vld [vmem:[%s457] sm:$0xf]
      %v459 = vld [vmem:[%s457 + $0x8] sm:$0xf]
      %v460 = vld [vmem:[%s457 + $0x10] sm:$0xf]
      %v461 = vld [vmem:[%s457 + $0x18] sm:$0xf]
      %v462 = vld [vmem:[%s457 + $0x20] sm:$0xf]
      %v463 = vld [vmem:[%s457 + $0x28] sm:$0xf]
      %v464 = vld [vmem:[%s457 + $0x30] sm:$0xf]
      %v465 = vld [vmem:[%s457 + $0x38] sm:$0xf]
      %v466 = vld [vmem:[%s457 + $0x4] sm:$0x1]
      %v467 = vld [vmem:[%s457 + $0xc] sm:$0x1]
      %v468 = vld [vmem:[%s457 + $0x14] sm:$0x1]
      %v469 = vld [vmem:[%s457 + $0x1c] sm:$0x1]
      %v470 = vld [vmem:[%s457 + $0x24] sm:$0x1]
      %v471 = vld [vmem:[%s457 + $0x2c] sm:$0x1]
      %v472 = vld [vmem:[%s457 + $0x34] sm:$0x1]
      %v473 = vld [vmem:[%s457 + $0x3c] sm:$0x1]
      %v474 = vld [vmem:[%s457] sm:$0xe]
      %v475 = vld [vmem:[%s457 + $0x8] sm:$0xe]
      %v476 = vld [vmem:[%s457 + $0x10] sm:$0xe]
      %v477 = vld [vmem:[%s457 + $0x18] sm:$0xe]
      %v478 = vld [vmem:[%s457 + $0x20] sm:$0xe]
      %v479 = vld [vmem:[%s457 + $0x28] sm:$0xe]
      %v480 = vld [vmem:[%s457 + $0x30] sm:$0xe]
      %v481 = vld [vmem:[%s457 + $0x38] sm:$0xe]
      %s482 = scalar_lea.vmem %s321, 16
      %v483 = vld [vmem:[%s482] sm:$0xf]
      %v484 = vld [vmem:[%s482 + $0x8] sm:$0xf]
      %v485 = vld [vmem:[%s482 + $0x10] sm:$0xf]
      %v486 = vld [vmem:[%s482 + $0x18] sm:$0xf]
      %v487 = vld [vmem:[%s482 + $0x20] sm:$0xf]
      %v488 = vld [vmem:[%s482 + $0x28] sm:$0xf]
      %v489 = vld [vmem:[%s482 + $0x30] sm:$0xf]
      %v490 = vld [vmem:[%s482 + $0x38] sm:$0xf]
      %v491 = vld [vmem:[%s482 + $0x4] sm:$0x1]
      %v492 = vld [vmem:[%s482 + $0xc] sm:$0x1]
      %v493 = vld [vmem:[%s482 + $0x14] sm:$0x1]
      %v494 = vld [vmem:[%s482 + $0x1c] sm:$0x1]
      %v495 = vld [vmem:[%s482 + $0x24] sm:$0x1]
      %v496 = vld [vmem:[%s482 + $0x2c] sm:$0x1]
      %v497 = vld [vmem:[%s482 + $0x34] sm:$0x1]
      %v498 = vld [vmem:[%s482 + $0x3c] sm:$0x1]
      %v499 = vld [vmem:[%s482] sm:$0xe]
      %v500 = vld [vmem:[%s482 + $0x8] sm:$0xe]
      %v501 = vld [vmem:[%s482 + $0x10] sm:$0xe]
      %v502 = vld [vmem:[%s482 + $0x18] sm:$0xe]
      %v503 = vld [vmem:[%s482 + $0x20] sm:$0xe]
      %v504 = vld [vmem:[%s482 + $0x28] sm:$0xe]
      %v505 = vld [vmem:[%s482 + $0x30] sm:$0xe]
      %v506 = vld [vmem:[%s482 + $0x38] sm:$0xe]
      %v507 = vld [vmem:[%s332] sm:$0xf]
      %v508 = vld [vmem:[%s332 + $0x8] sm:$0xf]
      %v509 = vld [vmem:[%s332 + $0x10] sm:$0xf]
      %v510 = vld [vmem:[%s332 + $0x18] sm:$0xf]
      %v511 = vld [vmem:[%s332 + $0x20] sm:$0xf]
      %v512 = vld [vmem:[%s332 + $0x28] sm:$0xf]
      %v513 = vld [vmem:[%s332 + $0x30] sm:$0xf]
      %v514 = vld [vmem:[%s332 + $0x38] sm:$0xf]
      %v515 = vld [vmem:[%s332 + $0x4] sm:$0x1]
      %v516 = vld [vmem:[%s332 + $0xc] sm:$0x1]
      %v517 = vld [vmem:[%s332 + $0x14] sm:$0x1]
      %v518 = vld [vmem:[%s332 + $0x1c] sm:$0x1]
      %v519 = vld [vmem:[%s332 + $0x24] sm:$0x1]
      %v520 = vld [vmem:[%s332 + $0x2c] sm:$0x1]
      %v521 = vld [vmem:[%s332 + $0x34] sm:$0x1]
      %v522 = vld [vmem:[%s332 + $0x3c] sm:$0x1]
      %v523 = vld [vmem:[%s332] sm:$0xe]
      %v524 = vld [vmem:[%s332 + $0x8] sm:$0xe]
      %v525 = vld [vmem:[%s332 + $0x10] sm:$0xe]
      %v526 = vld [vmem:[%s332 + $0x18] sm:$0xe]
      %v527 = vld [vmem:[%s332 + $0x20] sm:$0xe]
      %v528 = vld [vmem:[%s332 + $0x28] sm:$0xe]
      %v529 = vld [vmem:[%s332 + $0x30] sm:$0xe]
      %v530 = vld [vmem:[%s332 + $0x38] sm:$0xe]
      %s531 = scalar_lea.vmem %s332, 8
      %v532 = vld [vmem:[%s531] sm:$0xf]
      %v533 = vld [vmem:[%s531 + $0x8] sm:$0xf]
      %v534 = vld [vmem:[%s531 + $0x10] sm:$0xf]
      %v535 = vld [vmem:[%s531 + $0x18] sm:$0xf]
      %v536 = vld [vmem:[%s531 + $0x20] sm:$0xf]
      %v537 = vld [vmem:[%s531 + $0x28] sm:$0xf]
      %v538 = vld [vmem:[%s531 + $0x30] sm:$0xf]
      %v539 = vld [vmem:[%s531 + $0x38] sm:$0xf]
      %v540 = vld [vmem:[%s531 + $0x4] sm:$0x1]
      %v541 = vld [vmem:[%s531 + $0xc] sm:$0x1]
      %v542 = vld [vmem:[%s531 + $0x14] sm:$0x1]
      %v543 = vld [vmem:[%s531 + $0x1c] sm:$0x1]
      %v544 = vld [vmem:[%s531 + $0x24] sm:$0x1]
      %v545 = vld [vmem:[%s531 + $0x2c] sm:$0x1]
      %v546 = vld [vmem:[%s531 + $0x34] sm:$0x1]
      %v547 = vld [vmem:[%s531 + $0x3c] sm:$0x1]
      %v548 = vld [vmem:[%s531] sm:$0xe]
      %v549 = vld [vmem:[%s531 + $0x8] sm:$0xe]
      %v550 = vld [vmem:[%s531 + $0x10] sm:$0xe]
      %v551 = vld [vmem:[%s531 + $0x18] sm:$0xe]
      %v552 = vld [vmem:[%s531 + $0x20] sm:$0xe]
      %v553 = vld [vmem:[%s531 + $0x28] sm:$0xe]
      %v554 = vld [vmem:[%s531 + $0x30] sm:$0xe]
      %v555 = vld [vmem:[%s531 + $0x38] sm:$0xe]
      %s556 = scalar_lea.vmem %s332, 16
      %v557 = vld [vmem:[%s556] sm:$0xf]
      %v558 = vld [vmem:[%s556 + $0x8] sm:$0xf]
      %v559 = vld [vmem:[%s556 + $0x10] sm:$0xf]
      %v560 = vld [vmem:[%s556 + $0x18] sm:$0xf]
      %v561 = vld [vmem:[%s556 + $0x20] sm:$0xf]
      %v562 = vld [vmem:[%s556 + $0x28] sm:$0xf]
      %v563 = vld [vmem:[%s556 + $0x30] sm:$0xf]
      %v564 = vld [vmem:[%s556 + $0x38] sm:$0xf]
      %v565 = vld [vmem:[%s556 + $0x4] sm:$0x1]
      %v566 = vld [vmem:[%s556 + $0xc] sm:$0x1]
      %v567 = vld [vmem:[%s556 + $0x14] sm:$0x1]
      %v568 = vld [vmem:[%s556 + $0x1c] sm:$0x1]
      %v569 = vld [vmem:[%s556 + $0x24] sm:$0x1]
      %v570 = vld [vmem:[%s556 + $0x2c] sm:$0x1]
      %v571 = vld [vmem:[%s556 + $0x34] sm:$0x1]
      %v572 = vld [vmem:[%s556 + $0x3c] sm:$0x1]
      %v573 = vld [vmem:[%s556] sm:$0xe]
      %v574 = vld [vmem:[%s556 + $0x8] sm:$0xe]
      %v575 = vld [vmem:[%s556 + $0x10] sm:$0xe]
      %v576 = vld [vmem:[%s556 + $0x18] sm:$0xe]
      %v577 = vld [vmem:[%s556 + $0x20] sm:$0xe]
      %v578 = vld [vmem:[%s556 + $0x28] sm:$0xe]
      %v579 = vld [vmem:[%s556 + $0x30] sm:$0xe]
      %v580 = vld [vmem:[%s556 + $0x38] sm:$0xe]
      %v597 = vunpack.c.l.b16 %v359
      %v598 = vunpack.c.l.b16 %v367
      %v599 = vunpack.c.l.b16 %v360
      %v600 = vunpack.c.l.b16 %v368
      %v601 = vunpack.c.l.b16 %v361
      %v602 = vunpack.c.l.b16 %v369
      %v603 = vunpack.c.l.b16 %v362
      %v604 = vunpack.c.l.b16 %v370
      %v605 = vunpack.c.l.b16 %v363
      %v606 = vunpack.c.l.b16 %v371
      %v607 = vunpack.c.l.b16 %v364
      %v608 = vunpack.c.l.b16 %v372
      %v609 = vunpack.c.l.b16 %v365
      %v610 = vunpack.c.l.b16 %v373
      %v611 = vunpack.c.l.b16 %v366
      %v612 = vunpack.c.l.b16 %v374
      %v613 = vpack.c.b16 %v598, %v597
      %v614 = vpack.c.b16 %v600, %v599
      %v615 = vpack.c.b16 %v602, %v601
      %v616 = vpack.c.b16 %v604, %v603
      %v617 = vpack.c.b16 %v606, %v605
      %v618 = vpack.c.b16 %v608, %v607
      %v619 = vpack.c.b16 %v610, %v609
      %v620 = vpack.c.b16 %v612, %v611
      %v622 = vshrl.u32 %v613, 16
      %v624 = vshll.u32 %v613, 16
      %v626 = vrot.slane %v624, 1
      %v627 = vor.u32 %v622, %v626
      %v629 = vshrl.u32 %v614, 16
      %v631 = vshll.u32 %v614, 16
      %v633 = vrot.slane %v631, 1
      %v634 = vor.u32 %v629, %v633
      %v636 = vshrl.u32 %v615, 16
      %v638 = vshll.u32 %v615, 16
      %v640 = vrot.slane %v638, 1
      %v641 = vor.u32 %v636, %v640
      %v643 = vshrl.u32 %v616, 16
      %v645 = vshll.u32 %v616, 16
      %v647 = vrot.slane %v645, 1
      %v648 = vor.u32 %v643, %v647
      %v650 = vshrl.u32 %v617, 16
      %v652 = vshll.u32 %v617, 16
      %v654 = vrot.slane %v652, 1
      %v655 = vor.u32 %v650, %v654
      %v657 = vshrl.u32 %v618, 16
      %v659 = vshll.u32 %v618, 16
      %v661 = vrot.slane %v659, 1
      %v662 = vor.u32 %v657, %v661
      %v664 = vshrl.u32 %v619, 16
      %v666 = vshll.u32 %v619, 16
      %v668 = vrot.slane %v666, 1
      %v669 = vor.u32 %v664, %v668
      %v671 = vshrl.u32 %v620, 16
      %v673 = vshll.u32 %v620, 16
      %v675 = vrot.slane %v673, 1
      %v676 = vor.u32 %v671, %v675
      %677 = vrot.lane.b32.xlu0 %v627, 4
      %v678 = vpop.permute.xlu0 %677
      %679 = vrot.lane.b32.xlu0 %v634, 4
      %v680 = vpop.permute.xlu0 %679
      %681 = vrot.lane.b32.xlu0 %v641, 4
      %v682 = vpop.permute.xlu0 %681
      %683 = vrot.lane.b32.xlu0 %v648, 4
      %v684 = vpop.permute.xlu0 %683
      %685 = vrot.lane.b32.xlu0 %v655, 4
      %v686 = vpop.permute.xlu0 %685
      %687 = vrot.lane.b32.xlu0 %v662, 4
      %v688 = vpop.permute.xlu0 %687
      %689 = vrot.lane.b32.xlu0 %v669, 4
      %v690 = vpop.permute.xlu0 %689
      %691 = vrot.lane.b32.xlu0 %v676, 4
      %v692 = vpop.permute.xlu0 %691
      %v701 = vunpack.c.l.b16 %v375
      %v702 = vunpack.c.l.b16 %v376
      %v703 = vunpack.c.l.b16 %v377
      %v704 = vunpack.c.l.b16 %v378
      %v705 = vunpack.c.l.b16 %v379
      %v706 = vunpack.c.l.b16 %v380
      %v707 = vunpack.c.l.b16 %v381
      %v708 = vunpack.c.l.b16 %v382
      %v709 = vpack.c.b16 %v598, %v701
      %v710 = vpack.c.b16 %v600, %v702
      %v711 = vpack.c.b16 %v602, %v703
      %v712 = vpack.c.b16 %v604, %v704
      %v713 = vpack.c.b16 %v606, %v705
      %v714 = vpack.c.b16 %v608, %v706
      %v715 = vpack.c.b16 %v610, %v707
      %v716 = vpack.c.b16 %v612, %v708
      %v717 = vrot.slane %v709, 1
      %v718 = vrot.slane %v710, 1
      %v719 = vrot.slane %v711, 1
      %v720 = vrot.slane %v712, 1
      %v721 = vrot.slane %v713, 1
      %v722 = vrot.slane %v714, 1
      %v723 = vrot.slane %v715, 1
      %v724 = vrot.slane %v716, 1
      %725 = vrot.lane.b32.xlu0 %v717, 8
      %v726 = vpop.permute.xlu0 %725
      %727 = vrot.lane.b32.xlu0 %v718, 8
      %v728 = vpop.permute.xlu0 %727
      %729 = vrot.lane.b32.xlu0 %v719, 8
      %v730 = vpop.permute.xlu0 %729
      %731 = vrot.lane.b32.xlu0 %v720, 8
      %v732 = vpop.permute.xlu0 %731
      %733 = vrot.lane.b32.xlu0 %v721, 8
      %v734 = vpop.permute.xlu0 %733
      %735 = vrot.lane.b32.xlu0 %v722, 8
      %v736 = vpop.permute.xlu0 %735
      %737 = vrot.lane.b32.xlu0 %v723, 8
      %v738 = vpop.permute.xlu0 %737
      %739 = vrot.lane.b32.xlu0 %v724, 8
      %v740 = vpop.permute.xlu0 %739
      %v749 = vunpack.c.l.b16 %v384
      %v750 = vunpack.c.l.b16 %v385
      %v751 = vunpack.c.l.b16 %v386
      %v752 = vunpack.c.l.b16 %v387
      %v753 = vunpack.c.l.b16 %v388
      %v754 = vunpack.c.l.b16 %v389
      %v755 = vunpack.c.l.b16 %v390
      %v756 = vunpack.c.l.b16 %v391
      %v757 = vpack.c.b16 %v749, %v749
      %v758 = vpack.c.b16 %v750, %v750
      %v759 = vpack.c.b16 %v751, %v751
      %v760 = vpack.c.b16 %v752, %v752
      %v761 = vpack.c.b16 %v753, %v753
      %v762 = vpack.c.b16 %v754, %v754
      %v763 = vpack.c.b16 %v755, %v755
      %v764 = vpack.c.b16 %v756, %v756
      %765 = vrot.lane.b32.xlu0 %v757, 12
      %v766 = vpop.permute.xlu0 %765
      %767 = vrot.lane.b32.xlu0 %v758, 12
      %v768 = vpop.permute.xlu0 %767
      %769 = vrot.lane.b32.xlu0 %v759, 12
      %v770 = vpop.permute.xlu0 %769
      %771 = vrot.lane.b32.xlu0 %v760, 12
      %v772 = vpop.permute.xlu0 %771
      %773 = vrot.lane.b32.xlu0 %v761, 12
      %v774 = vpop.permute.xlu0 %773
      %775 = vrot.lane.b32.xlu0 %v762, 12
      %v776 = vpop.permute.xlu0 %775
      %777 = vrot.lane.b32.xlu0 %v763, 12
      %v778 = vpop.permute.xlu0 %777
      %779 = vrot.lane.b32.xlu0 %v764, 12
      %v780 = vpop.permute.xlu0 %779
      %v789 = vunpack.c.l.b16 %v392
      %v790 = vunpack.c.l.b16 %v393
      %v791 = vunpack.c.l.b16 %v394
      %v792 = vunpack.c.l.b16 %v395
      %v793 = vunpack.c.l.b16 %v396
      %v794 = vunpack.c.l.b16 %v397
      %v795 = vunpack.c.l.b16 %v398
      %v796 = vunpack.c.l.b16 %v399
      %v797 = vpack.c.b16 %v789, %v749
      %v798 = vpack.c.b16 %v790, %v750
      %v799 = vpack.c.b16 %v791, %v751
      %v800 = vpack.c.b16 %v792, %v752
      %v801 = vpack.c.b16 %v793, %v753
      %v802 = vpack.c.b16 %v794, %v754
      %v803 = vpack.c.b16 %v795, %v755
      %v804 = vpack.c.b16 %v796, %v756
      %v806 = vshrl.u32 %v797, 16
      %v808 = vshll.u32 %v797, 16
      %v810 = vrot.slane %v808, 1
      %v811 = vor.u32 %v806, %v810
      %v813 = vshrl.u32 %v798, 16
      %v815 = vshll.u32 %v798, 16
      %v817 = vrot.slane %v815, 1
      %v818 = vor.u32 %v813, %v817
      %v820 = vshrl.u32 %v799, 16
      %v822 = vshll.u32 %v799, 16
      %v824 = vrot.slane %v822, 1
      %v825 = vor.u32 %v820, %v824
      %v827 = vshrl.u32 %v800, 16
      %v829 = vshll.u32 %v800, 16
      %v831 = vrot.slane %v829, 1
      %v832 = vor.u32 %v827, %v831
      %v834 = vshrl.u32 %v801, 16
      %v836 = vshll.u32 %v801, 16
      %v838 = vrot.slane %v836, 1
      %v839 = vor.u32 %v834, %v838
      %v841 = vshrl.u32 %v802, 16
      %v843 = vshll.u32 %v802, 16
      %v845 = vrot.slane %v843, 1
      %v846 = vor.u32 %v841, %v845
      %v848 = vshrl.u32 %v803, 16
      %v850 = vshll.u32 %v803, 16
      %v852 = vrot.slane %v850, 1
      %v853 = vor.u32 %v848, %v852
      %v855 = vshrl.u32 %v804, 16
      %v857 = vshll.u32 %v804, 16
      %v859 = vrot.slane %v857, 1
      %v860 = vor.u32 %v855, %v859
      %861 = vrot.lane.b32.xlu0 %v811, 16
      %v862 = vpop.permute.xlu0 %861
      %863 = vrot.lane.b32.xlu0 %v818, 16
      %v864 = vpop.permute.xlu0 %863
      %865 = vrot.lane.b32.xlu0 %v825, 16
      %v866 = vpop.permute.xlu0 %865
      %867 = vrot.lane.b32.xlu0 %v832, 16
      %v868 = vpop.permute.xlu0 %867
      %869 = vrot.lane.b32.xlu0 %v839, 16
      %v870 = vpop.permute.xlu0 %869
      %871 = vrot.lane.b32.xlu0 %v846, 16
      %v872 = vpop.permute.xlu0 %871
      %873 = vrot.lane.b32.xlu0 %v853, 16
      %v874 = vpop.permute.xlu0 %873
      %875 = vrot.lane.b32.xlu0 %v860, 16
      %v876 = vpop.permute.xlu0 %875
      %v885 = vunpack.c.l.b16 %v400
      %v886 = vunpack.c.l.b16 %v401
      %v887 = vunpack.c.l.b16 %v402
      %v888 = vunpack.c.l.b16 %v403
      %v889 = vunpack.c.l.b16 %v404
      %v890 = vunpack.c.l.b16 %v405
      %v891 = vunpack.c.l.b16 %v406
      %v892 = vunpack.c.l.b16 %v407
      %v893 = vpack.c.b16 %v789, %v885
      %v894 = vpack.c.b16 %v790, %v886
      %v895 = vpack.c.b16 %v791, %v887
      %v896 = vpack.c.b16 %v792, %v888
      %v897 = vpack.c.b16 %v793, %v889
      %v898 = vpack.c.b16 %v794, %v890
      %v899 = vpack.c.b16 %v795, %v891
      %v900 = vpack.c.b16 %v796, %v892
      %v901 = vrot.slane %v893, 1
      %v902 = vrot.slane %v894, 1
      %v903 = vrot.slane %v895, 1
      %v904 = vrot.slane %v896, 1
      %v905 = vrot.slane %v897, 1
      %v906 = vrot.slane %v898, 1
      %v907 = vrot.slane %v899, 1
      %v908 = vrot.slane %v900, 1
      %909 = vrot.lane.b32.xlu0 %v901, 20
      %v910 = vpop.permute.xlu0 %909
      %911 = vrot.lane.b32.xlu0 %v902, 20
      %v912 = vpop.permute.xlu0 %911
      %913 = vrot.lane.b32.xlu0 %v903, 20
      %v914 = vpop.permute.xlu0 %913
      %915 = vrot.lane.b32.xlu0 %v904, 20
      %v916 = vpop.permute.xlu0 %915
      %917 = vrot.lane.b32.xlu0 %v905, 20
      %v918 = vpop.permute.xlu0 %917
      %919 = vrot.lane.b32.xlu0 %v906, 20
      %v920 = vpop.permute.xlu0 %919
      %921 = vrot.lane.b32.xlu0 %v907, 20
      %v922 = vpop.permute.xlu0 %921
      %923 = vrot.lane.b32.xlu0 %v908, 20
      %v924 = vpop.permute.xlu0 %923
      %v933 = vunpack.c.l.b16 %v409
      %v934 = vunpack.c.l.b16 %v410
      %v935 = vunpack.c.l.b16 %v411
      %v936 = vunpack.c.l.b16 %v412
      %v937 = vunpack.c.l.b16 %v413
      %v938 = vunpack.c.l.b16 %v414
      %v939 = vunpack.c.l.b16 %v415
      %v940 = vunpack.c.l.b16 %v416
      %v941 = vpack.c.b16 %v933, %v933
      %v942 = vpack.c.b16 %v934, %v934
      %v943 = vpack.c.b16 %v935, %v935
      %v944 = vpack.c.b16 %v936, %v936
      %v945 = vpack.c.b16 %v937, %v937
      %v946 = vpack.c.b16 %v938, %v938
      %v947 = vpack.c.b16 %v939, %v939
      %v948 = vpack.c.b16 %v940, %v940
      %949 = vrot.lane.b32.xlu0 %v941, 24
      %v950 = vpop.permute.xlu0 %949
      %951 = vrot.lane.b32.xlu0 %v942, 24
      %v952 = vpop.permute.xlu0 %951
      %953 = vrot.lane.b32.xlu0 %v943, 24
      %v954 = vpop.permute.xlu0 %953
      %955 = vrot.lane.b32.xlu0 %v944, 24
      %v956 = vpop.permute.xlu0 %955
      %957 = vrot.lane.b32.xlu0 %v945, 24
      %v958 = vpop.permute.xlu0 %957
      %959 = vrot.lane.b32.xlu0 %v946, 24
      %v960 = vpop.permute.xlu0 %959
      %961 = vrot.lane.b32.xlu0 %v947, 24
      %v962 = vpop.permute.xlu0 %961
      %963 = vrot.lane.b32.xlu0 %v948, 24
      %v964 = vpop.permute.xlu0 %963
      %v973 = vunpack.c.l.b16 %v417
      %v974 = vunpack.c.l.b16 %v418
      %v975 = vunpack.c.l.b16 %v419
      %v976 = vunpack.c.l.b16 %v420
      %v977 = vunpack.c.l.b16 %v421
      %v978 = vunpack.c.l.b16 %v422
      %v979 = vunpack.c.l.b16 %v423
      %v980 = vunpack.c.l.b16 %v424
      %v981 = vpack.c.b16 %v973, %v933
      %v982 = vpack.c.b16 %v974, %v934
      %v983 = vpack.c.b16 %v975, %v935
      %v984 = vpack.c.b16 %v976, %v936
      %v985 = vpack.c.b16 %v977, %v937
      %v986 = vpack.c.b16 %v978, %v938
      %v987 = vpack.c.b16 %v979, %v939
      %v988 = vpack.c.b16 %v980, %v940
      %v990 = vshrl.u32 %v981, 16
      %v992 = vshll.u32 %v981, 16
      %v994 = vrot.slane %v992, 1
      %v995 = vor.u32 %v990, %v994
      %v997 = vshrl.u32 %v982, 16
      %v999 = vshll.u32 %v982, 16
      %v1001 = vrot.slane %v999, 1
      %v1002 = vor.u32 %v997, %v1001
      %v1004 = vshrl.u32 %v983, 16
      %v1006 = vshll.u32 %v983, 16
      %v1008 = vrot.slane %v1006, 1
      %v1009 = vor.u32 %v1004, %v1008
      %v1011 = vshrl.u32 %v984, 16
      %v1013 = vshll.u32 %v984, 16
      %v1015 = vrot.slane %v1013, 1
      %v1016 = vor.u32 %v1011, %v1015
      %v1018 = vshrl.u32 %v985, 16
      %v1020 = vshll.u32 %v985, 16
      %v1022 = vrot.slane %v1020, 1
      %v1023 = vor.u32 %v1018, %v1022
      %v1025 = vshrl.u32 %v986, 16
      %v1027 = vshll.u32 %v986, 16
      %v1029 = vrot.slane %v1027, 1
      %v1030 = vor.u32 %v1025, %v1029
      %v1032 = vshrl.u32 %v987, 16
      %v1034 = vshll.u32 %v987, 16
      %v1036 = vrot.slane %v1034, 1
      %v1037 = vor.u32 %v1032, %v1036
      %v1039 = vshrl.u32 %v988, 16
      %v1041 = vshll.u32 %v988, 16
      %v1043 = vrot.slane %v1041, 1
      %v1044 = vor.u32 %v1039, %v1043
      %1045 = vrot.lane.b32.xlu0 %v995, 28
      %v1046 = vpop.permute.xlu0 %1045
      %1047 = vrot.lane.b32.xlu0 %v1002, 28
      %v1048 = vpop.permute.xlu0 %1047
      %1049 = vrot.lane.b32.xlu0 %v1009, 28
      %v1050 = vpop.permute.xlu0 %1049
      %1051 = vrot.lane.b32.xlu0 %v1016, 28
      %v1052 = vpop.permute.xlu0 %1051
      %1053 = vrot.lane.b32.xlu0 %v1023, 28
      %v1054 = vpop.permute.xlu0 %1053
      %1055 = vrot.lane.b32.xlu0 %v1030, 28
      %v1056 = vpop.permute.xlu0 %1055
      %1057 = vrot.lane.b32.xlu0 %v1037, 28
      %v1058 = vpop.permute.xlu0 %1057
      %1059 = vrot.lane.b32.xlu0 %v1044, 28
      %v1060 = vpop.permute.xlu0 %1059
      %v1069 = vunpack.c.l.b16 %v425
      %v1070 = vunpack.c.l.b16 %v426
      %v1071 = vunpack.c.l.b16 %v427
      %v1072 = vunpack.c.l.b16 %v428
      %v1073 = vunpack.c.l.b16 %v429
      %v1074 = vunpack.c.l.b16 %v430
      %v1075 = vunpack.c.l.b16 %v431
      %v1076 = vunpack.c.l.b16 %v432
      %v1077 = vpack.c.b16 %v973, %v1069
      %v1078 = vpack.c.b16 %v974, %v1070
      %v1079 = vpack.c.b16 %v975, %v1071
      %v1080 = vpack.c.b16 %v976, %v1072
      %v1081 = vpack.c.b16 %v977, %v1073
      %v1082 = vpack.c.b16 %v978, %v1074
      %v1083 = vpack.c.b16 %v979, %v1075
      %v1084 = vpack.c.b16 %v980, %v1076
      %v1085 = vrot.slane %v1077, 1
      %v1086 = vrot.slane %v1078, 1
      %v1087 = vrot.slane %v1079, 1
      %v1088 = vrot.slane %v1080, 1
      %v1089 = vrot.slane %v1081, 1
      %v1090 = vrot.slane %v1082, 1
      %v1091 = vrot.slane %v1083, 1
      %v1092 = vrot.slane %v1084, 1
      %1093 = vrot.lane.b32.xlu0 %v1085, 32
      %v1094 = vpop.permute.xlu0 %1093
      %1095 = vrot.lane.b32.xlu0 %v1086, 32
      %v1096 = vpop.permute.xlu0 %1095
      %1097 = vrot.lane.b32.xlu0 %v1087, 32
      %v1098 = vpop.permute.xlu0 %1097
      %1099 = vrot.lane.b32.xlu0 %v1088, 32
      %v1100 = vpop.permute.xlu0 %1099
      %1101 = vrot.lane.b32.xlu0 %v1089, 32
      %v1102 = vpop.permute.xlu0 %1101
      %1103 = vrot.lane.b32.xlu0 %v1090, 32
      %v1104 = vpop.permute.xlu0 %1103
      %1105 = vrot.lane.b32.xlu0 %v1091, 32
      %v1106 = vpop.permute.xlu0 %1105
      %1107 = vrot.lane.b32.xlu0 %v1092, 32
      %v1108 = vpop.permute.xlu0 %1107
      %v1117 = vunpack.c.l.b16 %v433
      %v1118 = vunpack.c.l.b16 %v434
      %v1119 = vunpack.c.l.b16 %v435
      %v1120 = vunpack.c.l.b16 %v436
      %v1121 = vunpack.c.l.b16 %v437
      %v1122 = vunpack.c.l.b16 %v438
      %v1123 = vunpack.c.l.b16 %v439
      %v1124 = vunpack.c.l.b16 %v440
      %v1125 = vpack.c.b16 %v1117, %v1117
      %v1126 = vpack.c.b16 %v1118, %v1118
      %v1127 = vpack.c.b16 %v1119, %v1119
      %v1128 = vpack.c.b16 %v1120, %v1120
      %v1129 = vpack.c.b16 %v1121, %v1121
      %v1130 = vpack.c.b16 %v1122, %v1122
      %v1131 = vpack.c.b16 %v1123, %v1123
      %v1132 = vpack.c.b16 %v1124, %v1124
      %1133 = vrot.lane.b32.xlu0 %v1125, 36
      %v1134 = vpop.permute.xlu0 %1133
      %1135 = vrot.lane.b32.xlu0 %v1126, 36
      %v1136 = vpop.permute.xlu0 %1135
      %1137 = vrot.lane.b32.xlu0 %v1127, 36
      %v1138 = vpop.permute.xlu0 %1137
      %1139 = vrot.lane.b32.xlu0 %v1128, 36
      %v1140 = vpop.permute.xlu0 %1139
      %1141 = vrot.lane.b32.xlu0 %v1129, 36
      %v1142 = vpop.permute.xlu0 %1141
      %1143 = vrot.lane.b32.xlu0 %v1130, 36
      %v1144 = vpop.permute.xlu0 %1143
      %1145 = vrot.lane.b32.xlu0 %v1131, 36
      %v1146 = vpop.permute.xlu0 %1145
      %1147 = vrot.lane.b32.xlu0 %v1132, 36
      %v1148 = vpop.permute.xlu0 %1147
      %v1157 = vunpack.c.l.b16 %v441
      %v1158 = vunpack.c.l.b16 %v442
      %v1159 = vunpack.c.l.b16 %v443
      %v1160 = vunpack.c.l.b16 %v444
      %v1161 = vunpack.c.l.b16 %v445
      %v1162 = vunpack.c.l.b16 %v446
      %v1163 = vunpack.c.l.b16 %v447
      %v1164 = vunpack.c.l.b16 %v448
      %v1165 = vpack.c.b16 %v1157, %v1117
      %v1166 = vpack.c.b16 %v1158, %v1118
      %v1167 = vpack.c.b16 %v1159, %v1119
      %v1168 = vpack.c.b16 %v1160, %v1120
      %v1169 = vpack.c.b16 %v1161, %v1121
      %v1170 = vpack.c.b16 %v1162, %v1122
      %v1171 = vpack.c.b16 %v1163, %v1123
      %v1172 = vpack.c.b16 %v1164, %v1124
      %v1174 = vshrl.u32 %v1165, 16
      %v1176 = vshll.u32 %v1165, 16
      %v1178 = vrot.slane %v1176, 1
      %v1179 = vor.u32 %v1174, %v1178
      %v1181 = vshrl.u32 %v1166, 16
      %v1183 = vshll.u32 %v1166, 16
      %v1185 = vrot.slane %v1183, 1
      %v1186 = vor.u32 %v1181, %v1185
      %v1188 = vshrl.u32 %v1167, 16
      %v1190 = vshll.u32 %v1167, 16
      %v1192 = vrot.slane %v1190, 1
      %v1193 = vor.u32 %v1188, %v1192
      %v1195 = vshrl.u32 %v1168, 16
      %v1197 = vshll.u32 %v1168, 16
      %v1199 = vrot.slane %v1197, 1
      %v1200 = vor.u32 %v1195, %v1199
      %v1202 = vshrl.u32 %v1169, 16
      %v1204 = vshll.u32 %v1169, 16
      %v1206 = vrot.slane %v1204, 1
      %v1207 = vor.u32 %v1202, %v1206
      %v1209 = vshrl.u32 %v1170, 16
      %v1211 = vshll.u32 %v1170, 16
      %v1213 = vrot.slane %v1211, 1
      %v1214 = vor.u32 %v1209, %v1213
      %v1216 = vshrl.u32 %v1171, 16
      %v1218 = vshll.u32 %v1171, 16
      %v1220 = vrot.slane %v1218, 1
      %v1221 = vor.u32 %v1216, %v1220
      %v1223 = vshrl.u32 %v1172, 16
      %v1225 = vshll.u32 %v1172, 16
      %v1227 = vrot.slane %v1225, 1
      %v1228 = vor.u32 %v1223, %v1227
      %1229 = vrot.lane.b32.xlu0 %v1179, 40
      %v1230 = vpop.permute.xlu0 %1229
      %1231 = vrot.lane.b32.xlu0 %v1186, 40
      %v1232 = vpop.permute.xlu0 %1231
      %1233 = vrot.lane.b32.xlu0 %v1193, 40
      %v1234 = vpop.permute.xlu0 %1233
      %1235 = vrot.lane.b32.xlu0 %v1200, 40
      %v1236 = vpop.permute.xlu0 %1235
      %1237 = vrot.lane.b32.xlu0 %v1207, 40
      %v1238 = vpop.permute.xlu0 %1237
      %1239 = vrot.lane.b32.xlu0 %v1214, 40
      %v1240 = vpop.permute.xlu0 %1239
      %1241 = vrot.lane.b32.xlu0 %v1221, 40
      %v1242 = vpop.permute.xlu0 %1241
      %1243 = vrot.lane.b32.xlu0 %v1228, 40
      %v1244 = vpop.permute.xlu0 %1243
      %v1253 = vunpack.c.l.b16 %v449
      %v1254 = vunpack.c.l.b16 %v450
      %v1255 = vunpack.c.l.b16 %v451
      %v1256 = vunpack.c.l.b16 %v452
      %v1257 = vunpack.c.l.b16 %v453
      %v1258 = vunpack.c.l.b16 %v454
      %v1259 = vunpack.c.l.b16 %v455
      %v1260 = vunpack.c.l.b16 %v456
      %v1261 = vpack.c.b16 %v1157, %v1253
      %v1262 = vpack.c.b16 %v1158, %v1254
      %v1263 = vpack.c.b16 %v1159, %v1255
      %v1264 = vpack.c.b16 %v1160, %v1256
      %v1265 = vpack.c.b16 %v1161, %v1257
      %v1266 = vpack.c.b16 %v1162, %v1258
      %v1267 = vpack.c.b16 %v1163, %v1259
      %v1268 = vpack.c.b16 %v1164, %v1260
      %v1269 = vrot.slane %v1261, 1
      %v1270 = vrot.slane %v1262, 1
      %v1271 = vrot.slane %v1263, 1
      %v1272 = vrot.slane %v1264, 1
      %v1273 = vrot.slane %v1265, 1
      %v1274 = vrot.slane %v1266, 1
      %v1275 = vrot.slane %v1267, 1
      %v1276 = vrot.slane %v1268, 1
      %1277 = vrot.lane.b32.xlu0 %v1269, 44
      %v1278 = vpop.permute.xlu0 %1277
      %1279 = vrot.lane.b32.xlu0 %v1270, 44
      %v1280 = vpop.permute.xlu0 %1279
      %1281 = vrot.lane.b32.xlu0 %v1271, 44
      %v1282 = vpop.permute.xlu0 %1281
      %1283 = vrot.lane.b32.xlu0 %v1272, 44
      %v1284 = vpop.permute.xlu0 %1283
      %1285 = vrot.lane.b32.xlu0 %v1273, 44
      %v1286 = vpop.permute.xlu0 %1285
      %1287 = vrot.lane.b32.xlu0 %v1274, 44
      %v1288 = vpop.permute.xlu0 %1287
      %1289 = vrot.lane.b32.xlu0 %v1275, 44
      %v1290 = vpop.permute.xlu0 %1289
      %1291 = vrot.lane.b32.xlu0 %v1276, 44
      %v1292 = vpop.permute.xlu0 %1291
      %v1301 = vunpack.c.l.b16 %v458
      %v1302 = vunpack.c.l.b16 %v459
      %v1303 = vunpack.c.l.b16 %v460
      %v1304 = vunpack.c.l.b16 %v461
      %v1305 = vunpack.c.l.b16 %v462
      %v1306 = vunpack.c.l.b16 %v463
      %v1307 = vunpack.c.l.b16 %v464
      %v1308 = vunpack.c.l.b16 %v465
      %v1309 = vpack.c.b16 %v1301, %v1301
      %v1310 = vpack.c.b16 %v1302, %v1302
      %v1311 = vpack.c.b16 %v1303, %v1303
      %v1312 = vpack.c.b16 %v1304, %v1304
      %v1313 = vpack.c.b16 %v1305, %v1305
      %v1314 = vpack.c.b16 %v1306, %v1306
      %v1315 = vpack.c.b16 %v1307, %v1307
      %v1316 = vpack.c.b16 %v1308, %v1308
      %1317 = vrot.lane.b32.xlu0 %v1309, 48
      %v1318 = vpop.permute.xlu0 %1317
      %1319 = vrot.lane.b32.xlu0 %v1310, 48
      %v1320 = vpop.permute.xlu0 %1319
      %1321 = vrot.lane.b32.xlu0 %v1311, 48
      %v1322 = vpop.permute.xlu0 %1321
      %1323 = vrot.lane.b32.xlu0 %v1312, 48
      %v1324 = vpop.permute.xlu0 %1323
      %1325 = vrot.lane.b32.xlu0 %v1313, 48
      %v1326 = vpop.permute.xlu0 %1325
      %1327 = vrot.lane.b32.xlu0 %v1314, 48
      %v1328 = vpop.permute.xlu0 %1327
      %1329 = vrot.lane.b32.xlu0 %v1315, 48
      %v1330 = vpop.permute.xlu0 %1329
      %1331 = vrot.lane.b32.xlu0 %v1316, 48
      %v1332 = vpop.permute.xlu0 %1331
      %v1341 = vunpack.c.l.b16 %v466
      %v1342 = vunpack.c.l.b16 %v467
      %v1343 = vunpack.c.l.b16 %v468
      %v1344 = vunpack.c.l.b16 %v469
      %v1345 = vunpack.c.l.b16 %v470
      %v1346 = vunpack.c.l.b16 %v471
      %v1347 = vunpack.c.l.b16 %v472
      %v1348 = vunpack.c.l.b16 %v473
      %v1349 = vpack.c.b16 %v1341, %v1301
      %v1350 = vpack.c.b16 %v1342, %v1302
      %v1351 = vpack.c.b16 %v1343, %v1303
      %v1352 = vpack.c.b16 %v1344, %v1304
      %v1353 = vpack.c.b16 %v1345, %v1305
      %v1354 = vpack.c.b16 %v1346, %v1306
      %v1355 = vpack.c.b16 %v1347, %v1307
      %v1356 = vpack.c.b16 %v1348, %v1308
      %v1358 = vshrl.u32 %v1349, 16
      %v1360 = vshll.u32 %v1349, 16
      %v1362 = vrot.slane %v1360, 1
      %v1363 = vor.u32 %v1358, %v1362
      %v1365 = vshrl.u32 %v1350, 16
      %v1367 = vshll.u32 %v1350, 16
      %v1369 = vrot.slane %v1367, 1
      %v1370 = vor.u32 %v1365, %v1369
      %v1372 = vshrl.u32 %v1351, 16
      %v1374 = vshll.u32 %v1351, 16
      %v1376 = vrot.slane %v1374, 1
      %v1377 = vor.u32 %v1372, %v1376
      %v1379 = vshrl.u32 %v1352, 16
      %v1381 = vshll.u32 %v1352, 16
      %v1383 = vrot.slane %v1381, 1
      %v1384 = vor.u32 %v1379, %v1383
      %v1386 = vshrl.u32 %v1353, 16
      %v1388 = vshll.u32 %v1353, 16
      %v1390 = vrot.slane %v1388, 1
      %v1391 = vor.u32 %v1386, %v1390
      %v1393 = vshrl.u32 %v1354, 16
      %v1395 = vshll.u32 %v1354, 16
      %v1397 = vrot.slane %v1395, 1
      %v1398 = vor.u32 %v1393, %v1397
      %v1400 = vshrl.u32 %v1355, 16
      %v1402 = vshll.u32 %v1355, 16
      %v1404 = vrot.slane %v1402, 1
      %v1405 = vor.u32 %v1400, %v1404
      %v1407 = vshrl.u32 %v1356, 16
      %v1409 = vshll.u32 %v1356, 16
      %v1411 = vrot.slane %v1409, 1
      %v1412 = vor.u32 %v1407, %v1411
      %1413 = vrot.lane.b32.xlu0 %v1363, 52
      %v1414 = vpop.permute.xlu0 %1413
      %1415 = vrot.lane.b32.xlu0 %v1370, 52
      %v1416 = vpop.permute.xlu0 %1415
      %1417 = vrot.lane.b32.xlu0 %v1377, 52
      %v1418 = vpop.permute.xlu0 %1417
      %1419 = vrot.lane.b32.xlu0 %v1384, 52
      %v1420 = vpop.permute.xlu0 %1419
      %1421 = vrot.lane.b32.xlu0 %v1391, 52
      %v1422 = vpop.permute.xlu0 %1421
      %1423 = vrot.lane.b32.xlu0 %v1398, 52
      %v1424 = vpop.permute.xlu0 %1423
      %1425 = vrot.lane.b32.xlu0 %v1405, 52
      %v1426 = vpop.permute.xlu0 %1425
      %1427 = vrot.lane.b32.xlu0 %v1412, 52
      %v1428 = vpop.permute.xlu0 %1427
      %v1437 = vunpack.c.l.b16 %v474
      %v1438 = vunpack.c.l.b16 %v475
      %v1439 = vunpack.c.l.b16 %v476
      %v1440 = vunpack.c.l.b16 %v477
      %v1441 = vunpack.c.l.b16 %v478
      %v1442 = vunpack.c.l.b16 %v479
      %v1443 = vunpack.c.l.b16 %v480
      %v1444 = vunpack.c.l.b16 %v481
      %v1445 = vpack.c.b16 %v1341, %v1437
      %v1446 = vpack.c.b16 %v1342, %v1438
      %v1447 = vpack.c.b16 %v1343, %v1439
      %v1448 = vpack.c.b16 %v1344, %v1440
      %v1449 = vpack.c.b16 %v1345, %v1441
      %v1450 = vpack.c.b16 %v1346, %v1442
      %v1451 = vpack.c.b16 %v1347, %v1443
      %v1452 = vpack.c.b16 %v1348, %v1444
      %v1453 = vrot.slane %v1445, 1
      %v1454 = vrot.slane %v1446, 1
      %v1455 = vrot.slane %v1447, 1
      %v1456 = vrot.slane %v1448, 1
      %v1457 = vrot.slane %v1449, 1
      %v1458 = vrot.slane %v1450, 1
      %v1459 = vrot.slane %v1451, 1
      %v1460 = vrot.slane %v1452, 1
      %1461 = vrot.lane.b32.xlu0 %v1453, 56
      %v1462 = vpop.permute.xlu0 %1461
      %1463 = vrot.lane.b32.xlu0 %v1454, 56
      %v1464 = vpop.permute.xlu0 %1463
      %1465 = vrot.lane.b32.xlu0 %v1455, 56
      %v1466 = vpop.permute.xlu0 %1465
      %1467 = vrot.lane.b32.xlu0 %v1456, 56
      %v1468 = vpop.permute.xlu0 %1467
      %1469 = vrot.lane.b32.xlu0 %v1457, 56
      %v1470 = vpop.permute.xlu0 %1469
      %1471 = vrot.lane.b32.xlu0 %v1458, 56
      %v1472 = vpop.permute.xlu0 %1471
      %1473 = vrot.lane.b32.xlu0 %v1459, 56
      %v1474 = vpop.permute.xlu0 %1473
      %1475 = vrot.lane.b32.xlu0 %v1460, 56
      %v1476 = vpop.permute.xlu0 %1475
      %v1485 = vunpack.c.l.b16 %v483
      %v1486 = vunpack.c.l.b16 %v484
      %v1487 = vunpack.c.l.b16 %v485
      %v1488 = vunpack.c.l.b16 %v486
      %v1489 = vunpack.c.l.b16 %v487
      %v1490 = vunpack.c.l.b16 %v488
      %v1491 = vunpack.c.l.b16 %v489
      %v1492 = vunpack.c.l.b16 %v490
      %v1493 = vpack.c.b16 %v1485, %v1485
      %v1494 = vpack.c.b16 %v1486, %v1486
      %v1495 = vpack.c.b16 %v1487, %v1487
      %v1496 = vpack.c.b16 %v1488, %v1488
      %v1497 = vpack.c.b16 %v1489, %v1489
      %v1498 = vpack.c.b16 %v1490, %v1490
      %v1499 = vpack.c.b16 %v1491, %v1491
      %v1500 = vpack.c.b16 %v1492, %v1492
      %1501 = vrot.lane.b32.xlu0 %v1493, 60
      %v1502 = vpop.permute.xlu0 %1501
      %1503 = vrot.lane.b32.xlu0 %v1494, 60
      %v1504 = vpop.permute.xlu0 %1503
      %1505 = vrot.lane.b32.xlu0 %v1495, 60
      %v1506 = vpop.permute.xlu0 %1505
      %1507 = vrot.lane.b32.xlu0 %v1496, 60
      %v1508 = vpop.permute.xlu0 %1507
      %1509 = vrot.lane.b32.xlu0 %v1497, 60
      %v1510 = vpop.permute.xlu0 %1509
      %1511 = vrot.lane.b32.xlu0 %v1498, 60
      %v1512 = vpop.permute.xlu0 %1511
      %1513 = vrot.lane.b32.xlu0 %v1499, 60
      %v1514 = vpop.permute.xlu0 %1513
      %1515 = vrot.lane.b32.xlu0 %v1500, 60
      %v1516 = vpop.permute.xlu0 %1515
      %vm1517 = vcmask 31744
      %v1520 = vsel %vm1517, %v359, %v678
      %v1523 = vsel %vm1517, %v360, %v680
      %v1526 = vsel %vm1517, %v361, %v682
      %v1529 = vsel %vm1517, %v362, %v684
      %v1532 = vsel %vm1517, %v363, %v686
      %v1535 = vsel %vm1517, %v364, %v688
      %v1538 = vsel %vm1517, %v365, %v690
      %v1541 = vsel %vm1517, %v366, %v692
      %vm1542 = vcmask 64512
      %v1544 = vsel %vm1542, %v1520, %v726
      %v1546 = vsel %vm1542, %v1523, %v728
      %v1548 = vsel %vm1542, %v1526, %v730
      %v1550 = vsel %vm1542, %v1529, %v732
      %v1552 = vsel %vm1542, %v1532, %v734
      %v1554 = vsel %vm1542, %v1535, %v736
      %v1556 = vsel %vm1542, %v1538, %v738
      %v1558 = vsel %vm1542, %v1541, %v740
      %vm1559 = vcmask 97280
      %v1561 = vsel %vm1559, %v1544, %v766
      %v1563 = vsel %vm1559, %v1546, %v768
      %v1565 = vsel %vm1559, %v1548, %v770
      %v1567 = vsel %vm1559, %v1550, %v772
      %v1569 = vsel %vm1559, %v1552, %v774
      %v1571 = vsel %vm1559, %v1554, %v776
      %v1573 = vsel %vm1559, %v1556, %v778
      %v1575 = vsel %vm1559, %v1558, %v780
      %vm1576 = vcmask 130048
      %v1578 = vsel %vm1576, %v1561, %v862
      %v1580 = vsel %vm1576, %v1563, %v864
      %v1582 = vsel %vm1576, %v1565, %v866
      %v1584 = vsel %vm1576, %v1567, %v868
      %v1586 = vsel %vm1576, %v1569, %v870
      %v1588 = vsel %vm1576, %v1571, %v872
      %v1590 = vsel %vm1576, %v1573, %v874
      %v1592 = vsel %vm1576, %v1575, %v876
      %vm1593 = vcmask 162816
      %v1595 = vsel %vm1593, %v1578, %v910
      %v1597 = vsel %vm1593, %v1580, %v912
      %v1599 = vsel %vm1593, %v1582, %v914
      %v1601 = vsel %vm1593, %v1584, %v916
      %v1603 = vsel %vm1593, %v1586, %v918
      %v1605 = vsel %vm1593, %v1588, %v920
      %v1607 = vsel %vm1593, %v1590, %v922
      %v1609 = vsel %vm1593, %v1592, %v924
      %vm1610 = vcmask 195584
      %v1612 = vsel %vm1610, %v1595, %v950
      %v1614 = vsel %vm1610, %v1597, %v952
      %v1616 = vsel %vm1610, %v1599, %v954
      %v1618 = vsel %vm1610, %v1601, %v956
      %v1620 = vsel %vm1610, %v1603, %v958
      %v1622 = vsel %vm1610, %v1605, %v960
      %v1624 = vsel %vm1610, %v1607, %v962
      %v1626 = vsel %vm1610, %v1609, %v964
      %vm1627 = vcmask 228352
      %v1629 = vsel %vm1627, %v1612, %v1046
      %v1631 = vsel %vm1627, %v1614, %v1048
      %v1633 = vsel %vm1627, %v1616, %v1050
      %v1635 = vsel %vm1627, %v1618, %v1052
      %v1637 = vsel %vm1627, %v1620, %v1054
      %v1639 = vsel %vm1627, %v1622, %v1056
      %v1641 = vsel %vm1627, %v1624, %v1058
      %v1643 = vsel %vm1627, %v1626, %v1060
      %vm1644 = vcmask 261120
      %v1646 = vsel %vm1644, %v1629, %v1094
      %v1648 = vsel %vm1644, %v1631, %v1096
      %v1650 = vsel %vm1644, %v1633, %v1098
      %v1652 = vsel %vm1644, %v1635, %v1100
      %v1654 = vsel %vm1644, %v1637, %v1102
      %v1656 = vsel %vm1644, %v1639, %v1104
      %v1658 = vsel %vm1644, %v1641, %v1106
      %v1660 = vsel %vm1644, %v1643, %v1108
      %vm1661 = vcmask 293888
      %v1663 = vsel %vm1661, %v1646, %v1134
      %v1665 = vsel %vm1661, %v1648, %v1136
      %v1667 = vsel %vm1661, %v1650, %v1138
      %v1669 = vsel %vm1661, %v1652, %v1140
      %v1671 = vsel %vm1661, %v1654, %v1142
      %v1673 = vsel %vm1661, %v1656, %v1144
      %v1675 = vsel %vm1661, %v1658, %v1146
      %v1677 = vsel %vm1661, %v1660, %v1148
      %vm1678 = vcmask 326656
      %v1680 = vsel %vm1678, %v1663, %v1230
      %v1682 = vsel %vm1678, %v1665, %v1232
      %v1684 = vsel %vm1678, %v1667, %v1234
      %v1686 = vsel %vm1678, %v1669, %v1236
      %v1688 = vsel %vm1678, %v1671, %v1238
      %v1690 = vsel %vm1678, %v1673, %v1240
      %v1692 = vsel %vm1678, %v1675, %v1242
      %v1694 = vsel %vm1678, %v1677, %v1244
      %vm1695 = vcmask 359424
      %v1697 = vsel %vm1695, %v1680, %v1278
      %v1699 = vsel %vm1695, %v1682, %v1280
      %v1701 = vsel %vm1695, %v1684, %v1282
      %v1703 = vsel %vm1695, %v1686, %v1284
      %v1705 = vsel %vm1695, %v1688, %v1286
      %v1707 = vsel %vm1695, %v1690, %v1288
      %v1709 = vsel %vm1695, %v1692, %v1290
      %v1711 = vsel %vm1695, %v1694, %v1292
      %vm1712 = vcmask 392192
      %v1714 = vsel %vm1712, %v1697, %v1318
      %v1716 = vsel %vm1712, %v1699, %v1320
      %v1718 = vsel %vm1712, %v1701, %v1322
      %v1720 = vsel %vm1712, %v1703, %v1324
      %v1722 = vsel %vm1712, %v1705, %v1326
      %v1724 = vsel %vm1712, %v1707, %v1328
      %v1726 = vsel %vm1712, %v1709, %v1330
      %v1728 = vsel %vm1712, %v1711, %v1332
      %vm1729 = vcmask 424960
      %v1731 = vsel %vm1729, %v1714, %v1414
      %v1733 = vsel %vm1729, %v1716, %v1416
      %v1735 = vsel %vm1729, %v1718, %v1418
      %v1737 = vsel %vm1729, %v1720, %v1420
      %v1739 = vsel %vm1729, %v1722, %v1422
      %v1741 = vsel %vm1729, %v1724, %v1424
      %v1743 = vsel %vm1729, %v1726, %v1426
      %v1745 = vsel %vm1729, %v1728, %v1428
      %vm1746 = vcmask 457728
      %v1748 = vsel %vm1746, %v1731, %v1462
      %v1750 = vsel %vm1746, %v1733, %v1464
      %v1752 = vsel %vm1746, %v1735, %v1466
      %v1754 = vsel %vm1746, %v1737, %v1468
      %v1756 = vsel %vm1746, %v1739, %v1470
      %v1758 = vsel %vm1746, %v1741, %v1472
      %v1760 = vsel %vm1746, %v1743, %v1474
      %v1762 = vsel %vm1746, %v1745, %v1476
      %vm1763 = vcmask 490496
      %v1765 = vsel %vm1763, %v1748, %v1502
      %v1767 = vsel %vm1763, %v1750, %v1504
      %v1769 = vsel %vm1763, %v1752, %v1506
      %v1771 = vsel %vm1763, %v1754, %v1508
      %v1773 = vsel %vm1763, %v1756, %v1510
      %v1775 = vsel %vm1763, %v1758, %v1512
      %v1777 = vsel %vm1763, %v1760, %v1514
      %v1779 = vsel %vm1763, %v1762, %v1516
      %v1788 = vunpack.c.l.b16 %v491
      %v1789 = vunpack.c.l.b16 %v492
      %v1790 = vunpack.c.l.b16 %v493
      %v1791 = vunpack.c.l.b16 %v494
      %v1792 = vunpack.c.l.b16 %v495
      %v1793 = vunpack.c.l.b16 %v496
      %v1794 = vunpack.c.l.b16 %v497
      %v1795 = vunpack.c.l.b16 %v498
      %v1796 = vpack.c.b16 %v1788, %v1485
      %v1797 = vpack.c.b16 %v1789, %v1486
      %v1798 = vpack.c.b16 %v1790, %v1487
      %v1799 = vpack.c.b16 %v1791, %v1488
      %v1800 = vpack.c.b16 %v1792, %v1489
      %v1801 = vpack.c.b16 %v1793, %v1490
      %v1802 = vpack.c.b16 %v1794, %v1491
      %v1803 = vpack.c.b16 %v1795, %v1492
      %v1812 = vunpack.c.l.b16 %v499
      %v1813 = vunpack.c.l.b16 %v500
      %v1814 = vunpack.c.l.b16 %v501
      %v1815 = vunpack.c.l.b16 %v502
      %v1816 = vunpack.c.l.b16 %v503
      %v1817 = vunpack.c.l.b16 %v504
      %v1818 = vunpack.c.l.b16 %v505
      %v1819 = vunpack.c.l.b16 %v506
      %v1820 = vpack.c.b16 %v1788, %v1812
      %v1821 = vpack.c.b16 %v1789, %v1813
      %v1822 = vpack.c.b16 %v1790, %v1814
      %v1823 = vpack.c.b16 %v1791, %v1815
      %v1824 = vpack.c.b16 %v1792, %v1816
      %v1825 = vpack.c.b16 %v1793, %v1817
      %v1826 = vpack.c.b16 %v1794, %v1818
      %v1827 = vpack.c.b16 %v1795, %v1819
      %v1829 = vshrl.u32 %v1820, 16
      %v1831 = vshll.u32 %v1820, 16
      %v1833 = vrot.slane %v1831, 1
      %v1834 = vor.u32 %v1829, %v1833
      %v1836 = vshrl.u32 %v1821, 16
      %v1838 = vshll.u32 %v1821, 16
      %v1840 = vrot.slane %v1838, 1
      %v1841 = vor.u32 %v1836, %v1840
      %v1843 = vshrl.u32 %v1822, 16
      %v1845 = vshll.u32 %v1822, 16
      %v1847 = vrot.slane %v1845, 1
      %v1848 = vor.u32 %v1843, %v1847
      %v1850 = vshrl.u32 %v1823, 16
      %v1852 = vshll.u32 %v1823, 16
      %v1854 = vrot.slane %v1852, 1
      %v1855 = vor.u32 %v1850, %v1854
      %v1857 = vshrl.u32 %v1824, 16
      %v1859 = vshll.u32 %v1824, 16
      %v1861 = vrot.slane %v1859, 1
      %v1862 = vor.u32 %v1857, %v1861
      %v1864 = vshrl.u32 %v1825, 16
      %v1866 = vshll.u32 %v1825, 16
      %v1868 = vrot.slane %v1866, 1
      %v1869 = vor.u32 %v1864, %v1868
      %v1871 = vshrl.u32 %v1826, 16
      %v1873 = vshll.u32 %v1826, 16
      %v1875 = vrot.slane %v1873, 1
      %v1876 = vor.u32 %v1871, %v1875
      %v1878 = vshrl.u32 %v1827, 16
      %v1880 = vshll.u32 %v1827, 16
      %v1882 = vrot.slane %v1880, 1
      %v1883 = vor.u32 %v1878, %v1882
      %1884 = vrot.lane.b32.xlu0 %v1834, 4
      %v1885 = vpop.permute.xlu0 %1884
      %1886 = vrot.lane.b32.xlu0 %v1841, 4
      %v1887 = vpop.permute.xlu0 %1886
      %1888 = vrot.lane.b32.xlu0 %v1848, 4
      %v1889 = vpop.permute.xlu0 %1888
      %1890 = vrot.lane.b32.xlu0 %v1855, 4
      %v1891 = vpop.permute.xlu0 %1890
      %1892 = vrot.lane.b32.xlu0 %v1862, 4
      %v1893 = vpop.permute.xlu0 %1892
      %1894 = vrot.lane.b32.xlu0 %v1869, 4
      %v1895 = vpop.permute.xlu0 %1894
      %1896 = vrot.lane.b32.xlu0 %v1876, 4
      %v1897 = vpop.permute.xlu0 %1896
      %1898 = vrot.lane.b32.xlu0 %v1883, 4
      %v1899 = vpop.permute.xlu0 %1898
      %v1908 = vunpack.c.l.b16 %v507
      %v1909 = vunpack.c.l.b16 %v508
      %v1910 = vunpack.c.l.b16 %v509
      %v1911 = vunpack.c.l.b16 %v510
      %v1912 = vunpack.c.l.b16 %v511
      %v1913 = vunpack.c.l.b16 %v512
      %v1914 = vunpack.c.l.b16 %v513
      %v1915 = vunpack.c.l.b16 %v514
      %v1916 = vpack.c.b16 %v1908, %v1908
      %v1917 = vpack.c.b16 %v1909, %v1909
      %v1918 = vpack.c.b16 %v1910, %v1910
      %v1919 = vpack.c.b16 %v1911, %v1911
      %v1920 = vpack.c.b16 %v1912, %v1912
      %v1921 = vpack.c.b16 %v1913, %v1913
      %v1922 = vpack.c.b16 %v1914, %v1914
      %v1923 = vpack.c.b16 %v1915, %v1915
      %v1925 = vshrl.u32 %v1916, 16
      %v1927 = vrot.slane %v1925, 7
      %v1928 = vshll.u32 %v1916, 16
      %v1930 = vor.u32 %v1927, %v1928
      %v1932 = vshrl.u32 %v1917, 16
      %v1934 = vrot.slane %v1932, 7
      %v1935 = vshll.u32 %v1917, 16
      %v1937 = vor.u32 %v1934, %v1935
      %v1939 = vshrl.u32 %v1918, 16
      %v1941 = vrot.slane %v1939, 7
      %v1942 = vshll.u32 %v1918, 16
      %v1944 = vor.u32 %v1941, %v1942
      %v1946 = vshrl.u32 %v1919, 16
      %v1948 = vrot.slane %v1946, 7
      %v1949 = vshll.u32 %v1919, 16
      %v1951 = vor.u32 %v1948, %v1949
      %v1953 = vshrl.u32 %v1920, 16
      %v1955 = vrot.slane %v1953, 7
      %v1956 = vshll.u32 %v1920, 16
      %v1958 = vor.u32 %v1955, %v1956
      %v1960 = vshrl.u32 %v1921, 16
      %v1962 = vrot.slane %v1960, 7
      %v1963 = vshll.u32 %v1921, 16
      %v1965 = vor.u32 %v1962, %v1963
      %v1967 = vshrl.u32 %v1922, 16
      %v1969 = vrot.slane %v1967, 7
      %v1970 = vshll.u32 %v1922, 16
      %v1972 = vor.u32 %v1969, %v1970
      %v1974 = vshrl.u32 %v1923, 16
      %v1976 = vrot.slane %v1974, 7
      %v1977 = vshll.u32 %v1923, 16
      %v1979 = vor.u32 %v1976, %v1977
      %1980 = vrot.lane.b32.xlu0 %v1930, 8
      %v1981 = vpop.permute.xlu0 %1980
      %1982 = vrot.lane.b32.xlu0 %v1937, 8
      %v1983 = vpop.permute.xlu0 %1982
      %1984 = vrot.lane.b32.xlu0 %v1944, 8
      %v1985 = vpop.permute.xlu0 %1984
      %1986 = vrot.lane.b32.xlu0 %v1951, 8
      %v1987 = vpop.permute.xlu0 %1986
      %1988 = vrot.lane.b32.xlu0 %v1958, 8
      %v1989 = vpop.permute.xlu0 %1988
      %1990 = vrot.lane.b32.xlu0 %v1965, 8
      %v1991 = vpop.permute.xlu0 %1990
      %1992 = vrot.lane.b32.xlu0 %v1972, 8
      %v1993 = vpop.permute.xlu0 %1992
      %1994 = vrot.lane.b32.xlu0 %v1979, 8
      %v1995 = vpop.permute.xlu0 %1994
      %v2004 = vunpack.c.l.b16 %v515
      %v2005 = vunpack.c.l.b16 %v516
      %v2006 = vunpack.c.l.b16 %v517
      %v2007 = vunpack.c.l.b16 %v518
      %v2008 = vunpack.c.l.b16 %v519
      %v2009 = vunpack.c.l.b16 %v520
      %v2010 = vunpack.c.l.b16 %v521
      %v2011 = vunpack.c.l.b16 %v522
      %v2012 = vpack.c.b16 %v2004, %v1908
      %v2013 = vpack.c.b16 %v2005, %v1909
      %v2014 = vpack.c.b16 %v2006, %v1910
      %v2015 = vpack.c.b16 %v2007, %v1911
      %v2016 = vpack.c.b16 %v2008, %v1912
      %v2017 = vpack.c.b16 %v2009, %v1913
      %v2018 = vpack.c.b16 %v2010, %v1914
      %v2019 = vpack.c.b16 %v2011, %v1915
      %2020 = vrot.lane.b32.xlu0 %v2012, 12
      %v2021 = vpop.permute.xlu0 %2020
      %2022 = vrot.lane.b32.xlu0 %v2013, 12
      %v2023 = vpop.permute.xlu0 %2022
      %2024 = vrot.lane.b32.xlu0 %v2014, 12
      %v2025 = vpop.permute.xlu0 %2024
      %2026 = vrot.lane.b32.xlu0 %v2015, 12
      %v2027 = vpop.permute.xlu0 %2026
      %2028 = vrot.lane.b32.xlu0 %v2016, 12
      %v2029 = vpop.permute.xlu0 %2028
      %2030 = vrot.lane.b32.xlu0 %v2017, 12
      %v2031 = vpop.permute.xlu0 %2030
      %2032 = vrot.lane.b32.xlu0 %v2018, 12
      %v2033 = vpop.permute.xlu0 %2032
      %2034 = vrot.lane.b32.xlu0 %v2019, 12
      %v2035 = vpop.permute.xlu0 %2034
      %v2044 = vunpack.c.l.b16 %v523
      %v2045 = vunpack.c.l.b16 %v524
      %v2046 = vunpack.c.l.b16 %v525
      %v2047 = vunpack.c.l.b16 %v526
      %v2048 = vunpack.c.l.b16 %v527
      %v2049 = vunpack.c.l.b16 %v528
      %v2050 = vunpack.c.l.b16 %v529
      %v2051 = vunpack.c.l.b16 %v530
      %v2052 = vpack.c.b16 %v2004, %v2044
      %v2053 = vpack.c.b16 %v2005, %v2045
      %v2054 = vpack.c.b16 %v2006, %v2046
      %v2055 = vpack.c.b16 %v2007, %v2047
      %v2056 = vpack.c.b16 %v2008, %v2048
      %v2057 = vpack.c.b16 %v2009, %v2049
      %v2058 = vpack.c.b16 %v2010, %v2050
      %v2059 = vpack.c.b16 %v2011, %v2051
      %v2061 = vshrl.u32 %v2052, 16
      %v2063 = vshll.u32 %v2052, 16
      %v2065 = vrot.slane %v2063, 1
      %v2066 = vor.u32 %v2061, %v2065
      %v2068 = vshrl.u32 %v2053, 16
      %v2070 = vshll.u32 %v2053, 16
      %v2072 = vrot.slane %v2070, 1
      %v2073 = vor.u32 %v2068, %v2072
      %v2075 = vshrl.u32 %v2054, 16
      %v2077 = vshll.u32 %v2054, 16
      %v2079 = vrot.slane %v2077, 1
      %v2080 = vor.u32 %v2075, %v2079
      %v2082 = vshrl.u32 %v2055, 16
      %v2084 = vshll.u32 %v2055, 16
      %v2086 = vrot.slane %v2084, 1
      %v2087 = vor.u32 %v2082, %v2086
      %v2089 = vshrl.u32 %v2056, 16
      %v2091 = vshll.u32 %v2056, 16
      %v2093 = vrot.slane %v2091, 1
      %v2094 = vor.u32 %v2089, %v2093
      %v2096 = vshrl.u32 %v2057, 16
      %v2098 = vshll.u32 %v2057, 16
      %v2100 = vrot.slane %v2098, 1
      %v2101 = vor.u32 %v2096, %v2100
      %v2103 = vshrl.u32 %v2058, 16
      %v2105 = vshll.u32 %v2058, 16
      %v2107 = vrot.slane %v2105, 1
      %v2108 = vor.u32 %v2103, %v2107
      %v2110 = vshrl.u32 %v2059, 16
      %v2112 = vshll.u32 %v2059, 16
      %v2114 = vrot.slane %v2112, 1
      %v2115 = vor.u32 %v2110, %v2114
      %2116 = vrot.lane.b32.xlu0 %v2066, 16
      %v2117 = vpop.permute.xlu0 %2116
      %2118 = vrot.lane.b32.xlu0 %v2073, 16
      %v2119 = vpop.permute.xlu0 %2118
      %2120 = vrot.lane.b32.xlu0 %v2080, 16
      %v2121 = vpop.permute.xlu0 %2120
      %2122 = vrot.lane.b32.xlu0 %v2087, 16
      %v2123 = vpop.permute.xlu0 %2122
      %2124 = vrot.lane.b32.xlu0 %v2094, 16
      %v2125 = vpop.permute.xlu0 %2124
      %2126 = vrot.lane.b32.xlu0 %v2101, 16
      %v2127 = vpop.permute.xlu0 %2126
      %2128 = vrot.lane.b32.xlu0 %v2108, 16
      %v2129 = vpop.permute.xlu0 %2128
      %2130 = vrot.lane.b32.xlu0 %v2115, 16
      %v2131 = vpop.permute.xlu0 %2130
      %v2140 = vunpack.c.l.b16 %v532
      %v2141 = vunpack.c.l.b16 %v533
      %v2142 = vunpack.c.l.b16 %v534
      %v2143 = vunpack.c.l.b16 %v535
      %v2144 = vunpack.c.l.b16 %v536
      %v2145 = vunpack.c.l.b16 %v537
      %v2146 = vunpack.c.l.b16 %v538
      %v2147 = vunpack.c.l.b16 %v539
      %v2148 = vpack.c.b16 %v2140, %v2140
      %v2149 = vpack.c.b16 %v2141, %v2141
      %v2150 = vpack.c.b16 %v2142, %v2142
      %v2151 = vpack.c.b16 %v2143, %v2143
      %v2152 = vpack.c.b16 %v2144, %v2144
      %v2153 = vpack.c.b16 %v2145, %v2145
      %v2154 = vpack.c.b16 %v2146, %v2146
      %v2155 = vpack.c.b16 %v2147, %v2147
      %v2157 = vshrl.u32 %v2148, 16
      %v2159 = vrot.slane %v2157, 7
      %v2160 = vshll.u32 %v2148, 16
      %v2162 = vor.u32 %v2159, %v2160
      %v2164 = vshrl.u32 %v2149, 16
      %v2166 = vrot.slane %v2164, 7
      %v2167 = vshll.u32 %v2149, 16
      %v2169 = vor.u32 %v2166, %v2167
      %v2171 = vshrl.u32 %v2150, 16
      %v2173 = vrot.slane %v2171, 7
      %v2174 = vshll.u32 %v2150, 16
      %v2176 = vor.u32 %v2173, %v2174
      %v2178 = vshrl.u32 %v2151, 16
      %v2180 = vrot.slane %v2178, 7
      %v2181 = vshll.u32 %v2151, 16
      %v2183 = vor.u32 %v2180, %v2181
      %v2185 = vshrl.u32 %v2152, 16
      %v2187 = vrot.slane %v2185, 7
      %v2188 = vshll.u32 %v2152, 16
      %v2190 = vor.u32 %v2187, %v2188
      %v2192 = vshrl.u32 %v2153, 16
      %v2194 = vrot.slane %v2192, 7
      %v2195 = vshll.u32 %v2153, 16
      %v2197 = vor.u32 %v2194, %v2195
      %v2199 = vshrl.u32 %v2154, 16
      %v2201 = vrot.slane %v2199, 7
      %v2202 = vshll.u32 %v2154, 16
      %v2204 = vor.u32 %v2201, %v2202
      %v2206 = vshrl.u32 %v2155, 16
      %v2208 = vrot.slane %v2206, 7
      %v2209 = vshll.u32 %v2155, 16
      %v2211 = vor.u32 %v2208, %v2209
      %2212 = vrot.lane.b32.xlu0 %v2162, 20
      %v2213 = vpop.permute.xlu0 %2212
      %2214 = vrot.lane.b32.xlu0 %v2169, 20
      %v2215 = vpop.permute.xlu0 %2214
      %2216 = vrot.lane.b32.xlu0 %v2176, 20
      %v2217 = vpop.permute.xlu0 %2216
      %2218 = vrot.lane.b32.xlu0 %v2183, 20
      %v2219 = vpop.permute.xlu0 %2218
      %2220 = vrot.lane.b32.xlu0 %v2190, 20
      %v2221 = vpop.permute.xlu0 %2220
      %2222 = vrot.lane.b32.xlu0 %v2197, 20
      %v2223 = vpop.permute.xlu0 %2222
      %2224 = vrot.lane.b32.xlu0 %v2204, 20
      %v2225 = vpop.permute.xlu0 %2224
      %2226 = vrot.lane.b32.xlu0 %v2211, 20
      %v2227 = vpop.permute.xlu0 %2226
      %v2236 = vunpack.c.l.b16 %v540
      %v2237 = vunpack.c.l.b16 %v541
      %v2238 = vunpack.c.l.b16 %v542
      %v2239 = vunpack.c.l.b16 %v543
      %v2240 = vunpack.c.l.b16 %v544
      %v2241 = vunpack.c.l.b16 %v545
      %v2242 = vunpack.c.l.b16 %v546
      %v2243 = vunpack.c.l.b16 %v547
      %v2244 = vpack.c.b16 %v2236, %v2140
      %v2245 = vpack.c.b16 %v2237, %v2141
      %v2246 = vpack.c.b16 %v2238, %v2142
      %v2247 = vpack.c.b16 %v2239, %v2143
      %v2248 = vpack.c.b16 %v2240, %v2144
      %v2249 = vpack.c.b16 %v2241, %v2145
      %v2250 = vpack.c.b16 %v2242, %v2146
      %v2251 = vpack.c.b16 %v2243, %v2147
      %2252 = vrot.lane.b32.xlu0 %v2244, 24
      %v2253 = vpop.permute.xlu0 %2252
      %2254 = vrot.lane.b32.xlu0 %v2245, 24
      %v2255 = vpop.permute.xlu0 %2254
      %2256 = vrot.lane.b32.xlu0 %v2246, 24
      %v2257 = vpop.permute.xlu0 %2256
      %2258 = vrot.lane.b32.xlu0 %v2247, 24
      %v2259 = vpop.permute.xlu0 %2258
      %2260 = vrot.lane.b32.xlu0 %v2248, 24
      %v2261 = vpop.permute.xlu0 %2260
      %2262 = vrot.lane.b32.xlu0 %v2249, 24
      %v2263 = vpop.permute.xlu0 %2262
      %2264 = vrot.lane.b32.xlu0 %v2250, 24
      %v2265 = vpop.permute.xlu0 %2264
      %2266 = vrot.lane.b32.xlu0 %v2251, 24
      %v2267 = vpop.permute.xlu0 %2266
      %v2276 = vunpack.c.l.b16 %v548
      %v2277 = vunpack.c.l.b16 %v549
      %v2278 = vunpack.c.l.b16 %v550
      %v2279 = vunpack.c.l.b16 %v551
      %v2280 = vunpack.c.l.b16 %v552
      %v2281 = vunpack.c.l.b16 %v553
      %v2282 = vunpack.c.l.b16 %v554
      %v2283 = vunpack.c.l.b16 %v555
      %v2284 = vpack.c.b16 %v2236, %v2276
      %v2285 = vpack.c.b16 %v2237, %v2277
      %v2286 = vpack.c.b16 %v2238, %v2278
      %v2287 = vpack.c.b16 %v2239, %v2279
      %v2288 = vpack.c.b16 %v2240, %v2280
      %v2289 = vpack.c.b16 %v2241, %v2281
      %v2290 = vpack.c.b16 %v2242, %v2282
      %v2291 = vpack.c.b16 %v2243, %v2283
      %v2293 = vshrl.u32 %v2284, 16
      %v2295 = vshll.u32 %v2284, 16
      %v2297 = vrot.slane %v2295, 1
      %v2298 = vor.u32 %v2293, %v2297
      %v2300 = vshrl.u32 %v2285, 16
      %v2302 = vshll.u32 %v2285, 16
      %v2304 = vrot.slane %v2302, 1
      %v2305 = vor.u32 %v2300, %v2304
      %v2307 = vshrl.u32 %v2286, 16
      %v2309 = vshll.u32 %v2286, 16
      %v2311 = vrot.slane %v2309, 1
      %v2312 = vor.u32 %v2307, %v2311
      %v2314 = vshrl.u32 %v2287, 16
      %v2316 = vshll.u32 %v2287, 16
      %v2318 = vrot.slane %v2316, 1
      %v2319 = vor.u32 %v2314, %v2318
      %v2321 = vshrl.u32 %v2288, 16
      %v2323 = vshll.u32 %v2288, 16
      %v2325 = vrot.slane %v2323, 1
      %v2326 = vor.u32 %v2321, %v2325
      %v2328 = vshrl.u32 %v2289, 16
      %v2330 = vshll.u32 %v2289, 16
      %v2332 = vrot.slane %v2330, 1
      %v2333 = vor.u32 %v2328, %v2332
      %v2335 = vshrl.u32 %v2290, 16
      %v2337 = vshll.u32 %v2290, 16
      %v2339 = vrot.slane %v2337, 1
      %v2340 = vor.u32 %v2335, %v2339
      %v2342 = vshrl.u32 %v2291, 16
      %v2344 = vshll.u32 %v2291, 16
      %v2346 = vrot.slane %v2344, 1
      %v2347 = vor.u32 %v2342, %v2346
      %2348 = vrot.lane.b32.xlu0 %v2298, 28
      %v2349 = vpop.permute.xlu0 %2348
      %2350 = vrot.lane.b32.xlu0 %v2305, 28
      %v2351 = vpop.permute.xlu0 %2350
      %2352 = vrot.lane.b32.xlu0 %v2312, 28
      %v2353 = vpop.permute.xlu0 %2352
      %2354 = vrot.lane.b32.xlu0 %v2319, 28
      %v2355 = vpop.permute.xlu0 %2354
      %2356 = vrot.lane.b32.xlu0 %v2326, 28
      %v2357 = vpop.permute.xlu0 %2356
      %2358 = vrot.lane.b32.xlu0 %v2333, 28
      %v2359 = vpop.permute.xlu0 %2358
      %2360 = vrot.lane.b32.xlu0 %v2340, 28
      %v2361 = vpop.permute.xlu0 %2360
      %2362 = vrot.lane.b32.xlu0 %v2347, 28
      %v2363 = vpop.permute.xlu0 %2362
      %v2372 = vunpack.c.l.b16 %v557
      %v2373 = vunpack.c.l.b16 %v558
      %v2374 = vunpack.c.l.b16 %v559
      %v2375 = vunpack.c.l.b16 %v560
      %v2376 = vunpack.c.l.b16 %v561
      %v2377 = vunpack.c.l.b16 %v562
      %v2378 = vunpack.c.l.b16 %v563
      %v2379 = vunpack.c.l.b16 %v564
      %v2380 = vpack.c.b16 %v2372, %v2372
      %v2381 = vpack.c.b16 %v2373, %v2373
      %v2382 = vpack.c.b16 %v2374, %v2374
      %v2383 = vpack.c.b16 %v2375, %v2375
      %v2384 = vpack.c.b16 %v2376, %v2376
      %v2385 = vpack.c.b16 %v2377, %v2377
      %v2386 = vpack.c.b16 %v2378, %v2378
      %v2387 = vpack.c.b16 %v2379, %v2379
      %v2389 = vshrl.u32 %v2380, 16
      %v2391 = vrot.slane %v2389, 7
      %v2392 = vshll.u32 %v2380, 16
      %v2394 = vor.u32 %v2391, %v2392
      %v2396 = vshrl.u32 %v2381, 16
      %v2398 = vrot.slane %v2396, 7
      %v2399 = vshll.u32 %v2381, 16
      %v2401 = vor.u32 %v2398, %v2399
      %v2403 = vshrl.u32 %v2382, 16
      %v2405 = vrot.slane %v2403, 7
      %v2406 = vshll.u32 %v2382, 16
      %v2408 = vor.u32 %v2405, %v2406
      %v2410 = vshrl.u32 %v2383, 16
      %v2412 = vrot.slane %v2410, 7
      %v2413 = vshll.u32 %v2383, 16
      %v2415 = vor.u32 %v2412, %v2413
      %v2417 = vshrl.u32 %v2384, 16
      %v2419 = vrot.slane %v2417, 7
      %v2420 = vshll.u32 %v2384, 16
      %v2422 = vor.u32 %v2419, %v2420
      %v2424 = vshrl.u32 %v2385, 16
      %v2426 = vrot.slane %v2424, 7
      %v2427 = vshll.u32 %v2385, 16
      %v2429 = vor.u32 %v2426, %v2427
      %v2431 = vshrl.u32 %v2386, 16
      %v2433 = vrot.slane %v2431, 7
      %v2434 = vshll.u32 %v2386, 16
      %v2436 = vor.u32 %v2433, %v2434
      %v2438 = vshrl.u32 %v2387, 16
      %v2440 = vrot.slane %v2438, 7
      %v2441 = vshll.u32 %v2387, 16
      %v2443 = vor.u32 %v2440, %v2441
      %2444 = vrot.lane.b32.xlu0 %v2394, 32
      %v2445 = vpop.permute.xlu0 %2444
      %2446 = vrot.lane.b32.xlu0 %v2401, 32
      %v2447 = vpop.permute.xlu0 %2446
      %2448 = vrot.lane.b32.xlu0 %v2408, 32
      %v2449 = vpop.permute.xlu0 %2448
      %2450 = vrot.lane.b32.xlu0 %v2415, 32
      %v2451 = vpop.permute.xlu0 %2450
      %2452 = vrot.lane.b32.xlu0 %v2422, 32
      %v2453 = vpop.permute.xlu0 %2452
      %2454 = vrot.lane.b32.xlu0 %v2429, 32
      %v2455 = vpop.permute.xlu0 %2454
      %2456 = vrot.lane.b32.xlu0 %v2436, 32
      %v2457 = vpop.permute.xlu0 %2456
      %2458 = vrot.lane.b32.xlu0 %v2443, 32
      %v2459 = vpop.permute.xlu0 %2458
      %v2468 = vunpack.c.l.b16 %v565
      %v2469 = vunpack.c.l.b16 %v566
      %v2470 = vunpack.c.l.b16 %v567
      %v2471 = vunpack.c.l.b16 %v568
      %v2472 = vunpack.c.l.b16 %v569
      %v2473 = vunpack.c.l.b16 %v570
      %v2474 = vunpack.c.l.b16 %v571
      %v2475 = vunpack.c.l.b16 %v572
      %v2476 = vpack.c.b16 %v2468, %v2372
      %v2477 = vpack.c.b16 %v2469, %v2373
      %v2478 = vpack.c.b16 %v2470, %v2374
      %v2479 = vpack.c.b16 %v2471, %v2375
      %v2480 = vpack.c.b16 %v2472, %v2376
      %v2481 = vpack.c.b16 %v2473, %v2377
      %v2482 = vpack.c.b16 %v2474, %v2378
      %v2483 = vpack.c.b16 %v2475, %v2379
      %2484 = vrot.lane.b32.xlu0 %v2476, 36
      %v2485 = vpop.permute.xlu0 %2484
      %2486 = vrot.lane.b32.xlu0 %v2477, 36
      %v2487 = vpop.permute.xlu0 %2486
      %2488 = vrot.lane.b32.xlu0 %v2478, 36
      %v2489 = vpop.permute.xlu0 %2488
      %2490 = vrot.lane.b32.xlu0 %v2479, 36
      %v2491 = vpop.permute.xlu0 %2490
      %2492 = vrot.lane.b32.xlu0 %v2480, 36
      %v2493 = vpop.permute.xlu0 %2492
      %2494 = vrot.lane.b32.xlu0 %v2481, 36
      %v2495 = vpop.permute.xlu0 %2494
      %2496 = vrot.lane.b32.xlu0 %v2482, 36
      %v2497 = vpop.permute.xlu0 %2496
      %2498 = vrot.lane.b32.xlu0 %v2483, 36
      %v2499 = vpop.permute.xlu0 %2498
      %v2508 = vunpack.c.l.b16 %v573
      %v2509 = vunpack.c.l.b16 %v574
      %v2510 = vunpack.c.l.b16 %v575
      %v2511 = vunpack.c.l.b16 %v576
      %v2512 = vunpack.c.l.b16 %v577
      %v2513 = vunpack.c.l.b16 %v578
      %v2514 = vunpack.c.l.b16 %v579
      %v2515 = vunpack.c.l.b16 %v580
      %v2516 = vpack.c.b16 %v2468, %v2508
      %v2517 = vpack.c.b16 %v2469, %v2509
      %v2518 = vpack.c.b16 %v2470, %v2510
      %v2519 = vpack.c.b16 %v2471, %v2511
      %v2520 = vpack.c.b16 %v2472, %v2512
      %v2521 = vpack.c.b16 %v2473, %v2513
      %v2522 = vpack.c.b16 %v2474, %v2514
      %v2523 = vpack.c.b16 %v2475, %v2515
      %v2525 = vshrl.u32 %v2516, 16
      %v2527 = vshll.u32 %v2516, 16
      %v2529 = vrot.slane %v2527, 1
      %v2530 = vor.u32 %v2525, %v2529
      %v2532 = vshrl.u32 %v2517, 16
      %v2534 = vshll.u32 %v2517, 16
      %v2536 = vrot.slane %v2534, 1
      %v2537 = vor.u32 %v2532, %v2536
      %v2539 = vshrl.u32 %v2518, 16
      %v2541 = vshll.u32 %v2518, 16
      %v2543 = vrot.slane %v2541, 1
      %v2544 = vor.u32 %v2539, %v2543
      %v2546 = vshrl.u32 %v2519, 16
      %v2548 = vshll.u32 %v2519, 16
      %v2550 = vrot.slane %v2548, 1
      %v2551 = vor.u32 %v2546, %v2550
      %v2553 = vshrl.u32 %v2520, 16
      %v2555 = vshll.u32 %v2520, 16
      %v2557 = vrot.slane %v2555, 1
      %v2558 = vor.u32 %v2553, %v2557
      %v2560 = vshrl.u32 %v2521, 16
      %v2562 = vshll.u32 %v2521, 16
      %v2564 = vrot.slane %v2562, 1
      %v2565 = vor.u32 %v2560, %v2564
      %v2567 = vshrl.u32 %v2522, 16
      %v2569 = vshll.u32 %v2522, 16
      %v2571 = vrot.slane %v2569, 1
      %v2572 = vor.u32 %v2567, %v2571
      %v2574 = vshrl.u32 %v2523, 16
      %v2576 = vshll.u32 %v2523, 16
      %v2578 = vrot.slane %v2576, 1
      %v2579 = vor.u32 %v2574, %v2578
      %2580 = vrot.lane.b32.xlu0 %v2530, 40
      %v2581 = vpop.permute.xlu0 %2580
      %2582 = vrot.lane.b32.xlu0 %v2537, 40
      %v2583 = vpop.permute.xlu0 %2582
      %2584 = vrot.lane.b32.xlu0 %v2544, 40
      %v2585 = vpop.permute.xlu0 %2584
      %2586 = vrot.lane.b32.xlu0 %v2551, 40
      %v2587 = vpop.permute.xlu0 %2586
      %2588 = vrot.lane.b32.xlu0 %v2558, 40
      %v2589 = vpop.permute.xlu0 %2588
      %2590 = vrot.lane.b32.xlu0 %v2565, 40
      %v2591 = vpop.permute.xlu0 %2590
      %2592 = vrot.lane.b32.xlu0 %v2572, 40
      %v2593 = vpop.permute.xlu0 %2592
      %2594 = vrot.lane.b32.xlu0 %v2579, 40
      %v2595 = vpop.permute.xlu0 %2594
      %v2598 = vsel %vm1517, %v1796, %v1885
      %v2601 = vsel %vm1517, %v1797, %v1887
      %v2604 = vsel %vm1517, %v1798, %v1889
      %v2607 = vsel %vm1517, %v1799, %v1891
      %v2610 = vsel %vm1517, %v1800, %v1893
      %v2613 = vsel %vm1517, %v1801, %v1895
      %v2616 = vsel %vm1517, %v1802, %v1897
      %v2619 = vsel %vm1517, %v1803, %v1899
      %v2621 = vsel %vm1542, %v2598, %v1981
      %v2623 = vsel %vm1542, %v2601, %v1983
      %v2625 = vsel %vm1542, %v2604, %v1985
      %v2627 = vsel %vm1542, %v2607, %v1987
      %v2629 = vsel %vm1542, %v2610, %v1989
      %v2631 = vsel %vm1542, %v2613, %v1991
      %v2633 = vsel %vm1542, %v2616, %v1993
      %v2635 = vsel %vm1542, %v2619, %v1995
      %v2637 = vsel %vm1559, %v2621, %v2021
      %v2639 = vsel %vm1559, %v2623, %v2023
      %v2641 = vsel %vm1559, %v2625, %v2025
      %v2643 = vsel %vm1559, %v2627, %v2027
      %v2645 = vsel %vm1559, %v2629, %v2029
      %v2647 = vsel %vm1559, %v2631, %v2031
      %v2649 = vsel %vm1559, %v2633, %v2033
      %v2651 = vsel %vm1559, %v2635, %v2035
      %v2653 = vsel %vm1576, %v2637, %v2117
      %v2655 = vsel %vm1576, %v2639, %v2119
      %v2657 = vsel %vm1576, %v2641, %v2121
      %v2659 = vsel %vm1576, %v2643, %v2123
      %v2661 = vsel %vm1576, %v2645, %v2125
      %v2663 = vsel %vm1576, %v2647, %v2127
      %v2665 = vsel %vm1576, %v2649, %v2129
      %v2667 = vsel %vm1576, %v2651, %v2131
      %v2669 = vsel %vm1593, %v2653, %v2213
      %v2671 = vsel %vm1593, %v2655, %v2215
      %v2673 = vsel %vm1593, %v2657, %v2217
      %v2675 = vsel %vm1593, %v2659, %v2219
      %v2677 = vsel %vm1593, %v2661, %v2221
      %v2679 = vsel %vm1593, %v2663, %v2223
      %v2681 = vsel %vm1593, %v2665, %v2225
      %v2683 = vsel %vm1593, %v2667, %v2227
      %v2685 = vsel %vm1610, %v2669, %v2253
      %v2687 = vsel %vm1610, %v2671, %v2255
      %v2689 = vsel %vm1610, %v2673, %v2257
      %v2691 = vsel %vm1610, %v2675, %v2259
      %v2693 = vsel %vm1610, %v2677, %v2261
      %v2695 = vsel %vm1610, %v2679, %v2263
      %v2697 = vsel %vm1610, %v2681, %v2265
      %v2699 = vsel %vm1610, %v2683, %v2267
      %v2701 = vsel %vm1627, %v2685, %v2349
      %v2703 = vsel %vm1627, %v2687, %v2351
      %v2705 = vsel %vm1627, %v2689, %v2353
      %v2707 = vsel %vm1627, %v2691, %v2355
      %v2709 = vsel %vm1627, %v2693, %v2357
      %v2711 = vsel %vm1627, %v2695, %v2359
      %v2713 = vsel %vm1627, %v2697, %v2361
      %v2715 = vsel %vm1627, %v2699, %v2363
      %v2717 = vsel %vm1644, %v2701, %v2445
      %v2719 = vsel %vm1644, %v2703, %v2447
      %v2721 = vsel %vm1644, %v2705, %v2449
      %v2723 = vsel %vm1644, %v2707, %v2451
      %v2725 = vsel %vm1644, %v2709, %v2453
      %v2727 = vsel %vm1644, %v2711, %v2455
      %v2729 = vsel %vm1644, %v2713, %v2457
      %v2731 = vsel %vm1644, %v2715, %v2459
      %v2733 = vsel %vm1661, %v2717, %v2485
      %v2735 = vsel %vm1661, %v2719, %v2487
      %v2737 = vsel %vm1661, %v2721, %v2489
      %v2739 = vsel %vm1661, %v2723, %v2491
      %v2741 = vsel %vm1661, %v2725, %v2493
      %v2743 = vsel %vm1661, %v2727, %v2495
      %v2745 = vsel %vm1661, %v2729, %v2497
      %v2747 = vsel %vm1661, %v2731, %v2499
      %v2749 = vsel %vm1678, %v2733, %v2581
      %v2751 = vsel %vm1678, %v2735, %v2583
      %v2753 = vsel %vm1678, %v2737, %v2585
      %v2755 = vsel %vm1678, %v2739, %v2587
      %v2757 = vsel %vm1678, %v2741, %v2589
      %v2759 = vsel %vm1678, %v2743, %v2591
      %v2761 = vsel %vm1678, %v2745, %v2593
      %v2763 = vsel %vm1678, %v2747, %v2595
      %v2764 = vshrl.u32 %v2749, 16
      %v2766 = vshll.u32 %v2749, 16
      %v2768 = vrot.slane %v2766, 1
      %v2769 = vor.u32 %v2764, %v2768
      %v2770 = vshrl.u32 %v2751, 16
      %v2772 = vshll.u32 %v2751, 16
      %v2774 = vrot.slane %v2772, 1
      %v2775 = vor.u32 %v2770, %v2774
      %v2776 = vshrl.u32 %v2753, 16
      %v2778 = vshll.u32 %v2753, 16
      %v2780 = vrot.slane %v2778, 1
      %v2781 = vor.u32 %v2776, %v2780
      %v2782 = vshrl.u32 %v2755, 16
      %v2784 = vshll.u32 %v2755, 16
      %v2786 = vrot.slane %v2784, 1
      %v2787 = vor.u32 %v2782, %v2786
      %v2788 = vshrl.u32 %v2757, 16
      %v2790 = vshll.u32 %v2757, 16
      %v2792 = vrot.slane %v2790, 1
      %v2793 = vor.u32 %v2788, %v2792
      %v2794 = vshrl.u32 %v2759, 16
      %v2796 = vshll.u32 %v2759, 16
      %v2798 = vrot.slane %v2796, 1
      %v2799 = vor.u32 %v2794, %v2798
      %v2800 = vshrl.u32 %v2761, 16
      %v2802 = vshll.u32 %v2761, 16
      %v2804 = vrot.slane %v2802, 1
      %v2805 = vor.u32 %v2800, %v2804
      %v2806 = vshrl.u32 %v2763, 16
      %v2808 = vshll.u32 %v2763, 16
      %v2810 = vrot.slane %v2808, 1
      %v2811 = vor.u32 %v2806, %v2810
      %2812 = vrot.lane.b32.xlu0 %v2769, 64
      %v2813 = vpop.permute.xlu0 %2812
      %2814 = vrot.lane.b32.xlu0 %v2775, 64
      %v2815 = vpop.permute.xlu0 %2814
      %2816 = vrot.lane.b32.xlu0 %v2781, 64
      %v2817 = vpop.permute.xlu0 %2816
      %2818 = vrot.lane.b32.xlu0 %v2787, 64
      %v2819 = vpop.permute.xlu0 %2818
      %2820 = vrot.lane.b32.xlu0 %v2793, 64
      %v2821 = vpop.permute.xlu0 %2820
      %2822 = vrot.lane.b32.xlu0 %v2799, 64
      %v2823 = vpop.permute.xlu0 %2822
      %2824 = vrot.lane.b32.xlu0 %v2805, 64
      %v2825 = vpop.permute.xlu0 %2824
      %2826 = vrot.lane.b32.xlu0 %v2811, 64
      %v2827 = vpop.permute.xlu0 %2826
      %vm2828 = vcmask 523264
      %v2830 = vsel %vm2828, %v1765, %v2813
      %v2832 = vsel %vm2828, %v1767, %v2815
      %v2834 = vsel %vm2828, %v1769, %v2817
      %v2836 = vsel %vm2828, %v1771, %v2819
      %v2838 = vsel %vm2828, %v1773, %v2821
      %v2840 = vsel %vm2828, %v1775, %v2823
      %v2842 = vsel %vm2828, %v1777, %v2825
      %v2844 = vsel %vm2828, %v1779, %v2827
      %v2846 = vlaneseq
      %v2847 = vshrl.u32 %v2846, 7
      %v2848 = vsub.s32 0, %v2847
      %v2849 = vrot.slane %v358, %v2848
      %v2859 = vunpack.c.l.b16 %v2830
      %v2860 = vunpack.c.l.b16 %v2832
      %v2861 = vunpack.c.l.b16 %v2834
      %v2862 = vunpack.c.l.b16 %v2836
      %v2863 = vunpack.c.l.b16 %v2838
      %v2864 = vunpack.c.l.b16 %v2840
      %v2865 = vunpack.c.l.b16 %v2842
      %v2866 = vunpack.c.l.b16 %v2844
      %v2867 = vpack.c.b16 %v2860, %v2859
      %v2868 = vpack.c.b16 %v2862, %v2861
      %v2869 = vpack.c.b16 %v2864, %v2863
      %v2870 = vpack.c.b16 %v2866, %v2865
      %v2885 = vunpack.c.l.b16 %v344
      %v2886 = vunpack.c.l.b16 %v345
      %v2887 = vunpack.c.l.b16 %v346
      %v2888 = vunpack.c.l.b16 %v347
      %v2889 = vunpack.c.l.b16 %v348
      %v2890 = vunpack.c.l.b16 %v349
      %v2891 = vunpack.c.l.b16 %v350
      %v2892 = vunpack.c.l.b16 %v351
      %v2893 = vunpack.c.l.b16 %v352
      %v2894 = vunpack.c.l.b16 %v353
      %v2895 = vunpack.c.l.b16 %v354
      %v2896 = vunpack.c.l.b16 %v355
      %v2897 = vunpack.c.l.b16 %v356
      %v2898 = vunpack.c.l.b16 %v357
      %v2899 = vpack.c.b16 %v2886, %v2885
      %v2900 = vpack.c.b16 %v2888, %v2887
      %v2901 = vpack.c.b16 %v2890, %v2889
      %v2902 = vpack.c.b16 %v2892, %v2891
      %v2903 = vpack.c.b16 %v2894, %v2893
      %v2904 = vpack.c.b16 %v2896, %v2895
      %v2905 = vpack.c.b16 %v2898, %v2897
      %vm2912 = vcmask 883712
      %v2914 = vsel %vm2912, %v2867, 0
      %v2917 = vsel %vm2912, %v2868, 0
      %v2920 = vsel %vm2912, %v2869, 0
      %v2923 = vsel %vm2912, %v2870, 0
      %vm2925 = vcmask 1045504
      %v2927 = vsel %vm2925, %v2905, 0
      %2929 = vmatprep.subr.bf16.mxu0 0
      %2930 = vmatpush1.bf16.msra.mxu0 %v2899
      %2931 = vmatprep.subr.bf16.mxu0 0
      %2932 = vmatpush1.bf16.msra.mxu0 %v2900
      %2933 = vmatprep.subr.bf16.mxu0 0
      %2934 = vmatpush1.bf16.msra.mxu0 %v2901
      %2935 = vmatprep.subr.bf16.mxu0 0
      %2936 = vmatpush1.bf16.msra.mxu0 %v2902
      %2937 = vmatprep.subr.bf16.mxu0 0
      %2938 = vmatpush1.bf16.msra.mxu0 %v2903
      %2939 = vmatprep.subr.bf16.mxu0 0
      %2940 = vmatpush1.bf16.msra.mxu0 %v2904
      %2941 = vmatprep.subr.bf16.mxu0 0
      %2942 = vmatpush1.bf16.msra.mxu0 %v2927
      %2943 = vmatprep.subr.bf16.mxu0 0
      %2944 = vmatpush1.bf16.msra.mxu0 0
      %2945 = vmatprep.subr.bf16.mxu0 0
      %2946 = vmatpush1.bf16.msra.mxu0 0
      %2947 = vmatprep.subr.bf16.mxu0 0
      %2948 = vmatpush1.bf16.msra.mxu0 0
      %2949 = vmatprep.subr.bf16.mxu0 0
      %2950 = vmatpush1.bf16.msra.mxu0 0
      %2951 = vmatprep.subr.bf16.mxu0 0
      %2952 = vmatpush1.bf16.msra.mxu0 0
      %2953 = vmatprep.subr.bf16.mxu0 0
      %2954 = vmatpush1.bf16.msra.mxu0 0
      %2955 = vmatprep.subr.bf16.mxu0 0
      %2956 = vmatpush1.bf16.msra.mxu0 0
      %2957 = vmatprep.subr.bf16.mxu0 0
      %2958 = vmatpush1.bf16.msra.mxu0 0
      %2959 = vmatprep.subr.bf16.mxu0 0
      %2960 = vmatpush1.bf16.msra.mxu0 0
      %2961 = vmatprep.mubr.bf16.mxu0 0
      %2962 = vmatmul.mubr.bf16.gmra.mrb[0].mxu0 %v2914
      %v2963 = vpop.f32.mrb[0].mxu0
      %v2964 = vadd.f32 %v2849, %v2963
      %v2965 = vpop.f32.mrb[0].mxu0
      %v2966 = vpop.f32.mrb[0].mxu0
      %v2967 = vadd.f32 %v2849, %v2966
      %v2968 = vpop.f32.mrb[0].mxu0
      %2969 = vmatprep.mubr.bf16.mxu0 0
      %2970 = vmatmul.mubr.bf16.gmra.mrb[0].mxu0 %v2917
      %v2971 = vpop.f32.mrb[0].mxu0
      %v2972 = vadd.f32 %v2849, %v2971
      %v2973 = vpop.f32.mrb[0].mxu0
      %v2974 = vpop.f32.mrb[0].mxu0
      %v2975 = vadd.f32 %v2849, %v2974
      %v2976 = vpop.f32.mrb[0].mxu0
      %2977 = vmatprep.mubr.bf16.mxu0 0
      %2978 = vmatmul.mubr.bf16.gmra.mrb[0].mxu0 %v2920
      %v2979 = vpop.f32.mrb[0].mxu0
      %v2980 = vadd.f32 %v2849, %v2979
      %v2981 = vpop.f32.mrb[0].mxu0
      %v2982 = vpop.f32.mrb[0].mxu0
      %v2983 = vadd.f32 %v2849, %v2982
      %v2984 = vpop.f32.mrb[0].mxu0
      %2985 = vmatprep.mubr.bf16.mxu0 0
      %2986 = vmatmul.mubr.bf16.gmra.mrb[0].mxu0 %v2923
      %v2987 = vpop.f32.mrb[0].mxu0
      %v2988 = vadd.f32 %v2849, %v2987
      %v2989 = vpop.f32.mrb[0].mxu0
      %v2990 = vpop.f32.mrb[0].mxu0
      %v2991 = vadd.f32 %v2849, %v2990
      %v2992 = vpop.f32.mrb[0].mxu0
      %2993 = vdwg.mxu0
      %2994 = vst [vmem:[%s342] sm:$0xff] %v2964
      %2995 = vst [vmem:[%s342 + $0x8] sm:$0xff] %v2967
      %2996 = vst [vmem:[%s342 + $0x10] sm:$0xff] %v2972
      %2997 = vst [vmem:[%s342 + $0x18] sm:$0xff] %v2975
      %2998 = vst [vmem:[%s342 + $0x20] sm:$0xff] %v2980
      %2999 = vst [vmem:[%s342 + $0x28] sm:$0xff] %v2983
      %3000 = vst [vmem:[%s342 + $0x30] sm:$0xff] %v2988
      %3001 = vst [vmem:[%s342 + $0x38] sm:$0xff] %v2991
      %p3002 = scmp.lt.s32.totalorder %s20, 1
      %s3003 = scalar_select %p3002, %s20, 1
      %p3004 = scmp.lt.s32.totalorder %s21, 7
      %s3005 = scalar_select %p3004, %s21, 7
      %s3006 = smul.addr %s3005, 8
      %s3007 = smul.addr %s3003, 64
      %s3008 = sadd.s32 %s3006, %s3007
      %s3009 = smul.addr %s3008, 8
      %s3010 = scalar_lea.vmem %s5, %s3009
      // Predicated region
      $region41: #{convd_forward.3} parent=39 // pred_check
        %p3011 = pneg %p178
      $region42: #{convd_forward.3} parent=39 // pred_check_branch
        %3013 = sbr.rel (%p3011) target = $region44
      $region43: #{convd_forward.3} parent=39 // pred_region
        _
      $region44: #{convd_forward.3} parent=39 // pred_fallthru
        _
    $region40: #{convd_forward.3} parent=5 // pred_fallthru
      _
    %p3014 = scmp.le.s32.totalorder 2, %s11
    // Predicated region
    $region45: #{convd_forward.3} parent=5 // pred_check
      %p3015 = pneg %p3014
    $region46: #{convd_forward.3} parent=5 // pred_check_branch
      %3017 = sbr.rel (%p3015) target = $region48
    $region47: #{convd_forward.3} parent=5 // pred_region
      %s3018 = ssub.s32 %s11, 2
      // Predicated region
      $region49: #{convd_forward.3} parent=47 // pred_check
        %p3019 = pneg %p184
      $region50: #{convd_forward.3} parent=47 // pred_check_branch
        %3021 = sbr.rel (%p3019) target = $region52
      $region51: #{convd_forward.3} parent=47 // pred_region
        %p3022 = scmp.lt.s32.totalorder %s22, 1
        %s3023 = scalar_select %p3022, %s22, 1
        %p3024 = scmp.lt.s32.totalorder %s23, 7
        %s3025 = scalar_select %p3024, %s23, 7
        %s3026 = smul.addr %s3025, 8
        %s3027 = smul.addr %s3023, 64
        %s3028 = sadd.s32 %s3026, %s3027
        %s3029 = smul.addr %s3028, 8
        %s3030 = scalar_lea.vmem %s5, %s3029
      $region52: #{convd_forward.3} parent=47 // pred_fallthru
        _
    $region48: #{convd_forward.3} parent=5 // pred_fallthru
      _
  $region6: #{convd_forward.3} parent=0 // loop_footer
    %s15 = sadd.s32 1, %s11
  $region7: #{convd_forward.3} parent=0 // loop_footer_branch
    %10 = sbr.rel target = $region3
  $region8: #{convd_forward.3} parent=0 // loop_exit
    _

// kernel: convd_forward.4
$region0: #{convd_forward.4}
  #allocation0 [shape = 'u32[]', space=smem, size = 0x4, offset = 0x4, fixed_abs, tag = 'smem constant byte address 0x4 - core index']
  #allocation1 [shape = 'u32[144,128]{1,0:T(1,128)}', space=vmem, size = 0x12000, scoped, tag = 'internal scratch']
  %s0 = inlined_call_operand.vmem [shape: bf16[2,10,10,10,16], index: 0, kind: input, shape index: {}, may-alias: {0,1,2}]
  %s1 = inlined_call_operand.vmem [shape: bf16[2,10,10,10,16], index: 1, kind: input, shape index: {}, may-alias: {0,1,2}]
  %s2 = inlined_call_operand.vmem [shape: bf16[2,10,10,10,16], index: 2, kind: input, shape index: {}, may-alias: {0,1,2}]
  %s3 = inlined_call_operand.vmem [shape: bf16[432,128], index: 3, kind: input, shape index: {}]
  %s4 = inlined_call_operand.vmem [shape: f32[1,128], index: 4, kind: input, shape index: {}]
  %s5 = inlined_call_operand.vmem [shape: f32[2,8,64,128], index: 5, kind: output, shape index: {}]
  %s6 = sld [smem:[#allocation0]]
  $region53: #{convd_forward.4} parent=0
    _
  %s8 = ssub.s32 1, %s6
  %s9 = scalar_select 0, %s8, %s6
  loop: start=0, step=1, limit=18
  $region2: #{convd_forward.4} parent=0 // loop_pre_header
    _
  $region3: #{convd_forward.4} parent=0 // loop_header
    %s11 = sphi 0, %s15
    %p12 = scmp.ge.s32.totalorder %s11, 18
    %s18 = sphi 0, %s30
    %s19 = sphi 0, %s26
    %s20 = sphi 0, %s18
    %s21 = sphi 0, %s19
    %s22 = sphi 0, %s20
    %s23 = sphi 0, %s21
    %s35 = sphi 0, %s37
    %s38 = sphi 0, %s35
    %s39 = sphi 0, %s38
    %s55 = sphi 0, %s39
    %s65 = sphi 0, %s67
    %s68 = sphi 0, %s65
    %s69 = sphi 0, %s68
    %s85 = sphi 0, %s69
    %s95 = sphi 0, %s97
    %s98 = sphi 0, %s95
    %s99 = sphi 0, %s98
    %s115 = sphi 0, %s99
    %s119 = sphi 0, %s119
    %s121 = sphi 0, %s119
    %s122 = sphi 0, %s121
    %s136 = sphi 0, %s122
    %s140 = sphi 0, %s140
    %s142 = sphi 0, %s140
    %s143 = sphi 0, %s142
    %s157 = sphi 0, %s143
    %s165 = sphi 0, %s167
    %s168 = sphi 0, %s165
    %s169 = sphi 0, %s168
    %s185 = sphi 0, %s169
  $region4: #{convd_forward.4} parent=0 // loop_header_branch
    %14 = sbr.rel (%p12) target = $region8
  $region5: #{convd_forward.4} parent=0 // loop_body
    %s16 = ssub.s32 %s11, 1
    %s17 = ssub.s32 %s11, 2
    %s24 = sadd.s32 1, %s19
    %p25 = scmp.ge.s32.totalorder %s24, 8
    %s26 = scalar_select %p25, 0, %s24
    %s27 = sadd.s32 1, %s18
    %s28 = scalar_select %p25, %s27, %s18
    %p29 = scmp.ge.s32.totalorder %s28, 2
    %s30 = scalar_select %p29, 0, %s28
    %s31 = ssub.s32 %s18, %s30
    %s32 = ssub.s32 %s19, %s26
    %s33 = sor.u32 %s31, %s32
    %p34 = scmp.eq.s32.totalorder %s33, 0
    %s36 = sadd.s32 %s35, 1
    %s37 = scalar_select %p34, %s35, %s36
    %p40 = pneg %p34
    %p41 = scmp.eq.s32.totalorder %s11, 15
    %p42 = por %p40, %p41
    %p43 = scmp.ne.s32.totalorder %s35, %s38
    %p44 = scmp.eq.s32.totalorder %s11, 0
    %p45 = por %p43, %p44
    %p46 = scmp.ne.s32.totalorder %s35, %s38
    %p47 = scmp.eq.s32.totalorder %s16, 15
    %p48 = por %p46, %p47
    %p49 = scmp.ne.s32.totalorder %s38, %s39
    %p50 = scmp.eq.s32.totalorder %s16, 0
    %p51 = por %p49, %p50
    %p52 = scmp.ne.s32.totalorder %s38, %s39
    %p53 = scmp.eq.s32.totalorder %s17, 15
    %p54 = por %p52, %p53
    %p56 = scmp.ne.s32.totalorder %s39, %s55
    %p57 = scmp.eq.s32.totalorder %s17, 0
    %p58 = por %p56, %p57
    %s59 = sadd.s32 %s19, 1
    %s60 = sadd.s32 %s26, 1
    %s61 = ssub.s32 %s18, %s30
    %s62 = ssub.s32 %s59, %s60
    %s63 = sor.u32 %s61, %s62
    %p64 = scmp.eq.s32.totalorder %s63, 0
    %s66 = sadd.s32 %s65, 1
    %s67 = scalar_select %p64, %s65, %s66
    %p70 = pneg %p64
    %p71 = scmp.eq.s32.totalorder %s11, 15
    %p72 = por %p70, %p71
    %p73 = scmp.ne.s32.totalorder %s65, %s68
    %p74 = scmp.eq.s32.totalorder %s11, 0
    %p75 = por %p73, %p74
    %p76 = scmp.ne.s32.totalorder %s65, %s68
    %p77 = scmp.eq.s32.totalorder %s16, 15
    %p78 = por %p76, %p77
    %p79 = scmp.ne.s32.totalorder %s68, %s69
    %p80 = scmp.eq.s32.totalorder %s16, 0
    %p81 = por %p79, %p80
    %p82 = scmp.ne.s32.totalorder %s68, %s69
    %p83 = scmp.eq.s32.totalorder %s17, 15
    %p84 = por %p82, %p83
    %p86 = scmp.ne.s32.totalorder %s69, %s85
    %p87 = scmp.eq.s32.totalorder %s17, 0
    %p88 = por %p86, %p87
    %s89 = sadd.s32 %s19, 2
    %s90 = sadd.s32 %s26, 2
    %s91 = ssub.s32 %s18, %s30
    %s92 = ssub.s32 %s89, %s90
    %s93 = sor.u32 %s91, %s92
    %p94 = scmp.eq.s32.totalorder %s93, 0
    %s96 = sadd.s32 %s95, 1
    %s97 = scalar_select %p94, %s95, %s96
    %p100 = pneg %p94
    %p101 = scmp.eq.s32.totalorder %s11, 15
    %p102 = por %p100, %p101
    %p103 = scmp.ne.s32.totalorder %s95, %s98
    %p104 = scmp.eq.s32.totalorder %s11, 0
    %p105 = por %p103, %p104
    %p106 = scmp.ne.s32.totalorder %s95, %s98
    %p107 = scmp.eq.s32.totalorder %s16, 15
    %p108 = por %p106, %p107
    %p109 = scmp.ne.s32.totalorder %s98, %s99
    %p110 = scmp.eq.s32.totalorder %s16, 0
    %p111 = por %p109, %p110
    %p112 = scmp.ne.s32.totalorder %s98, %s99
    %p113 = scmp.eq.s32.totalorder %s17, 15
    %p114 = por %p112, %p113
    %p116 = scmp.ne.s32.totalorder %s99, %s115
    %p117 = scmp.eq.s32.totalorder %s17, 0
    %p118 = por %p116, %p117
    %s120 = sadd.s32 %s119, 1
    %p123 = scmp.eq.s32.totalorder %s11, 15
    %p124 = scmp.ne.s32.totalorder %s119, %s121
    %p125 = scmp.eq.s32.totalorder %s11, 0
    %p126 = por %p124, %p125
    %p127 = scmp.ne.s32.totalorder %s119, %s121
    %p128 = scmp.eq.s32.totalorder %s16, 15
    %p129 = por %p127, %p128
    %p130 = scmp.ne.s32.totalorder %s121, %s122
    %p131 = scmp.eq.s32.totalorder %s16, 0
    %p132 = por %p130, %p131
    %p133 = scmp.ne.s32.totalorder %s121, %s122
    %p134 = scmp.eq.s32.totalorder %s17, 15
    %p135 = por %p133, %p134
    %p137 = scmp.ne.s32.totalorder %s122, %s136
    %p138 = scmp.eq.s32.totalorder %s17, 0
    %p139 = por %p137, %p138
    %s141 = sadd.s32 %s140, 1
    %p144 = scmp.eq.s32.totalorder %s11, 15
    %p145 = scmp.ne.s32.totalorder %s140, %s142
    %p146 = scmp.eq.s32.totalorder %s11, 0
    %p147 = por %p145, %p146
    %p148 = scmp.ne.s32.totalorder %s140, %s142
    %p149 = scmp.eq.s32.totalorder %s16, 15
    %p150 = por %p148, %p149
    %p151 = scmp.ne.s32.totalorder %s142, %s143
    %p152 = scmp.eq.s32.totalorder %s16, 0
    %p153 = por %p151, %p152
    %p154 = scmp.ne.s32.totalorder %s142, %s143
    %p155 = scmp.eq.s32.totalorder %s17, 15
    %p156 = por %p154, %p155
    %p158 = scmp.ne.s32.totalorder %s143, %s157
    %p159 = scmp.eq.s32.totalorder %s17, 0
    %p160 = por %p158, %p159
    %s161 = ssub.s32 %s18, %s30
    %s162 = ssub.s32 %s19, %s26
    %s163 = sor.u32 %s161, %s162
    %p164 = scmp.eq.s32.totalorder %s163, 0
    %s166 = sadd.s32 %s165, 1
    %s167 = scalar_select %p164, %s165, %s166
    %p170 = pneg %p164
    %p171 = scmp.eq.s32.totalorder %s11, 15
    %p172 = por %p170, %p171
    %p173 = scmp.ne.s32.totalorder %s165, %s168
    %p174 = scmp.eq.s32.totalorder %s11, 0
    %p175 = por %p173, %p174
    %p176 = scmp.ne.s32.totalorder %s165, %s168
    %p177 = scmp.eq.s32.totalorder %s16, 15
    %p178 = por %p176, %p177
    %p179 = scmp.ne.s32.totalorder %s168, %s169
    %p180 = scmp.eq.s32.totalorder %s16, 0
    %p181 = por %p179, %p180
    %p182 = scmp.ne.s32.totalorder %s168, %s169
    %p183 = scmp.eq.s32.totalorder %s17, 15
    %p184 = por %p182, %p183
    %p186 = scmp.ne.s32.totalorder %s169, %s185
    %p187 = scmp.eq.s32.totalorder %s17, 0
    %p188 = por %p186, %p187
    %p189 = scmp.le.s32.totalorder 1, %s11
    %p190 = scmp.lt.s32.totalorder %s11, 17
    %p191 = pnand %p189, %p190
    %p192 = pneg %p191
    // Predicated region
    $region9: #{convd_forward.4} parent=5 // pred_check
      _
    $region10: #{convd_forward.4} parent=5 // pred_check_branch
      %194 = sbr.rel (%p191) target = $region12
    $region11: #{convd_forward.4} parent=5 // pred_region
      %s195 = ssub.s32 %s11, 1
      // Predicated region
      $region13: #{convd_forward.4} parent=11 // pred_check
        %p196 = pneg %p132
      $region14: #{convd_forward.4} parent=11 // pred_check_branch
        %198 = sbr.rel (%p196) target = $region16
      $region15: #{convd_forward.4} parent=11 // pred_region
        _
      $region16: #{convd_forward.4} parent=11 // pred_fallthru
        _
      // Predicated region
      $region17: #{convd_forward.4} parent=11 // pred_check
        %p199 = pneg %p153
      $region18: #{convd_forward.4} parent=11 // pred_check_branch
        %201 = sbr.rel (%p199) target = $region20
      $region19: #{convd_forward.4} parent=11 // pred_region
        _
      $region20: #{convd_forward.4} parent=11 // pred_fallthru
        _
    $region12: #{convd_forward.4} parent=5 // pred_fallthru
      _
    %p202 = scmp.lt.s32.totalorder %s11, 16
    // Predicated region
    $region21: #{convd_forward.4} parent=5 // pred_check
      %p203 = pneg %p202
    $region22: #{convd_forward.4} parent=5 // pred_check_branch
      %205 = sbr.rel (%p203) target = $region24
    $region23: #{convd_forward.4} parent=5 // pred_region
      // Predicated region
      $region25: #{convd_forward.4} parent=23 // pred_check
        %p206 = pneg %p45
      $region26: #{convd_forward.4} parent=23 // pred_check_branch
        %208 = sbr.rel (%p206) target = $region28
      $region27: #{convd_forward.4} parent=23 // pred_region
        %p209 = scmp.lt.s32.totalorder %s18, 1
        %s210 = scalar_select %p209, %s18, 1
        %p211 = scmp.lt.s32.totalorder %s19, 9
        %s212 = scalar_select %p211, %s19, 9
        %s213 = smul.addr %s212, 20
        %s214 = smul.addr %s210, 200
        %s215 = sadd.s32 %s213, %s214
        %s216 = smul.addr %s215, 4
        %s217 = scalar_lea.vmem %s0, %s216
      $region28: #{convd_forward.4} parent=23 // pred_fallthru
        _
      // Predicated region
      $region29: #{convd_forward.4} parent=23 // pred_check
        %p218 = pneg %p75
      $region30: #{convd_forward.4} parent=23 // pred_check_branch
        %220 = sbr.rel (%p218) target = $region32
      $region31: #{convd_forward.4} parent=23 // pred_region
        %s221 = sadd.s32 %s19, 1
        %p222 = scmp.lt.s32.totalorder %s18, 1
        %s223 = scalar_select %p222, %s18, 1
        %p224 = scmp.lt.s32.totalorder %s221, 9
        %s225 = scalar_select %p224, %s221, 9
        %s226 = smul.addr %s225, 20
        %s227 = smul.addr %s223, 200
        %s228 = sadd.s32 %s226, %s227
        %s229 = smul.addr %s228, 4
        %s230 = scalar_lea.vmem %s1, %s229
        %s231 = sadd.s32 %s19, 1
      $region32: #{convd_forward.4} parent=23 // pred_fallthru
        _
      // Predicated region
      $region33: #{convd_forward.4} parent=23 // pred_check
        %p232 = pneg %p105
      $region34: #{convd_forward.4} parent=23 // pred_check_branch
        %234 = sbr.rel (%p232) target = $region36
      $region35: #{convd_forward.4} parent=23 // pred_region
        %s235 = sadd.s32 %s19, 2
        %p236 = scmp.lt.s32.totalorder %s18, 1
        %s237 = scalar_select %p236, %s18, 1
        %p238 = scmp.lt.s32.totalorder %s235, 9
        %s239 = scalar_select %p238, %s235, 9
        %s240 = smul.addr %s239, 20
        %s241 = smul.addr %s237, 200
        %s242 = sadd.s32 %s240, %s241
        %s243 = smul.addr %s242, 4
        %s244 = scalar_lea.vmem %s2, %s243
        %s245 = sadd.s32 %s19, 2
      $region36: #{convd_forward.4} parent=23 // pred_fallthru
        _
    $region24: #{convd_forward.4} parent=5 // pred_fallthru
      _
    %p246 = scmp.le.s32.totalorder 1, %s11
    %p247 = scmp.lt.s32.totalorder %s11, 17
    %p248 = pnand %p246, %p247
    %p249 = pneg %p248
    // Predicated region
    $region37: #{convd_forward.4} parent=5 // pred_check
      _
    $region38: #{convd_forward.4} parent=5 // pred_check_branch
      %251 = sbr.rel (%p248) target = $region40
    $region39: #{convd_forward.4} parent=5 // pred_region
      %s252 = ssub.s32 %s11, 1
      %p253 = scmp.lt.s32.totalorder %s20, 1
      %s254 = scalar_select %p253, %s20, 1
      %p255 = scmp.lt.s32.totalorder %s21, 9
      %s256 = scalar_select %p255, %s21, 9
      %s257 = smul.addr %s256, 20
      %s258 = smul.addr %s254, 200
      %s259 = sadd.s32 %s257, %s258
      %s260 = smul.addr %s259, 4
      %s261 = scalar_lea.vmem %s0, %s260
      %p262 = pneg %p51
      %p263 = pneg %p48
      %s264 = sadd.s32 %s21, 1
      %p265 = scmp.lt.s32.totalorder %s20, 1
      %s266 = scalar_select %p265, %s20, 1
      %p267 = scmp.lt.s32.totalorder %s264, 9
      %s268 = scalar_select %p267, %s264, 9
      %s269 = smul.addr %s268, 20
      %s270 = smul.addr %s266, 200
      %s271 = sadd.s32 %s269, %s270
      %s272 = smul.addr %s271, 4
      %s273 = scalar_lea.vmem %s1, %s272
      %p274 = pneg %p81
      %p275 = pneg %p78
      %s276 = sadd.s32 %s21, 2
      %p277 = scmp.lt.s32.totalorder %s20, 1
      %s278 = scalar_select %p277, %s20, 1
      %p279 = scmp.lt.s32.totalorder %s276, 9
      %s280 = scalar_select %p279, %s276, 9
      %s281 = smul.addr %s280, 20
      %s282 = smul.addr %s278, 200
      %s283 = sadd.s32 %s281, %s282
      %s284 = smul.addr %s283, 4
      %s285 = scalar_lea.vmem %s2, %s284
      %p286 = pneg %p111
      %p287 = pneg %p108
      %p288 = pneg %p132
      %p289 = pneg %p129
      %p290 = pneg %p153
      %p291 = pneg %p150
      %p292 = pneg %p181
      %p293 = pneg %p178
      %p294 = scmp.lt.s32.totalorder %s20, 1
      %s295 = scalar_select %p294, %s20, 1
      %p296 = scmp.lt.s32.totalorder %s21, 7
      %s297 = scalar_select %p296, %s21, 7
      %s298 = smul.addr %s297, 8
      %s299 = smul.addr %s295, 64
      %s300 = sadd.s32 %s298, %s299
      %s301 = smul.addr %s300, 8
      %s302 = scalar_lea.vmem %s5, %s301
      %p303 = scmp.lt.s32.totalorder %s20, 1
      %s304 = scalar_select %p303, %s20, 1
      %p305 = scmp.lt.s32.totalorder %s21, 9
      %s306 = scalar_select %p305, %s21, 9
      %s307 = smul.addr %s306, 20
      %s308 = smul.addr %s304, 200
      %s309 = sadd.s32 %s307, %s308
      %s310 = smul.addr %s309, 4
      %s311 = scalar_lea.vmem %s0, %s310
      %s312 = sadd.s32 %s21, 1
      %p313 = scmp.lt.s32.totalorder %s20, 1
      %s314 = scalar_select %p313, %s20, 1
      %p315 = scmp.lt.s32.totalorder %s312, 9
      %s316 = scalar_select %p315, %s312, 9
      %s317 = smul.addr %s316, 20
      %s318 = smul.addr %s314, 200
      %s319 = sadd.s32 %s317, %s318
      %s320 = smul.addr %s319, 4
      %s321 = scalar_lea.vmem %s1, %s320
      %s322 = sadd.s32 %s21, 1
      %s323 = sadd.s32 %s21, 2
      %p324 = scmp.lt.s32.totalorder %s20, 1
      %s325 = scalar_select %p324, %s20, 1
      %p326 = scmp.lt.s32.totalorder %s323, 9
      %s327 = scalar_select %p326, %s323, 9
      %s328 = smul.addr %s327, 20
      %s329 = smul.addr %s325, 200
      %s330 = sadd.s32 %s328, %s329
      %s331 = smul.addr %s330, 4
      %s332 = scalar_lea.vmem %s2, %s331
      %s333 = sadd.s32 %s21, 2
      %p334 = scmp.lt.s32.totalorder %s20, 1
      %s335 = scalar_select %p334, %s20, 1
      %p336 = scmp.lt.s32.totalorder %s21, 7
      %s337 = scalar_select %p336, %s21, 7
      %s338 = smul.addr %s337, 8
      %s339 = smul.addr %s335, 64
      %s340 = sadd.s32 %s338, %s339
      %s341 = smul.addr %s340, 8
      %s342 = scalar_lea.vmem %s5, %s341
      %v344 = vld [vmem:[%s3] sm:$0xf]
      %v345 = vld [vmem:[%s3 + $0x4] sm:$0xf]
      %v346 = vld [vmem:[%s3 + $0x8] sm:$0xf]
      %v347 = vld [vmem:[%s3 + $0xc] sm:$0xf]
      %v348 = vld [vmem:[%s3 + $0x10] sm:$0xf]
      %v349 = vld [vmem:[%s3 + $0x14] sm:$0xf]
      %v350 = vld [vmem:[%s3 + $0x18] sm:$0xf]
      %v351 = vld [vmem:[%s3 + $0x1c] sm:$0xf]
      %v352 = vld [vmem:[%s3 + $0x20] sm:$0xf]
      %v353 = vld [vmem:[%s3 + $0x24] sm:$0xf]
      %v354 = vld [vmem:[%s3 + $0x28] sm:$0xf]
      %v355 = vld [vmem:[%s3 + $0x2c] sm:$0xf]
      %v356 = vld [vmem:[%s3 + $0x30] sm:$0xf]
      %v357 = vld [vmem:[%s3 + $0x34] sm:$0xf]
      %v358 = vld [vmem:[%s3 + $0x38] sm:$0xf]
      %v359 = vld [vmem:[%s3 + $0x3c] sm:$0xf]
      %v360 = vld [vmem:[%s3 + $0x40] sm:$0xf]
      %v361 = vld [vmem:[%s3 + $0x44] sm:$0xf]
      %v362 = vld [vmem:[%s3 + $0x48] sm:$0xf]
      %v363 = vld [vmem:[%s3 + $0x4c] sm:$0xf]
      %v364 = vld [vmem:[%s3 + $0x50] sm:$0xf]
      %v365 = vld [vmem:[%s3 + $0x54] sm:$0xf]
      %v366 = vld [vmem:[%s3 + $0x58] sm:$0xf]
      %v367 = vld [vmem:[%s3 + $0x5c] sm:$0xf]
      %v368 = vld [vmem:[%s3 + $0x60] sm:$0xf]
      %v369 = vld [vmem:[%s3 + $0x64] sm:$0xf]
      %v370 = vld [vmem:[%s3 + $0x68] sm:$0xf]
      %v371 = vld [vmem:[%s3 + $0x6c] sm:$0xf]
      %v372 = vld [vmem:[%s3 + $0x70] sm:$0xf]
      %v373 = vld [vmem:[%s3 + $0x74] sm:$0xf]
      %v374 = vld [vmem:[%s3 + $0x78] sm:$0xf]
      %v375 = vld [vmem:[%s3 + $0x7c] sm:$0xf]
      %v376 = vld [vmem:[%s3 + $0x80] sm:$0xf]
      %v377 = vld [vmem:[%s3 + $0x84] sm:$0xf]
      %v378 = vld [vmem:[%s3 + $0x88] sm:$0xf]
      %v379 = vld [vmem:[%s3 + $0x8c] sm:$0xf]
      %v380 = vld [vmem:[%s3 + $0x90] sm:$0xf]
      %v381 = vld [vmem:[%s3 + $0x94] sm:$0xf]
      %v382 = vld [vmem:[%s3 + $0x98] sm:$0xf]
      %v383 = vld [vmem:[%s3 + $0x9c] sm:$0xf]
      %v384 = vld [vmem:[%s3 + $0xa0] sm:$0xf]
      %v385 = vld [vmem:[%s3 + $0xa4] sm:$0xf]
      %v386 = vld [vmem:[%s3 + $0xa8] sm:$0xf]
      %v387 = vld [vmem:[%s3 + $0xac] sm:$0xf]
      %v388 = vld [vmem:[%s3 + $0xb0] sm:$0xf]
      %v389 = vld [vmem:[%s3 + $0xb4] sm:$0xf]
      %v390 = vld [vmem:[%s3 + $0xb8] sm:$0xf]
      %v391 = vld [vmem:[%s3 + $0xbc] sm:$0xf]
      %v392 = vld [vmem:[%s3 + $0xc0] sm:$0xf]
      %v393 = vld [vmem:[%s3 + $0xc4] sm:$0xf]
      %v394 = vld [vmem:[%s3 + $0xc8] sm:$0xf]
      %v395 = vld [vmem:[%s3 + $0xcc] sm:$0xf]
      %v396 = vld [vmem:[%s3 + $0xd0] sm:$0xf]
      %v397 = vld [vmem:[%s3 + $0xd4] sm:$0xf]
      %v398 = vld [vmem:[%s4] sm:$0x1]
      %v399 = vld [vmem:[%s311] sm:$0xf]
      %v400 = vld [vmem:[%s311 + $0x8] sm:$0xf]
      %v401 = vld [vmem:[%s311 + $0x10] sm:$0xf]
      %v402 = vld [vmem:[%s311 + $0x18] sm:$0xf]
      %v403 = vld [vmem:[%s311 + $0x20] sm:$0xf]
      %v404 = vld [vmem:[%s311 + $0x28] sm:$0xf]
      %v405 = vld [vmem:[%s311 + $0x30] sm:$0xf]
      %v406 = vld [vmem:[%s311 + $0x38] sm:$0xf]
      %v407 = vld [vmem:[%s311 + $0x4] sm:$0x1]
      %v408 = vld [vmem:[%s311 + $0xc] sm:$0x1]
      %v409 = vld [vmem:[%s311 + $0x14] sm:$0x1]
      %v410 = vld [vmem:[%s311 + $0x1c] sm:$0x1]
      %v411 = vld [vmem:[%s311 + $0x24] sm:$0x1]
      %v412 = vld [vmem:[%s311 + $0x2c] sm:$0x1]
      %v413 = vld [vmem:[%s311 + $0x34] sm:$0x1]
      %v414 = vld [vmem:[%s311 + $0x3c] sm:$0x1]
      %v415 = vld [vmem:[%s311] sm:$0xe]
      %v416 = vld [vmem:[%s311 + $0x8] sm:$0xe]
      %v417 = vld [vmem:[%s311 + $0x10] sm:$0xe]
      %v418 = vld [vmem:[%s311 + $0x18] sm:$0xe]
      %v419 = vld [vmem:[%s311 + $0x20] sm:$0xe]
      %v420 = vld [vmem:[%s311 + $0x28] sm:$0xe]
      %v421 = vld [vmem:[%s311 + $0x30] sm:$0xe]
      %v422 = vld [vmem:[%s311 + $0x38] sm:$0xe]
      %s423 = scalar_lea.vmem %s311, 8
      %v424 = vld [vmem:[%s423] sm:$0xf]
      %v425 = vld [vmem:[%s423 + $0x8] sm:$0xf]
      %v426 = vld [vmem:[%s423 + $0x10] sm:$0xf]
      %v427 = vld [vmem:[%s423 + $0x18] sm:$0xf]
      %v428 = vld [vmem:[%s423 + $0x20] sm:$0xf]
      %v429 = vld [vmem:[%s423 + $0x28] sm:$0xf]
      %v430 = vld [vmem:[%s423 + $0x30] sm:$0xf]
      %v431 = vld [vmem:[%s423 + $0x38] sm:$0xf]
      %v432 = vld [vmem:[%s423 + $0x4] sm:$0x1]
      %v433 = vld [vmem:[%s423 + $0xc] sm:$0x1]
      %v434 = vld [vmem:[%s423 + $0x14] sm:$0x1]
      %v435 = vld [vmem:[%s423 + $0x1c] sm:$0x1]
      %v436 = vld [vmem:[%s423 + $0x24] sm:$0x1]
      %v437 = vld [vmem:[%s423 + $0x2c] sm:$0x1]
      %v438 = vld [vmem:[%s423 + $0x34] sm:$0x1]
      %v439 = vld [vmem:[%s423 + $0x3c] sm:$0x1]
      %v440 = vld [vmem:[%s423] sm:$0xe]
      %v441 = vld [vmem:[%s423 + $0x8] sm:$0xe]
      %v442 = vld [vmem:[%s423 + $0x10] sm:$0xe]
      %v443 = vld [vmem:[%s423 + $0x18] sm:$0xe]
      %v444 = vld [vmem:[%s423 + $0x20] sm:$0xe]
      %v445 = vld [vmem:[%s423 + $0x28] sm:$0xe]
      %v446 = vld [vmem:[%s423 + $0x30] sm:$0xe]
      %v447 = vld [vmem:[%s423 + $0x38] sm:$0xe]
      %s448 = scalar_lea.vmem %s311, 16
      %v449 = vld [vmem:[%s448] sm:$0xf]
      %v450 = vld [vmem:[%s448 + $0x8] sm:$0xf]
      %v451 = vld [vmem:[%s448 + $0x10] sm:$0xf]
      %v452 = vld [vmem:[%s448 + $0x18] sm:$0xf]
      %v453 = vld [vmem:[%s448 + $0x20] sm:$0xf]
      %v454 = vld [vmem:[%s448 + $0x28] sm:$0xf]
      %v455 = vld [vmem:[%s448 + $0x30] sm:$0xf]
      %v456 = vld [vmem:[%s448 + $0x38] sm:$0xf]
      %v457 = vld [vmem:[%s448 + $0x4] sm:$0x1]
      %v458 = vld [vmem:[%s448 + $0xc] sm:$0x1]
      %v459 = vld [vmem:[%s448 + $0x14] sm:$0x1]
      %v460 = vld [vmem:[%s448 + $0x1c] sm:$0x1]
      %v461 = vld [vmem:[%s448 + $0x24] sm:$0x1]
      %v462 = vld [vmem:[%s448 + $0x2c] sm:$0x1]
      %v463 = vld [vmem:[%s448 + $0x34] sm:$0x1]
      %v464 = vld [vmem:[%s448 + $0x3c] sm:$0x1]
      %v465 = vld [vmem:[%s448] sm:$0xe]
      %v466 = vld [vmem:[%s448 + $0x8] sm:$0xe]
      %v467 = vld [vmem:[%s448 + $0x10] sm:$0xe]
      %v468 = vld [vmem:[%s448 + $0x18] sm:$0xe]
      %v469 = vld [vmem:[%s448 + $0x20] sm:$0xe]
      %v470 = vld [vmem:[%s448 + $0x28] sm:$0xe]
      %v471 = vld [vmem:[%s448 + $0x30] sm:$0xe]
      %v472 = vld [vmem:[%s448 + $0x38] sm:$0xe]
      %v473 = vld [vmem:[%s321] sm:$0xf]
      %v474 = vld [vmem:[%s321 + $0x8] sm:$0xf]
      %v475 = vld [vmem:[%s321 + $0x10] sm:$0xf]
      %v476 = vld [vmem:[%s321 + $0x18] sm:$0xf]
      %v477 = vld [vmem:[%s321 + $0x20] sm:$0xf]
      %v478 = vld [vmem:[%s321 + $0x28] sm:$0xf]
      %v479 = vld [vmem:[%s321 + $0x30] sm:$0xf]
      %v480 = vld [vmem:[%s321 + $0x38] sm:$0xf]
      %v481 = vld [vmem:[%s321 + $0x4] sm:$0x1]
      %v482 = vld [vmem:[%s321 + $0xc] sm:$0x1]
      %v483 = vld [vmem:[%s321 + $0x14] sm:$0x1]
      %v484 = vld [vmem:[%s321 + $0x1c] sm:$0x1]
      %v485 = vld [vmem:[%s321 + $0x24] sm:$0x1]
      %v486 = vld [vmem:[%s321 + $0x2c] sm:$0x1]
      %v487 = vld [vmem:[%s321 + $0x34] sm:$0x1]
      %v488 = vld [vmem:[%s321 + $0x3c] sm:$0x1]
      %v489 = vld [vmem:[%s321] sm:$0xe]
      %v490 = vld [vmem:[%s321 + $0x8] sm:$0xe]
      %v491 = vld [vmem:[%s321 + $0x10] sm:$0xe]
      %v492 = vld [vmem:[%s321 + $0x18] sm:$0xe]
      %v493 = vld [vmem:[%s321 + $0x20] sm:$0xe]
      %v494 = vld [vmem:[%s321 + $0x28] sm:$0xe]
      %v495 = vld [vmem:[%s321 + $0x30] sm:$0xe]
      %v496 = vld [vmem:[%s321 + $0x38] sm:$0xe]
      %s497 = scalar_lea.vmem %s321, 8
      %v498 = vld [vmem:[%s497] sm:$0xf]
      %v499 = vld [vmem:[%s497 + $0x8] sm:$0xf]
      %v500 = vld [vmem:[%s497 + $0x10] sm:$0xf]
      %v501 = vld [vmem:[%s497 + $0x18] sm:$0xf]
      %v502 = vld [vmem:[%s497 + $0x20] sm:$0xf]
      %v503 = vld [vmem:[%s497 + $0x28] sm:$0xf]
      %v504 = vld [vmem:[%s497 + $0x30] sm:$0xf]
      %v505 = vld [vmem:[%s497 + $0x38] sm:$0xf]
      %v506 = vld [vmem:[%s497 + $0x4] sm:$0x1]
      %v507 = vld [vmem:[%s497 + $0xc] sm:$0x1]
      %v508 = vld [vmem:[%s497 + $0x14] sm:$0x1]
      %v509 = vld [vmem:[%s497 + $0x1c] sm:$0x1]
      %v510 = vld [vmem:[%s497 + $0x24] sm:$0x1]
      %v511 = vld [vmem:[%s497 + $0x2c] sm:$0x1]
      %v512 = vld [vmem:[%s497 + $0x34] sm:$0x1]
      %v513 = vld [vmem:[%s497 + $0x3c] sm:$0x1]
      %v514 = vld [vmem:[%s497] sm:$0xe]
      %v515 = vld [vmem:[%s497 + $0x8] sm:$0xe]
      %v516 = vld [vmem:[%s497 + $0x10] sm:$0xe]
      %v517 = vld [vmem:[%s497 + $0x18] sm:$0xe]
      %v518 = vld [vmem:[%s497 + $0x20] sm:$0xe]
      %v519 = vld [vmem:[%s497 + $0x28] sm:$0xe]
      %v520 = vld [vmem:[%s497 + $0x30] sm:$0xe]
      %v521 = vld [vmem:[%s497 + $0x38] sm:$0xe]
      %s522 = scalar_lea.vmem %s321, 16
      %v523 = vld [vmem:[%s522] sm:$0xf]
      %v524 = vld [vmem:[%s522 + $0x8] sm:$0xf]
      %v525 = vld [vmem:[%s522 + $0x10] sm:$0xf]
      %v526 = vld [vmem:[%s522 + $0x18] sm:$0xf]
      %v527 = vld [vmem:[%s522 + $0x20] sm:$0xf]
      %v528 = vld [vmem:[%s522 + $0x28] sm:$0xf]
      %v529 = vld [vmem:[%s522 + $0x30] sm:$0xf]
      %v530 = vld [vmem:[%s522 + $0x38] sm:$0xf]
      %v531 = vld [vmem:[%s522 + $0x4] sm:$0x1]
      %v532 = vld [vmem:[%s522 + $0xc] sm:$0x1]
      %v533 = vld [vmem:[%s522 + $0x14] sm:$0x1]
      %v534 = vld [vmem:[%s522 + $0x1c] sm:$0x1]
      %v535 = vld [vmem:[%s522 + $0x24] sm:$0x1]
      %v536 = vld [vmem:[%s522 + $0x2c] sm:$0x1]
      %v537 = vld [vmem:[%s522 + $0x34] sm:$0x1]
      %v538 = vld [vmem:[%s522 + $0x3c] sm:$0x1]
      %v539 = vld [vmem:[%s522] sm:$0xe]
      %v540 = vld [vmem:[%s522 + $0x8] sm:$0xe]
      %v541 = vld [vmem:[%s522 + $0x10] sm:$0xe]
      %v542 = vld [vmem:[%s522 + $0x18] sm:$0xe]
      %v543 = vld [vmem:[%s522 + $0x20] sm:$0xe]
      %v544 = vld [vmem:[%s522 + $0x28] sm:$0xe]
      %v545 = vld [vmem:[%s522 + $0x30] sm:$0xe]
      %v546 = vld [vmem:[%s522 + $0x38] sm:$0xe]
      %v547 = vld [vmem:[%s332] sm:$0xf]
      %v548 = vld [vmem:[%s332 + $0x8] sm:$0xf]
      %v549 = vld [vmem:[%s332 + $0x10] sm:$0xf]
      %v550 = vld [vmem:[%s332 + $0x18] sm:$0xf]
      %v551 = vld [vmem:[%s332 + $0x20] sm:$0xf]
      %v552 = vld [vmem:[%s332 + $0x28] sm:$0xf]
      %v553 = vld [vmem:[%s332 + $0x30] sm:$0xf]
      %v554 = vld [vmem:[%s332 + $0x38] sm:$0xf]
      %v555 = vld [vmem:[%s332 + $0x4] sm:$0x1]
      %v556 = vld [vmem:[%s332 + $0xc] sm:$0x1]
      %v557 = vld [vmem:[%s332 + $0x14] sm:$0x1]
      %v558 = vld [vmem:[%s332 + $0x1c] sm:$0x1]
      %v559 = vld [vmem:[%s332 + $0x24] sm:$0x1]
      %v560 = vld [vmem:[%s332 + $0x2c] sm:$0x1]
      %v561 = vld [vmem:[%s332 + $0x34] sm:$0x1]
      %v562 = vld [vmem:[%s332 + $0x3c] sm:$0x1]
      %v563 = vld [vmem:[%s332] sm:$0xe]
      %v564 = vld [vmem:[%s332 + $0x8] sm:$0xe]
      %v565 = vld [vmem:[%s332 + $0x10] sm:$0xe]
      %v566 = vld [vmem:[%s332 + $0x18] sm:$0xe]
      %v567 = vld [vmem:[%s332 + $0x20] sm:$0xe]
      %v568 = vld [vmem:[%s332 + $0x28] sm:$0xe]
      %v569 = vld [vmem:[%s332 + $0x30] sm:$0xe]
      %v570 = vld [vmem:[%s332 + $0x38] sm:$0xe]
      %s571 = scalar_lea.vmem %s332, 8
      %v572 = vld [vmem:[%s571] sm:$0xf]
      %v573 = vld [vmem:[%s571 + $0x8] sm:$0xf]
      %v574 = vld [vmem:[%s571 + $0x10] sm:$0xf]
      %v575 = vld [vmem:[%s571 + $0x18] sm:$0xf]
      %v576 = vld [vmem:[%s571 + $0x20] sm:$0xf]
      %v577 = vld [vmem:[%s571 + $0x28] sm:$0xf]
      %v578 = vld [vmem:[%s571 + $0x30] sm:$0xf]
      %v579 = vld [vmem:[%s571 + $0x38] sm:$0xf]
      %v580 = vld [vmem:[%s571 + $0x4] sm:$0x1]
      %v581 = vld [vmem:[%s571 + $0xc] sm:$0x1]
      %v582 = vld [vmem:[%s571 + $0x14] sm:$0x1]
      %v583 = vld [vmem:[%s571 + $0x1c] sm:$0x1]
      %v584 = vld [vmem:[%s571 + $0x24] sm:$0x1]
      %v585 = vld [vmem:[%s571 + $0x2c] sm:$0x1]
      %v586 = vld [vmem:[%s571 + $0x34] sm:$0x1]
      %v587 = vld [vmem:[%s571 + $0x3c] sm:$0x1]
      %v588 = vld [vmem:[%s571] sm:$0xe]
      %v589 = vld [vmem:[%s571 + $0x8] sm:$0xe]
      %v590 = vld [vmem:[%s571 + $0x10] sm:$0xe]
      %v591 = vld [vmem:[%s571 + $0x18] sm:$0xe]
      %v592 = vld [vmem:[%s571 + $0x20] sm:$0xe]
      %v593 = vld [vmem:[%s571 + $0x28] sm:$0xe]
      %v594 = vld [vmem:[%s571 + $0x30] sm:$0xe]
      %v595 = vld [vmem:[%s571 + $0x38] sm:$0xe]
      %s596 = scalar_lea.vmem %s332, 16
      %v597 = vld [vmem:[%s596] sm:$0xf]
      %v598 = vld [vmem:[%s596 + $0x8] sm:$0xf]
      %v599 = vld [vmem:[%s596 + $0x10] sm:$0xf]
      %v600 = vld [vmem:[%s596 + $0x18] sm:$0xf]
      %v601 = vld [vmem:[%s596 + $0x20] sm:$0xf]
      %v602 = vld [vmem:[%s596 + $0x28] sm:$0xf]
      %v603 = vld [vmem:[%s596 + $0x30] sm:$0xf]
      %v604 = vld [vmem:[%s596 + $0x38] sm:$0xf]
      %v605 = vld [vmem:[%s596 + $0x4] sm:$0x1]
      %v606 = vld [vmem:[%s596 + $0xc] sm:$0x1]
      %v607 = vld [vmem:[%s596 + $0x14] sm:$0x1]
      %v608 = vld [vmem:[%s596 + $0x1c] sm:$0x1]
      %v609 = vld [vmem:[%s596 + $0x24] sm:$0x1]
      %v610 = vld [vmem:[%s596 + $0x2c] sm:$0x1]
      %v611 = vld [vmem:[%s596 + $0x34] sm:$0x1]
      %v612 = vld [vmem:[%s596 + $0x3c] sm:$0x1]
      %v613 = vld [vmem:[%s596] sm:$0xe]
      %v614 = vld [vmem:[%s596 + $0x8] sm:$0xe]
      %v615 = vld [vmem:[%s596 + $0x10] sm:$0xe]
      %v616 = vld [vmem:[%s596 + $0x18] sm:$0xe]
      %v617 = vld [vmem:[%s596 + $0x20] sm:$0xe]
      %v618 = vld [vmem:[%s596 + $0x28] sm:$0xe]
      %v619 = vld [vmem:[%s596 + $0x30] sm:$0xe]
      %v620 = vld [vmem:[%s596 + $0x38] sm:$0xe]
      %v637 = vunpack.c.l.b16 %v399
      %v638 = vunpack.c.l.b16 %v407
      %v639 = vunpack.c.l.b16 %v400
      %v640 = vunpack.c.l.b16 %v408
      %v641 = vunpack.c.l.b16 %v401
      %v642 = vunpack.c.l.b16 %v409
      %v643 = vunpack.c.l.b16 %v402
      %v644 = vunpack.c.l.b16 %v410
      %v645 = vunpack.c.l.b16 %v403
      %v646 = vunpack.c.l.b16 %v411
      %v647 = vunpack.c.l.b16 %v404
      %v648 = vunpack.c.l.b16 %v412
      %v649 = vunpack.c.l.b16 %v405
      %v650 = vunpack.c.l.b16 %v413
      %v651 = vunpack.c.l.b16 %v406
      %v652 = vunpack.c.l.b16 %v414
      %v653 = vpack.c.b16 %v638, %v637
      %v654 = vpack.c.b16 %v640, %v639
      %v655 = vpack.c.b16 %v642, %v641
      %v656 = vpack.c.b16 %v644, %v643
      %v657 = vpack.c.b16 %v646, %v645
      %v658 = vpack.c.b16 %v648, %v647
      %v659 = vpack.c.b16 %v650, %v649
      %v660 = vpack.c.b16 %v652, %v651
      %v662 = vshrl.u32 %v653, 16
      %v664 = vshll.u32 %v653, 16
      %v666 = vrot.slane %v664, 1
      %v667 = vor.u32 %v662, %v666
      %v669 = vshrl.u32 %v654, 16
      %v671 = vshll.u32 %v654, 16
      %v673 = vrot.slane %v671, 1
      %v674 = vor.u32 %v669, %v673
      %v676 = vshrl.u32 %v655, 16
      %v678 = vshll.u32 %v655, 16
      %v680 = vrot.slane %v678, 1
      %v681 = vor.u32 %v676, %v680
      %v683 = vshrl.u32 %v656, 16
      %v685 = vshll.u32 %v656, 16
      %v687 = vrot.slane %v685, 1
      %v688 = vor.u32 %v683, %v687
      %v690 = vshrl.u32 %v657, 16
      %v692 = vshll.u32 %v657, 16
      %v694 = vrot.slane %v692, 1
      %v695 = vor.u32 %v690, %v694
      %v697 = vshrl.u32 %v658, 16
      %v699 = vshll.u32 %v658, 16
      %v701 = vrot.slane %v699, 1
      %v702 = vor.u32 %v697, %v701
      %v704 = vshrl.u32 %v659, 16
      %v706 = vshll.u32 %v659, 16
      %v708 = vrot.slane %v706, 1
      %v709 = vor.u32 %v704, %v708
      %v711 = vshrl.u32 %v660, 16
      %v713 = vshll.u32 %v660, 16
      %v715 = vrot.slane %v713, 1
      %v716 = vor.u32 %v711, %v715
      %717 = vrot.lane.b32.xlu0 %v667, 16
      %v718 = vpop.permute.xlu0 %717
      %719 = vrot.lane.b32.xlu0 %v674, 16
      %v720 = vpop.permute.xlu0 %719
      %721 = vrot.lane.b32.xlu0 %v681, 16
      %v722 = vpop.permute.xlu0 %721
      %723 = vrot.lane.b32.xlu0 %v688, 16
      %v724 = vpop.permute.xlu0 %723
      %725 = vrot.lane.b32.xlu0 %v695, 16
      %v726 = vpop.permute.xlu0 %725
      %727 = vrot.lane.b32.xlu0 %v702, 16
      %v728 = vpop.permute.xlu0 %727
      %729 = vrot.lane.b32.xlu0 %v709, 16
      %v730 = vpop.permute.xlu0 %729
      %731 = vrot.lane.b32.xlu0 %v716, 16
      %v732 = vpop.permute.xlu0 %731
      %v741 = vunpack.c.l.b16 %v415
      %v742 = vunpack.c.l.b16 %v416
      %v743 = vunpack.c.l.b16 %v417
      %v744 = vunpack.c.l.b16 %v418
      %v745 = vunpack.c.l.b16 %v419
      %v746 = vunpack.c.l.b16 %v420
      %v747 = vunpack.c.l.b16 %v421
      %v748 = vunpack.c.l.b16 %v422
      %v749 = vpack.c.b16 %v638, %v741
      %v750 = vpack.c.b16 %v640, %v742
      %v751 = vpack.c.b16 %v642, %v743
      %v752 = vpack.c.b16 %v644, %v744
      %v753 = vpack.c.b16 %v646, %v745
      %v754 = vpack.c.b16 %v648, %v746
      %v755 = vpack.c.b16 %v650, %v747
      %v756 = vpack.c.b16 %v652, %v748
      %v757 = vrot.slane %v749, 1
      %v758 = vrot.slane %v750, 1
      %v759 = vrot.slane %v751, 1
      %v760 = vrot.slane %v752, 1
      %v761 = vrot.slane %v753, 1
      %v762 = vrot.slane %v754, 1
      %v763 = vrot.slane %v755, 1
      %v764 = vrot.slane %v756, 1
      %765 = vrot.lane.b32.xlu0 %v757, 32
      %v766 = vpop.permute.xlu0 %765
      %767 = vrot.lane.b32.xlu0 %v758, 32
      %v768 = vpop.permute.xlu0 %767
      %769 = vrot.lane.b32.xlu0 %v759, 32
      %v770 = vpop.permute.xlu0 %769
      %771 = vrot.lane.b32.xlu0 %v760, 32
      %v772 = vpop.permute.xlu0 %771
      %773 = vrot.lane.b32.xlu0 %v761, 32
      %v774 = vpop.permute.xlu0 %773
      %775 = vrot.lane.b32.xlu0 %v762, 32
      %v776 = vpop.permute.xlu0 %775
      %777 = vrot.lane.b32.xlu0 %v763, 32
      %v778 = vpop.permute.xlu0 %777
      %779 = vrot.lane.b32.xlu0 %v764, 32
      %v780 = vpop.permute.xlu0 %779
      %v789 = vunpack.c.l.b16 %v424
      %v790 = vunpack.c.l.b16 %v425
      %v791 = vunpack.c.l.b16 %v426
      %v792 = vunpack.c.l.b16 %v427
      %v793 = vunpack.c.l.b16 %v428
      %v794 = vunpack.c.l.b16 %v429
      %v795 = vunpack.c.l.b16 %v430
      %v796 = vunpack.c.l.b16 %v431
      %v797 = vpack.c.b16 %v789, %v789
      %v798 = vpack.c.b16 %v790, %v790
      %v799 = vpack.c.b16 %v791, %v791
      %v800 = vpack.c.b16 %v792, %v792
      %v801 = vpack.c.b16 %v793, %v793
      %v802 = vpack.c.b16 %v794, %v794
      %v803 = vpack.c.b16 %v795, %v795
      %v804 = vpack.c.b16 %v796, %v796
      %805 = vrot.lane.b32.xlu0 %v797, 48
      %v806 = vpop.permute.xlu0 %805
      %807 = vrot.lane.b32.xlu0 %v798, 48
      %v808 = vpop.permute.xlu0 %807
      %809 = vrot.lane.b32.xlu0 %v799, 48
      %v810 = vpop.permute.xlu0 %809
      %811 = vrot.lane.b32.xlu0 %v800, 48
      %v812 = vpop.permute.xlu0 %811
      %813 = vrot.lane.b32.xlu0 %v801, 48
      %v814 = vpop.permute.xlu0 %813
      %815 = vrot.lane.b32.xlu0 %v802, 48
      %v816 = vpop.permute.xlu0 %815
      %817 = vrot.lane.b32.xlu0 %v803, 48
      %v818 = vpop.permute.xlu0 %817
      %819 = vrot.lane.b32.xlu0 %v804, 48
      %v820 = vpop.permute.xlu0 %819
      %v829 = vunpack.c.l.b16 %v432
      %v830 = vunpack.c.l.b16 %v433
      %v831 = vunpack.c.l.b16 %v434
      %v832 = vunpack.c.l.b16 %v435
      %v833 = vunpack.c.l.b16 %v436
      %v834 = vunpack.c.l.b16 %v437
      %v835 = vunpack.c.l.b16 %v438
      %v836 = vunpack.c.l.b16 %v439
      %v837 = vpack.c.b16 %v829, %v789
      %v838 = vpack.c.b16 %v830, %v790
      %v839 = vpack.c.b16 %v831, %v791
      %v840 = vpack.c.b16 %v832, %v792
      %v841 = vpack.c.b16 %v833, %v793
      %v842 = vpack.c.b16 %v834, %v794
      %v843 = vpack.c.b16 %v835, %v795
      %v844 = vpack.c.b16 %v836, %v796
      %v846 = vshrl.u32 %v837, 16
      %v848 = vshll.u32 %v837, 16
      %v850 = vrot.slane %v848, 1
      %v851 = vor.u32 %v846, %v850
      %v853 = vshrl.u32 %v838, 16
      %v855 = vshll.u32 %v838, 16
      %v857 = vrot.slane %v855, 1
      %v858 = vor.u32 %v853, %v857
      %v860 = vshrl.u32 %v839, 16
      %v862 = vshll.u32 %v839, 16
      %v864 = vrot.slane %v862, 1
      %v865 = vor.u32 %v860, %v864
      %v867 = vshrl.u32 %v840, 16
      %v869 = vshll.u32 %v840, 16
      %v871 = vrot.slane %v869, 1
      %v872 = vor.u32 %v867, %v871
      %v874 = vshrl.u32 %v841, 16
      %v876 = vshll.u32 %v841, 16
      %v878 = vrot.slane %v876, 1
      %v879 = vor.u32 %v874, %v878
      %v881 = vshrl.u32 %v842, 16
      %v883 = vshll.u32 %v842, 16
      %v885 = vrot.slane %v883, 1
      %v886 = vor.u32 %v881, %v885
      %v888 = vshrl.u32 %v843, 16
      %v890 = vshll.u32 %v843, 16
      %v892 = vrot.slane %v890, 1
      %v893 = vor.u32 %v888, %v892
      %v895 = vshrl.u32 %v844, 16
      %v897 = vshll.u32 %v844, 16
      %v899 = vrot.slane %v897, 1
      %v900 = vor.u32 %v895, %v899
      %901 = vrot.lane.b32.xlu0 %v851, 64
      %v902 = vpop.permute.xlu0 %901
      %903 = vrot.lane.b32.xlu0 %v858, 64
      %v904 = vpop.permute.xlu0 %903
      %905 = vrot.lane.b32.xlu0 %v865, 64
      %v906 = vpop.permute.xlu0 %905
      %907 = vrot.lane.b32.xlu0 %v872, 64
      %v908 = vpop.permute.xlu0 %907
      %909 = vrot.lane.b32.xlu0 %v879, 64
      %v910 = vpop.permute.xlu0 %909
      %911 = vrot.lane.b32.xlu0 %v886, 64
      %v912 = vpop.permute.xlu0 %911
      %913 = vrot.lane.b32.xlu0 %v893, 64
      %v914 = vpop.permute.xlu0 %913
      %915 = vrot.lane.b32.xlu0 %v900, 64
      %v916 = vpop.permute.xlu0 %915
      %v925 = vunpack.c.l.b16 %v440
      %v926 = vunpack.c.l.b16 %v441
      %v927 = vunpack.c.l.b16 %v442
      %v928 = vunpack.c.l.b16 %v443
      %v929 = vunpack.c.l.b16 %v444
      %v930 = vunpack.c.l.b16 %v445
      %v931 = vunpack.c.l.b16 %v446
      %v932 = vunpack.c.l.b16 %v447
      %v933 = vpack.c.b16 %v829, %v925
      %v934 = vpack.c.b16 %v830, %v926
      %v935 = vpack.c.b16 %v831, %v927
      %v936 = vpack.c.b16 %v832, %v928
      %v937 = vpack.c.b16 %v833, %v929
      %v938 = vpack.c.b16 %v834, %v930
      %v939 = vpack.c.b16 %v835, %v931
      %v940 = vpack.c.b16 %v836, %v932
      %v941 = vrot.slane %v933, 1
      %v942 = vrot.slane %v934, 1
      %v943 = vrot.slane %v935, 1
      %v944 = vrot.slane %v936, 1
      %v945 = vrot.slane %v937, 1
      %v946 = vrot.slane %v938, 1
      %v947 = vrot.slane %v939, 1
      %v948 = vrot.slane %v940, 1
      %949 = vrot.lane.b32.xlu0 %v941, 80
      %v950 = vpop.permute.xlu0 %949
      %951 = vrot.lane.b32.xlu0 %v942, 80
      %v952 = vpop.permute.xlu0 %951
      %953 = vrot.lane.b32.xlu0 %v943, 80
      %v954 = vpop.permute.xlu0 %953
      %955 = vrot.lane.b32.xlu0 %v944, 80
      %v956 = vpop.permute.xlu0 %955
      %957 = vrot.lane.b32.xlu0 %v945, 80
      %v958 = vpop.permute.xlu0 %957
      %959 = vrot.lane.b32.xlu0 %v946, 80
      %v960 = vpop.permute.xlu0 %959
      %961 = vrot.lane.b32.xlu0 %v947, 80
      %v962 = vpop.permute.xlu0 %961
      %963 = vrot.lane.b32.xlu0 %v948, 80
      %v964 = vpop.permute.xlu0 %963
      %v973 = vunpack.c.l.b16 %v449
      %v974 = vunpack.c.l.b16 %v450
      %v975 = vunpack.c.l.b16 %v451
      %v976 = vunpack.c.l.b16 %v452
      %v977 = vunpack.c.l.b16 %v453
      %v978 = vunpack.c.l.b16 %v454
      %v979 = vunpack.c.l.b16 %v455
      %v980 = vunpack.c.l.b16 %v456
      %v981 = vpack.c.b16 %v973, %v973
      %v982 = vpack.c.b16 %v974, %v974
      %v983 = vpack.c.b16 %v975, %v975
      %v984 = vpack.c.b16 %v976, %v976
      %v985 = vpack.c.b16 %v977, %v977
      %v986 = vpack.c.b16 %v978, %v978
      %v987 = vpack.c.b16 %v979, %v979
      %v988 = vpack.c.b16 %v980, %v980
      %989 = vrot.lane.b32.xlu0 %v981, 96
      %v990 = vpop.permute.xlu0 %989
      %991 = vrot.lane.b32.xlu0 %v982, 96
      %v992 = vpop.permute.xlu0 %991
      %993 = vrot.lane.b32.xlu0 %v983, 96
      %v994 = vpop.permute.xlu0 %993
      %995 = vrot.lane.b32.xlu0 %v984, 96
      %v996 = vpop.permute.xlu0 %995
      %997 = vrot.lane.b32.xlu0 %v985, 96
      %v998 = vpop.permute.xlu0 %997
      %999 = vrot.lane.b32.xlu0 %v986, 96
      %v1000 = vpop.permute.xlu0 %999
      %1001 = vrot.lane.b32.xlu0 %v987, 96
      %v1002 = vpop.permute.xlu0 %1001
      %1003 = vrot.lane.b32.xlu0 %v988, 96
      %v1004 = vpop.permute.xlu0 %1003
      %v1013 = vunpack.c.l.b16 %v457
      %v1014 = vunpack.c.l.b16 %v458
      %v1015 = vunpack.c.l.b16 %v459
      %v1016 = vunpack.c.l.b16 %v460
      %v1017 = vunpack.c.l.b16 %v461
      %v1018 = vunpack.c.l.b16 %v462
      %v1019 = vunpack.c.l.b16 %v463
      %v1020 = vunpack.c.l.b16 %v464
      %v1021 = vpack.c.b16 %v1013, %v973
      %v1022 = vpack.c.b16 %v1014, %v974
      %v1023 = vpack.c.b16 %v1015, %v975
      %v1024 = vpack.c.b16 %v1016, %v976
      %v1025 = vpack.c.b16 %v1017, %v977
      %v1026 = vpack.c.b16 %v1018, %v978
      %v1027 = vpack.c.b16 %v1019, %v979
      %v1028 = vpack.c.b16 %v1020, %v980
      %v1030 = vshrl.u32 %v1021, 16
      %v1032 = vshll.u32 %v1021, 16
      %v1034 = vrot.slane %v1032, 1
      %v1035 = vor.u32 %v1030, %v1034
      %v1037 = vshrl.u32 %v1022, 16
      %v1039 = vshll.u32 %v1022, 16
      %v1041 = vrot.slane %v1039, 1
      %v1042 = vor.u32 %v1037, %v1041
      %v1044 = vshrl.u32 %v1023, 16
      %v1046 = vshll.u32 %v1023, 16
      %v1048 = vrot.slane %v1046, 1
      %v1049 = vor.u32 %v1044, %v1048
      %v1051 = vshrl.u32 %v1024, 16
      %v1053 = vshll.u32 %v1024, 16
      %v1055 = vrot.slane %v1053, 1
      %v1056 = vor.u32 %v1051, %v1055
      %v1058 = vshrl.u32 %v1025, 16
      %v1060 = vshll.u32 %v1025, 16
      %v1062 = vrot.slane %v1060, 1
      %v1063 = vor.u32 %v1058, %v1062
      %v1065 = vshrl.u32 %v1026, 16
      %v1067 = vshll.u32 %v1026, 16
      %v1069 = vrot.slane %v1067, 1
      %v1070 = vor.u32 %v1065, %v1069
      %v1072 = vshrl.u32 %v1027, 16
      %v1074 = vshll.u32 %v1027, 16
      %v1076 = vrot.slane %v1074, 1
      %v1077 = vor.u32 %v1072, %v1076
      %v1079 = vshrl.u32 %v1028, 16
      %v1081 = vshll.u32 %v1028, 16
      %v1083 = vrot.slane %v1081, 1
      %v1084 = vor.u32 %v1079, %v1083
      %1085 = vrot.lane.b32.xlu0 %v1035, 112
      %v1086 = vpop.permute.xlu0 %1085
      %1087 = vrot.lane.b32.xlu0 %v1042, 112
      %v1088 = vpop.permute.xlu0 %1087
      %1089 = vrot.lane.b32.xlu0 %v1049, 112
      %v1090 = vpop.permute.xlu0 %1089
      %1091 = vrot.lane.b32.xlu0 %v1056, 112
      %v1092 = vpop.permute.xlu0 %1091
      %1093 = vrot.lane.b32.xlu0 %v1063, 112
      %v1094 = vpop.permute.xlu0 %1093
      %1095 = vrot.lane.b32.xlu0 %v1070, 112
      %v1096 = vpop.permute.xlu0 %1095
      %1097 = vrot.lane.b32.xlu0 %v1077, 112
      %v1098 = vpop.permute.xlu0 %1097
      %1099 = vrot.lane.b32.xlu0 %v1084, 112
      %v1100 = vpop.permute.xlu0 %1099
      %v1109 = vunpack.c.l.b16 %v465
      %v1110 = vunpack.c.l.b16 %v466
      %v1111 = vunpack.c.l.b16 %v467
      %v1112 = vunpack.c.l.b16 %v468
      %v1113 = vunpack.c.l.b16 %v469
      %v1114 = vunpack.c.l.b16 %v470
      %v1115 = vunpack.c.l.b16 %v471
      %v1116 = vunpack.c.l.b16 %v472
      %v1117 = vpack.c.b16 %v1013, %v1109
      %v1118 = vpack.c.b16 %v1014, %v1110
      %v1119 = vpack.c.b16 %v1015, %v1111
      %v1120 = vpack.c.b16 %v1016, %v1112
      %v1121 = vpack.c.b16 %v1017, %v1113
      %v1122 = vpack.c.b16 %v1018, %v1114
      %v1123 = vpack.c.b16 %v1019, %v1115
      %v1124 = vpack.c.b16 %v1020, %v1116
      %v1125 = vrot.slane %v1117, 1
      %v1126 = vrot.slane %v1118, 1
      %v1127 = vrot.slane %v1119, 1
      %v1128 = vrot.slane %v1120, 1
      %v1129 = vrot.slane %v1121, 1
      %v1130 = vrot.slane %v1122, 1
      %v1131 = vrot.slane %v1123, 1
      %v1132 = vrot.slane %v1124, 1
      %v1141 = vunpack.c.l.b16 %v473
      %v1142 = vunpack.c.l.b16 %v474
      %v1143 = vunpack.c.l.b16 %v475
      %v1144 = vunpack.c.l.b16 %v476
      %v1145 = vunpack.c.l.b16 %v477
      %v1146 = vunpack.c.l.b16 %v478
      %v1147 = vunpack.c.l.b16 %v479
      %v1148 = vunpack.c.l.b16 %v480
      %v1149 = vpack.c.b16 %v1141, %v1141
      %v1150 = vpack.c.b16 %v1142, %v1142
      %v1151 = vpack.c.b16 %v1143, %v1143
      %v1152 = vpack.c.b16 %v1144, %v1144
      %v1153 = vpack.c.b16 %v1145, %v1145
      %v1154 = vpack.c.b16 %v1146, %v1146
      %v1155 = vpack.c.b16 %v1147, %v1147
      %v1156 = vpack.c.b16 %v1148, %v1148
      %1157 = vrot.lane.b32.xlu0 %v1149, 16
      %v1158 = vpop.permute.xlu0 %1157
      %1159 = vrot.lane.b32.xlu0 %v1150, 16
      %v1160 = vpop.permute.xlu0 %1159
      %1161 = vrot.lane.b32.xlu0 %v1151, 16
      %v1162 = vpop.permute.xlu0 %1161
      %1163 = vrot.lane.b32.xlu0 %v1152, 16
      %v1164 = vpop.permute.xlu0 %1163
      %1165 = vrot.lane.b32.xlu0 %v1153, 16
      %v1166 = vpop.permute.xlu0 %1165
      %1167 = vrot.lane.b32.xlu0 %v1154, 16
      %v1168 = vpop.permute.xlu0 %1167
      %1169 = vrot.lane.b32.xlu0 %v1155, 16
      %v1170 = vpop.permute.xlu0 %1169
      %1171 = vrot.lane.b32.xlu0 %v1156, 16
      %v1172 = vpop.permute.xlu0 %1171
      %v1181 = vunpack.c.l.b16 %v481
      %v1182 = vunpack.c.l.b16 %v482
      %v1183 = vunpack.c.l.b16 %v483
      %v1184 = vunpack.c.l.b16 %v484
      %v1185 = vunpack.c.l.b16 %v485
      %v1186 = vunpack.c.l.b16 %v486
      %v1187 = vunpack.c.l.b16 %v487
      %v1188 = vunpack.c.l.b16 %v488
      %v1189 = vpack.c.b16 %v1181, %v1141
      %v1190 = vpack.c.b16 %v1182, %v1142
      %v1191 = vpack.c.b16 %v1183, %v1143
      %v1192 = vpack.c.b16 %v1184, %v1144
      %v1193 = vpack.c.b16 %v1185, %v1145
      %v1194 = vpack.c.b16 %v1186, %v1146
      %v1195 = vpack.c.b16 %v1187, %v1147
      %v1196 = vpack.c.b16 %v1188, %v1148
      %v1198 = vshrl.u32 %v1189, 16
      %v1200 = vshll.u32 %v1189, 16
      %v1202 = vrot.slane %v1200, 1
      %v1203 = vor.u32 %v1198, %v1202
      %v1205 = vshrl.u32 %v1190, 16
      %v1207 = vshll.u32 %v1190, 16
      %v1209 = vrot.slane %v1207, 1
      %v1210 = vor.u32 %v1205, %v1209
      %v1212 = vshrl.u32 %v1191, 16
      %v1214 = vshll.u32 %v1191, 16
      %v1216 = vrot.slane %v1214, 1
      %v1217 = vor.u32 %v1212, %v1216
      %v1219 = vshrl.u32 %v1192, 16
      %v1221 = vshll.u32 %v1192, 16
      %v1223 = vrot.slane %v1221, 1
      %v1224 = vor.u32 %v1219, %v1223
      %v1226 = vshrl.u32 %v1193, 16
      %v1228 = vshll.u32 %v1193, 16
      %v1230 = vrot.slane %v1228, 1
      %v1231 = vor.u32 %v1226, %v1230
      %v1233 = vshrl.u32 %v1194, 16
      %v1235 = vshll.u32 %v1194, 16
      %v1237 = vrot.slane %v1235, 1
      %v1238 = vor.u32 %v1233, %v1237
      %v1240 = vshrl.u32 %v1195, 16
      %v1242 = vshll.u32 %v1195, 16
      %v1244 = vrot.slane %v1242, 1
      %v1245 = vor.u32 %v1240, %v1244
      %v1247 = vshrl.u32 %v1196, 16
      %v1249 = vshll.u32 %v1196, 16
      %v1251 = vrot.slane %v1249, 1
      %v1252 = vor.u32 %v1247, %v1251
      %1253 = vrot.lane.b32.xlu0 %v1203, 32
      %v1254 = vpop.permute.xlu0 %1253
      %1255 = vrot.lane.b32.xlu0 %v1210, 32
      %v1256 = vpop.permute.xlu0 %1255
      %1257 = vrot.lane.b32.xlu0 %v1217, 32
      %v1258 = vpop.permute.xlu0 %1257
      %1259 = vrot.lane.b32.xlu0 %v1224, 32
      %v1260 = vpop.permute.xlu0 %1259
      %1261 = vrot.lane.b32.xlu0 %v1231, 32
      %v1262 = vpop.permute.xlu0 %1261
      %1263 = vrot.lane.b32.xlu0 %v1238, 32
      %v1264 = vpop.permute.xlu0 %1263
      %1265 = vrot.lane.b32.xlu0 %v1245, 32
      %v1266 = vpop.permute.xlu0 %1265
      %1267 = vrot.lane.b32.xlu0 %v1252, 32
      %v1268 = vpop.permute.xlu0 %1267
      %v1277 = vunpack.c.l.b16 %v489
      %v1278 = vunpack.c.l.b16 %v490
      %v1279 = vunpack.c.l.b16 %v491
      %v1280 = vunpack.c.l.b16 %v492
      %v1281 = vunpack.c.l.b16 %v493
      %v1282 = vunpack.c.l.b16 %v494
      %v1283 = vunpack.c.l.b16 %v495
      %v1284 = vunpack.c.l.b16 %v496
      %v1285 = vpack.c.b16 %v1181, %v1277
      %v1286 = vpack.c.b16 %v1182, %v1278
      %v1287 = vpack.c.b16 %v1183, %v1279
      %v1288 = vpack.c.b16 %v1184, %v1280
      %v1289 = vpack.c.b16 %v1185, %v1281
      %v1290 = vpack.c.b16 %v1186, %v1282
      %v1291 = vpack.c.b16 %v1187, %v1283
      %v1292 = vpack.c.b16 %v1188, %v1284
      %v1293 = vrot.slane %v1285, 1
      %v1294 = vrot.slane %v1286, 1
      %v1295 = vrot.slane %v1287, 1
      %v1296 = vrot.slane %v1288, 1
      %v1297 = vrot.slane %v1289, 1
      %v1298 = vrot.slane %v1290, 1
      %v1299 = vrot.slane %v1291, 1
      %v1300 = vrot.slane %v1292, 1
      %1301 = vrot.lane.b32.xlu0 %v1293, 48
      %v1302 = vpop.permute.xlu0 %1301
      %1303 = vrot.lane.b32.xlu0 %v1294, 48
      %v1304 = vpop.permute.xlu0 %1303
      %1305 = vrot.lane.b32.xlu0 %v1295, 48
      %v1306 = vpop.permute.xlu0 %1305
      %1307 = vrot.lane.b32.xlu0 %v1296, 48
      %v1308 = vpop.permute.xlu0 %1307
      %1309 = vrot.lane.b32.xlu0 %v1297, 48
      %v1310 = vpop.permute.xlu0 %1309
      %1311 = vrot.lane.b32.xlu0 %v1298, 48
      %v1312 = vpop.permute.xlu0 %1311
      %1313 = vrot.lane.b32.xlu0 %v1299, 48
      %v1314 = vpop.permute.xlu0 %1313
      %1315 = vrot.lane.b32.xlu0 %v1300, 48
      %v1316 = vpop.permute.xlu0 %1315
      %v1325 = vunpack.c.l.b16 %v498
      %v1326 = vunpack.c.l.b16 %v499
      %v1327 = vunpack.c.l.b16 %v500
      %v1328 = vunpack.c.l.b16 %v501
      %v1329 = vunpack.c.l.b16 %v502
      %v1330 = vunpack.c.l.b16 %v503
      %v1331 = vunpack.c.l.b16 %v504
      %v1332 = vunpack.c.l.b16 %v505
      %v1333 = vpack.c.b16 %v1325, %v1325
      %v1334 = vpack.c.b16 %v1326, %v1326
      %v1335 = vpack.c.b16 %v1327, %v1327
      %v1336 = vpack.c.b16 %v1328, %v1328
      %v1337 = vpack.c.b16 %v1329, %v1329
      %v1338 = vpack.c.b16 %v1330, %v1330
      %v1339 = vpack.c.b16 %v1331, %v1331
      %v1340 = vpack.c.b16 %v1332, %v1332
      %1341 = vrot.lane.b32.xlu0 %v1333, 64
      %v1342 = vpop.permute.xlu0 %1341
      %1343 = vrot.lane.b32.xlu0 %v1334, 64
      %v1344 = vpop.permute.xlu0 %1343
      %1345 = vrot.lane.b32.xlu0 %v1335, 64
      %v1346 = vpop.permute.xlu0 %1345
      %1347 = vrot.lane.b32.xlu0 %v1336, 64
      %v1348 = vpop.permute.xlu0 %1347
      %1349 = vrot.lane.b32.xlu0 %v1337, 64
      %v1350 = vpop.permute.xlu0 %1349
      %1351 = vrot.lane.b32.xlu0 %v1338, 64
      %v1352 = vpop.permute.xlu0 %1351
      %1353 = vrot.lane.b32.xlu0 %v1339, 64
      %v1354 = vpop.permute.xlu0 %1353
      %1355 = vrot.lane.b32.xlu0 %v1340, 64
      %v1356 = vpop.permute.xlu0 %1355
      %v1365 = vunpack.c.l.b16 %v506
      %v1366 = vunpack.c.l.b16 %v507
      %v1367 = vunpack.c.l.b16 %v508
      %v1368 = vunpack.c.l.b16 %v509
      %v1369 = vunpack.c.l.b16 %v510
      %v1370 = vunpack.c.l.b16 %v511
      %v1371 = vunpack.c.l.b16 %v512
      %v1372 = vunpack.c.l.b16 %v513
      %v1373 = vpack.c.b16 %v1365, %v1325
      %v1374 = vpack.c.b16 %v1366, %v1326
      %v1375 = vpack.c.b16 %v1367, %v1327
      %v1376 = vpack.c.b16 %v1368, %v1328
      %v1377 = vpack.c.b16 %v1369, %v1329
      %v1378 = vpack.c.b16 %v1370, %v1330
      %v1379 = vpack.c.b16 %v1371, %v1331
      %v1380 = vpack.c.b16 %v1372, %v1332
      %v1382 = vshrl.u32 %v1373, 16
      %v1384 = vshll.u32 %v1373, 16
      %v1386 = vrot.slane %v1384, 1
      %v1387 = vor.u32 %v1382, %v1386
      %v1389 = vshrl.u32 %v1374, 16
      %v1391 = vshll.u32 %v1374, 16
      %v1393 = vrot.slane %v1391, 1
      %v1394 = vor.u32 %v1389, %v1393
      %v1396 = vshrl.u32 %v1375, 16
      %v1398 = vshll.u32 %v1375, 16
      %v1400 = vrot.slane %v1398, 1
      %v1401 = vor.u32 %v1396, %v1400
      %v1403 = vshrl.u32 %v1376, 16
      %v1405 = vshll.u32 %v1376, 16
      %v1407 = vrot.slane %v1405, 1
      %v1408 = vor.u32 %v1403, %v1407
      %v1410 = vshrl.u32 %v1377, 16
      %v1412 = vshll.u32 %v1377, 16
      %v1414 = vrot.slane %v1412, 1
      %v1415 = vor.u32 %v1410, %v1414
      %v1417 = vshrl.u32 %v1378, 16
      %v1419 = vshll.u32 %v1378, 16
      %v1421 = vrot.slane %v1419, 1
      %v1422 = vor.u32 %v1417, %v1421
      %v1424 = vshrl.u32 %v1379, 16
      %v1426 = vshll.u32 %v1379, 16
      %v1428 = vrot.slane %v1426, 1
      %v1429 = vor.u32 %v1424, %v1428
      %v1431 = vshrl.u32 %v1380, 16
      %v1433 = vshll.u32 %v1380, 16
      %v1435 = vrot.slane %v1433, 1
      %v1436 = vor.u32 %v1431, %v1435
      %1437 = vrot.lane.b32.xlu0 %v1387, 80
      %v1438 = vpop.permute.xlu0 %1437
      %1439 = vrot.lane.b32.xlu0 %v1394, 80
      %v1440 = vpop.permute.xlu0 %1439
      %1441 = vrot.lane.b32.xlu0 %v1401, 80
      %v1442 = vpop.permute.xlu0 %1441
      %1443 = vrot.lane.b32.xlu0 %v1408, 80
      %v1444 = vpop.permute.xlu0 %1443
      %1445 = vrot.lane.b32.xlu0 %v1415, 80
      %v1446 = vpop.permute.xlu0 %1445
      %1447 = vrot.lane.b32.xlu0 %v1422, 80
      %v1448 = vpop.permute.xlu0 %1447
      %1449 = vrot.lane.b32.xlu0 %v1429, 80
      %v1450 = vpop.permute.xlu0 %1449
      %1451 = vrot.lane.b32.xlu0 %v1436, 80
      %v1452 = vpop.permute.xlu0 %1451
      %v1461 = vunpack.c.l.b16 %v514
      %v1462 = vunpack.c.l.b16 %v515
      %v1463 = vunpack.c.l.b16 %v516
      %v1464 = vunpack.c.l.b16 %v517
      %v1465 = vunpack.c.l.b16 %v518
      %v1466 = vunpack.c.l.b16 %v519
      %v1467 = vunpack.c.l.b16 %v520
      %v1468 = vunpack.c.l.b16 %v521
      %v1469 = vpack.c.b16 %v1365, %v1461
      %v1470 = vpack.c.b16 %v1366, %v1462
      %v1471 = vpack.c.b16 %v1367, %v1463
      %v1472 = vpack.c.b16 %v1368, %v1464
      %v1473 = vpack.c.b16 %v1369, %v1465
      %v1474 = vpack.c.b16 %v1370, %v1466
      %v1475 = vpack.c.b16 %v1371, %v1467
      %v1476 = vpack.c.b16 %v1372, %v1468
      %v1477 = vrot.slane %v1469, 1
      %v1478 = vrot.slane %v1470, 1
      %v1479 = vrot.slane %v1471, 1
      %v1480 = vrot.slane %v1472, 1
      %v1481 = vrot.slane %v1473, 1
      %v1482 = vrot.slane %v1474, 1
      %v1483 = vrot.slane %v1475, 1
      %v1484 = vrot.slane %v1476, 1
      %1485 = vrot.lane.b32.xlu0 %v1477, 96
      %v1486 = vpop.permute.xlu0 %1485
      %1487 = vrot.lane.b32.xlu0 %v1478, 96
      %v1488 = vpop.permute.xlu0 %1487
      %1489 = vrot.lane.b32.xlu0 %v1479, 96
      %v1490 = vpop.permute.xlu0 %1489
      %1491 = vrot.lane.b32.xlu0 %v1480, 96
      %v1492 = vpop.permute.xlu0 %1491
      %1493 = vrot.lane.b32.xlu0 %v1481, 96
      %v1494 = vpop.permute.xlu0 %1493
      %1495 = vrot.lane.b32.xlu0 %v1482, 96
      %v1496 = vpop.permute.xlu0 %1495
      %1497 = vrot.lane.b32.xlu0 %v1483, 96
      %v1498 = vpop.permute.xlu0 %1497
      %1499 = vrot.lane.b32.xlu0 %v1484, 96
      %v1500 = vpop.permute.xlu0 %1499
      %v1509 = vunpack.c.l.b16 %v523
      %v1510 = vunpack.c.l.b16 %v524
      %v1511 = vunpack.c.l.b16 %v525
      %v1512 = vunpack.c.l.b16 %v526
      %v1513 = vunpack.c.l.b16 %v527
      %v1514 = vunpack.c.l.b16 %v528
      %v1515 = vunpack.c.l.b16 %v529
      %v1516 = vunpack.c.l.b16 %v530
      %v1517 = vpack.c.b16 %v1509, %v1509
      %v1518 = vpack.c.b16 %v1510, %v1510
      %v1519 = vpack.c.b16 %v1511, %v1511
      %v1520 = vpack.c.b16 %v1512, %v1512
      %v1521 = vpack.c.b16 %v1513, %v1513
      %v1522 = vpack.c.b16 %v1514, %v1514
      %v1523 = vpack.c.b16 %v1515, %v1515
      %v1524 = vpack.c.b16 %v1516, %v1516
      %1525 = vrot.lane.b32.xlu0 %v1517, 112
      %v1526 = vpop.permute.xlu0 %1525
      %1527 = vrot.lane.b32.xlu0 %v1518, 112
      %v1528 = vpop.permute.xlu0 %1527
      %1529 = vrot.lane.b32.xlu0 %v1519, 112
      %v1530 = vpop.permute.xlu0 %1529
      %1531 = vrot.lane.b32.xlu0 %v1520, 112
      %v1532 = vpop.permute.xlu0 %1531
      %1533 = vrot.lane.b32.xlu0 %v1521, 112
      %v1534 = vpop.permute.xlu0 %1533
      %1535 = vrot.lane.b32.xlu0 %v1522, 112
      %v1536 = vpop.permute.xlu0 %1535
      %1537 = vrot.lane.b32.xlu0 %v1523, 112
      %v1538 = vpop.permute.xlu0 %1537
      %1539 = vrot.lane.b32.xlu0 %v1524, 112
      %v1540 = vpop.permute.xlu0 %1539
      %vm1541 = vcmask 130048
      %v1544 = vsel %vm1541, %v399, %v718
      %v1547 = vsel %vm1541, %v400, %v720
      %v1550 = vsel %vm1541, %v401, %v722
      %v1553 = vsel %vm1541, %v402, %v724
      %v1556 = vsel %vm1541, %v403, %v726
      %v1559 = vsel %vm1541, %v404, %v728
      %v1562 = vsel %vm1541, %v405, %v730
      %v1565 = vsel %vm1541, %v406, %v732
      %vm1566 = vcmask 261120
      %v1568 = vsel %vm1566, %v1544, %v766
      %v1570 = vsel %vm1566, %v1547, %v768
      %v1572 = vsel %vm1566, %v1550, %v770
      %v1574 = vsel %vm1566, %v1553, %v772
      %v1576 = vsel %vm1566, %v1556, %v774
      %v1578 = vsel %vm1566, %v1559, %v776
      %v1580 = vsel %vm1566, %v1562, %v778
      %v1582 = vsel %vm1566, %v1565, %v780
      %vm1583 = vcmask 392192
      %v1585 = vsel %vm1583, %v1568, %v806
      %v1587 = vsel %vm1583, %v1570, %v808
      %v1589 = vsel %vm1583, %v1572, %v810
      %v1591 = vsel %vm1583, %v1574, %v812
      %v1593 = vsel %vm1583, %v1576, %v814
      %v1595 = vsel %vm1583, %v1578, %v816
      %v1597 = vsel %vm1583, %v1580, %v818
      %v1599 = vsel %vm1583, %v1582, %v820
      %vm1600 = vcmask 523264
      %v1602 = vsel %vm1600, %v1585, %v902
      %v1604 = vsel %vm1600, %v1587, %v904
      %v1606 = vsel %vm1600, %v1589, %v906
      %v1608 = vsel %vm1600, %v1591, %v908
      %v1610 = vsel %vm1600, %v1593, %v910
      %v1612 = vsel %vm1600, %v1595, %v912
      %v1614 = vsel %vm1600, %v1597, %v914
      %v1616 = vsel %vm1600, %v1599, %v916
      %vm1617 = vcmask 654336
      %v1619 = vsel %vm1617, %v1602, %v950
      %v1621 = vsel %vm1617, %v1604, %v952
      %v1623 = vsel %vm1617, %v1606, %v954
      %v1625 = vsel %vm1617, %v1608, %v956
      %v1627 = vsel %vm1617, %v1610, %v958
      %v1629 = vsel %vm1617, %v1612, %v960
      %v1631 = vsel %vm1617, %v1614, %v962
      %v1633 = vsel %vm1617, %v1616, %v964
      %vm1634 = vcmask 785408
      %v1636 = vsel %vm1634, %v1619, %v990
      %v1638 = vsel %vm1634, %v1621, %v992
      %v1640 = vsel %vm1634, %v1623, %v994
      %v1642 = vsel %vm1634, %v1625, %v996
      %v1644 = vsel %vm1634, %v1627, %v998
      %v1646 = vsel %vm1634, %v1629, %v1000
      %v1648 = vsel %vm1634, %v1631, %v1002
      %v1650 = vsel %vm1634, %v1633, %v1004
      %vm1651 = vcmask 916480
      %v1653 = vsel %vm1651, %v1636, %v1086
      %v1655 = vsel %vm1651, %v1638, %v1088
      %v1657 = vsel %vm1651, %v1640, %v1090
      %v1659 = vsel %vm1651, %v1642, %v1092
      %v1661 = vsel %vm1651, %v1644, %v1094
      %v1663 = vsel %vm1651, %v1646, %v1096
      %v1665 = vsel %vm1651, %v1648, %v1098
      %v1667 = vsel %vm1651, %v1650, %v1100
      %v1670 = vsel %vm1541, %v1125, %v1158
      %v1673 = vsel %vm1541, %v1126, %v1160
      %v1676 = vsel %vm1541, %v1127, %v1162
      %v1679 = vsel %vm1541, %v1128, %v1164
      %v1682 = vsel %vm1541, %v1129, %v1166
      %v1685 = vsel %vm1541, %v1130, %v1168
      %v1688 = vsel %vm1541, %v1131, %v1170
      %v1691 = vsel %vm1541, %v1132, %v1172
      %v1693 = vsel %vm1566, %v1670, %v1254
      %v1695 = vsel %vm1566, %v1673, %v1256
      %v1697 = vsel %vm1566, %v1676, %v1258
      %v1699 = vsel %vm1566, %v1679, %v1260
      %v1701 = vsel %vm1566, %v1682, %v1262
      %v1703 = vsel %vm1566, %v1685, %v1264
      %v1705 = vsel %vm1566, %v1688, %v1266
      %v1707 = vsel %vm1566, %v1691, %v1268
      %v1709 = vsel %vm1583, %v1693, %v1302
      %v1711 = vsel %vm1583, %v1695, %v1304
      %v1713 = vsel %vm1583, %v1697, %v1306
      %v1715 = vsel %vm1583, %v1699, %v1308
      %v1717 = vsel %vm1583, %v1701, %v1310
      %v1719 = vsel %vm1583, %v1703, %v1312
      %v1721 = vsel %vm1583, %v1705, %v1314
      %v1723 = vsel %vm1583, %v1707, %v1316
      %v1725 = vsel %vm1600, %v1709, %v1342
      %v1727 = vsel %vm1600, %v1711, %v1344
      %v1729 = vsel %vm1600, %v1713, %v1346
      %v1731 = vsel %vm1600, %v1715, %v1348
      %v1733 = vsel %vm1600, %v1717, %v1350
      %v1735 = vsel %vm1600, %v1719, %v1352
      %v1737 = vsel %vm1600, %v1721, %v1354
      %v1739 = vsel %vm1600, %v1723, %v1356
      %v1741 = vsel %vm1617, %v1725, %v1438
      %v1743 = vsel %vm1617, %v1727, %v1440
      %v1745 = vsel %vm1617, %v1729, %v1442
      %v1747 = vsel %vm1617, %v1731, %v1444
      %v1749 = vsel %vm1617, %v1733, %v1446
      %v1751 = vsel %vm1617, %v1735, %v1448
      %v1753 = vsel %vm1617, %v1737, %v1450
      %v1755 = vsel %vm1617, %v1739, %v1452
      %v1757 = vsel %vm1634, %v1741, %v1486
      %v1759 = vsel %vm1634, %v1743, %v1488
      %v1761 = vsel %vm1634, %v1745, %v1490
      %v1763 = vsel %vm1634, %v1747, %v1492
      %v1765 = vsel %vm1634, %v1749, %v1494
      %v1767 = vsel %vm1634, %v1751, %v1496
      %v1769 = vsel %vm1634, %v1753, %v1498
      %v1771 = vsel %vm1634, %v1755, %v1500
      %v1773 = vsel %vm1651, %v1757, %v1526
      %v1775 = vsel %vm1651, %v1759, %v1528
      %v1777 = vsel %vm1651, %v1761, %v1530
      %v1779 = vsel %vm1651, %v1763, %v1532
      %v1781 = vsel %vm1651, %v1765, %v1534
      %v1783 = vsel %vm1651, %v1767, %v1536
      %v1785 = vsel %vm1651, %v1769, %v1538
      %v1787 = vsel %vm1651, %v1771, %v1540
      %v1796 = vunpack.c.l.b16 %v531
      %v1797 = vunpack.c.l.b16 %v532
      %v1798 = vunpack.c.l.b16 %v533
      %v1799 = vunpack.c.l.b16 %v534
      %v1800 = vunpack.c.l.b16 %v535
      %v1801 = vunpack.c.l.b16 %v536
      %v1802 = vunpack.c.l.b16 %v537
      %v1803 = vunpack.c.l.b16 %v538
      %v1804 = vpack.c.b16 %v1796, %v1509
      %v1805 = vpack.c.b16 %v1797, %v1510
      %v1806 = vpack.c.b16 %v1798, %v1511
      %v1807 = vpack.c.b16 %v1799, %v1512
      %v1808 = vpack.c.b16 %v1800, %v1513
      %v1809 = vpack.c.b16 %v1801, %v1514
      %v1810 = vpack.c.b16 %v1802, %v1515
      %v1811 = vpack.c.b16 %v1803, %v1516
      %v1820 = vunpack.c.l.b16 %v539
      %v1821 = vunpack.c.l.b16 %v540
      %v1822 = vunpack.c.l.b16 %v541
      %v1823 = vunpack.c.l.b16 %v542
      %v1824 = vunpack.c.l.b16 %v543
      %v1825 = vunpack.c.l.b16 %v544
      %v1826 = vunpack.c.l.b16 %v545
      %v1827 = vunpack.c.l.b16 %v546
      %v1828 = vpack.c.b16 %v1796, %v1820
      %v1829 = vpack.c.b16 %v1797, %v1821
      %v1830 = vpack.c.b16 %v1798, %v1822
      %v1831 = vpack.c.b16 %v1799, %v1823
      %v1832 = vpack.c.b16 %v1800, %v1824
      %v1833 = vpack.c.b16 %v1801, %v1825
      %v1834 = vpack.c.b16 %v1802, %v1826
      %v1835 = vpack.c.b16 %v1803, %v1827
      %v1837 = vshrl.u32 %v1828, 16
      %v1839 = vshll.u32 %v1828, 16
      %v1841 = vrot.slane %v1839, 1
      %v1842 = vor.u32 %v1837, %v1841
      %v1844 = vshrl.u32 %v1829, 16
      %v1846 = vshll.u32 %v1829, 16
      %v1848 = vrot.slane %v1846, 1
      %v1849 = vor.u32 %v1844, %v1848
      %v1851 = vshrl.u32 %v1830, 16
      %v1853 = vshll.u32 %v1830, 16
      %v1855 = vrot.slane %v1853, 1
      %v1856 = vor.u32 %v1851, %v1855
      %v1858 = vshrl.u32 %v1831, 16
      %v1860 = vshll.u32 %v1831, 16
      %v1862 = vrot.slane %v1860, 1
      %v1863 = vor.u32 %v1858, %v1862
      %v1865 = vshrl.u32 %v1832, 16
      %v1867 = vshll.u32 %v1832, 16
      %v1869 = vrot.slane %v1867, 1
      %v1870 = vor.u32 %v1865, %v1869
      %v1872 = vshrl.u32 %v1833, 16
      %v1874 = vshll.u32 %v1833, 16
      %v1876 = vrot.slane %v1874, 1
      %v1877 = vor.u32 %v1872, %v1876
      %v1879 = vshrl.u32 %v1834, 16
      %v1881 = vshll.u32 %v1834, 16
      %v1883 = vrot.slane %v1881, 1
      %v1884 = vor.u32 %v1879, %v1883
      %v1886 = vshrl.u32 %v1835, 16
      %v1888 = vshll.u32 %v1835, 16
      %v1890 = vrot.slane %v1888, 1
      %v1891 = vor.u32 %v1886, %v1890
      %1892 = vrot.lane.b32.xlu0 %v1842, 16
      %v1893 = vpop.permute.xlu0 %1892
      %1894 = vrot.lane.b32.xlu0 %v1849, 16
      %v1895 = vpop.permute.xlu0 %1894
      %1896 = vrot.lane.b32.xlu0 %v1856, 16
      %v1897 = vpop.permute.xlu0 %1896
      %1898 = vrot.lane.b32.xlu0 %v1863, 16
      %v1899 = vpop.permute.xlu0 %1898
      %1900 = vrot.lane.b32.xlu0 %v1870, 16
      %v1901 = vpop.permute.xlu0 %1900
      %1902 = vrot.lane.b32.xlu0 %v1877, 16
      %v1903 = vpop.permute.xlu0 %1902
      %1904 = vrot.lane.b32.xlu0 %v1884, 16
      %v1905 = vpop.permute.xlu0 %1904
      %1906 = vrot.lane.b32.xlu0 %v1891, 16
      %v1907 = vpop.permute.xlu0 %1906
      %v1916 = vunpack.c.l.b16 %v547
      %v1917 = vunpack.c.l.b16 %v548
      %v1918 = vunpack.c.l.b16 %v549
      %v1919 = vunpack.c.l.b16 %v550
      %v1920 = vunpack.c.l.b16 %v551
      %v1921 = vunpack.c.l.b16 %v552
      %v1922 = vunpack.c.l.b16 %v553
      %v1923 = vunpack.c.l.b16 %v554
      %v1924 = vpack.c.b16 %v1916, %v1916
      %v1925 = vpack.c.b16 %v1917, %v1917
      %v1926 = vpack.c.b16 %v1918, %v1918
      %v1927 = vpack.c.b16 %v1919, %v1919
      %v1928 = vpack.c.b16 %v1920, %v1920
      %v1929 = vpack.c.b16 %v1921, %v1921
      %v1930 = vpack.c.b16 %v1922, %v1922
      %v1931 = vpack.c.b16 %v1923, %v1923
      %v1933 = vshrl.u32 %v1924, 16
      %v1935 = vrot.slane %v1933, 7
      %v1936 = vshll.u32 %v1924, 16
      %v1938 = vor.u32 %v1935, %v1936
      %v1940 = vshrl.u32 %v1925, 16
      %v1942 = vrot.slane %v1940, 7
      %v1943 = vshll.u32 %v1925, 16
      %v1945 = vor.u32 %v1942, %v1943
      %v1947 = vshrl.u32 %v1926, 16
      %v1949 = vrot.slane %v1947, 7
      %v1950 = vshll.u32 %v1926, 16
      %v1952 = vor.u32 %v1949, %v1950
      %v1954 = vshrl.u32 %v1927, 16
      %v1956 = vrot.slane %v1954, 7
      %v1957 = vshll.u32 %v1927, 16
      %v1959 = vor.u32 %v1956, %v1957
      %v1961 = vshrl.u32 %v1928, 16
      %v1963 = vrot.slane %v1961, 7
      %v1964 = vshll.u32 %v1928, 16
      %v1966 = vor.u32 %v1963, %v1964
      %v1968 = vshrl.u32 %v1929, 16
      %v1970 = vrot.slane %v1968, 7
      %v1971 = vshll.u32 %v1929, 16
      %v1973 = vor.u32 %v1970, %v1971
      %v1975 = vshrl.u32 %v1930, 16
      %v1977 = vrot.slane %v1975, 7
      %v1978 = vshll.u32 %v1930, 16
      %v1980 = vor.u32 %v1977, %v1978
      %v1982 = vshrl.u32 %v1931, 16
      %v1984 = vrot.slane %v1982, 7
      %v1985 = vshll.u32 %v1931, 16
      %v1987 = vor.u32 %v1984, %v1985
      %1988 = vrot.lane.b32.xlu0 %v1938, 32
      %v1989 = vpop.permute.xlu0 %1988
      %1990 = vrot.lane.b32.xlu0 %v1945, 32
      %v1991 = vpop.permute.xlu0 %1990
      %1992 = vrot.lane.b32.xlu0 %v1952, 32
      %v1993 = vpop.permute.xlu0 %1992
      %1994 = vrot.lane.b32.xlu0 %v1959, 32
      %v1995 = vpop.permute.xlu0 %1994
      %1996 = vrot.lane.b32.xlu0 %v1966, 32
      %v1997 = vpop.permute.xlu0 %1996
      %1998 = vrot.lane.b32.xlu0 %v1973, 32
      %v1999 = vpop.permute.xlu0 %1998
      %2000 = vrot.lane.b32.xlu0 %v1980, 32
      %v2001 = vpop.permute.xlu0 %2000
      %2002 = vrot.lane.b32.xlu0 %v1987, 32
      %v2003 = vpop.permute.xlu0 %2002
      %v2012 = vunpack.c.l.b16 %v555
      %v2013 = vunpack.c.l.b16 %v556
      %v2014 = vunpack.c.l.b16 %v557
      %v2015 = vunpack.c.l.b16 %v558
      %v2016 = vunpack.c.l.b16 %v559
      %v2017 = vunpack.c.l.b16 %v560
      %v2018 = vunpack.c.l.b16 %v561
      %v2019 = vunpack.c.l.b16 %v562
      %v2020 = vpack.c.b16 %v2012, %v1916
      %v2021 = vpack.c.b16 %v2013, %v1917
      %v2022 = vpack.c.b16 %v2014, %v1918
      %v2023 = vpack.c.b16 %v2015, %v1919
      %v2024 = vpack.c.b16 %v2016, %v1920
      %v2025 = vpack.c.b16 %v2017, %v1921
      %v2026 = vpack.c.b16 %v2018, %v1922
      %v2027 = vpack.c.b16 %v2019, %v1923
      %2028 = vrot.lane.b32.xlu0 %v2020, 48
      %v2029 = vpop.permute.xlu0 %2028
      %2030 = vrot.lane.b32.xlu0 %v2021, 48
      %v2031 = vpop.permute.xlu0 %2030
      %2032 = vrot.lane.b32.xlu0 %v2022, 48
      %v2033 = vpop.permute.xlu0 %2032
      %2034 = vrot.lane.b32.xlu0 %v2023, 48
      %v2035 = vpop.permute.xlu0 %2034
      %2036 = vrot.lane.b32.xlu0 %v2024, 48
      %v2037 = vpop.permute.xlu0 %2036
      %2038 = vrot.lane.b32.xlu0 %v2025, 48
      %v2039 = vpop.permute.xlu0 %2038
      %2040 = vrot.lane.b32.xlu0 %v2026, 48
      %v2041 = vpop.permute.xlu0 %2040
      %2042 = vrot.lane.b32.xlu0 %v2027, 48
      %v2043 = vpop.permute.xlu0 %2042
      %v2052 = vunpack.c.l.b16 %v563
      %v2053 = vunpack.c.l.b16 %v564
      %v2054 = vunpack.c.l.b16 %v565
      %v2055 = vunpack.c.l.b16 %v566
      %v2056 = vunpack.c.l.b16 %v567
      %v2057 = vunpack.c.l.b16 %v568
      %v2058 = vunpack.c.l.b16 %v569
      %v2059 = vunpack.c.l.b16 %v570
      %v2060 = vpack.c.b16 %v2012, %v2052
      %v2061 = vpack.c.b16 %v2013, %v2053
      %v2062 = vpack.c.b16 %v2014, %v2054
      %v2063 = vpack.c.b16 %v2015, %v2055
      %v2064 = vpack.c.b16 %v2016, %v2056
      %v2065 = vpack.c.b16 %v2017, %v2057
      %v2066 = vpack.c.b16 %v2018, %v2058
      %v2067 = vpack.c.b16 %v2019, %v2059
      %v2069 = vshrl.u32 %v2060, 16
      %v2071 = vshll.u32 %v2060, 16
      %v2073 = vrot.slane %v2071, 1
      %v2074 = vor.u32 %v2069, %v2073
      %v2076 = vshrl.u32 %v2061, 16
      %v2078 = vshll.u32 %v2061, 16
      %v2080 = vrot.slane %v2078, 1
      %v2081 = vor.u32 %v2076, %v2080
      %v2083 = vshrl.u32 %v2062, 16
      %v2085 = vshll.u32 %v2062, 16
      %v2087 = vrot.slane %v2085, 1
      %v2088 = vor.u32 %v2083, %v2087
      %v2090 = vshrl.u32 %v2063, 16
      %v2092 = vshll.u32 %v2063, 16
      %v2094 = vrot.slane %v2092, 1
      %v2095 = vor.u32 %v2090, %v2094
      %v2097 = vshrl.u32 %v2064, 16
      %v2099 = vshll.u32 %v2064, 16
      %v2101 = vrot.slane %v2099, 1
      %v2102 = vor.u32 %v2097, %v2101
      %v2104 = vshrl.u32 %v2065, 16
      %v2106 = vshll.u32 %v2065, 16
      %v2108 = vrot.slane %v2106, 1
      %v2109 = vor.u32 %v2104, %v2108
      %v2111 = vshrl.u32 %v2066, 16
      %v2113 = vshll.u32 %v2066, 16
      %v2115 = vrot.slane %v2113, 1
      %v2116 = vor.u32 %v2111, %v2115
      %v2118 = vshrl.u32 %v2067, 16
      %v2120 = vshll.u32 %v2067, 16
      %v2122 = vrot.slane %v2120, 1
      %v2123 = vor.u32 %v2118, %v2122
      %2124 = vrot.lane.b32.xlu0 %v2074, 64
      %v2125 = vpop.permute.xlu0 %2124
      %2126 = vrot.lane.b32.xlu0 %v2081, 64
      %v2127 = vpop.permute.xlu0 %2126
      %2128 = vrot.lane.b32.xlu0 %v2088, 64
      %v2129 = vpop.permute.xlu0 %2128
      %2130 = vrot.lane.b32.xlu0 %v2095, 64
      %v2131 = vpop.permute.xlu0 %2130
      %2132 = vrot.lane.b32.xlu0 %v2102, 64
      %v2133 = vpop.permute.xlu0 %2132
      %2134 = vrot.lane.b32.xlu0 %v2109, 64
      %v2135 = vpop.permute.xlu0 %2134
      %2136 = vrot.lane.b32.xlu0 %v2116, 64
      %v2137 = vpop.permute.xlu0 %2136
      %2138 = vrot.lane.b32.xlu0 %v2123, 64
      %v2139 = vpop.permute.xlu0 %2138
      %v2148 = vunpack.c.l.b16 %v572
      %v2149 = vunpack.c.l.b16 %v573
      %v2150 = vunpack.c.l.b16 %v574
      %v2151 = vunpack.c.l.b16 %v575
      %v2152 = vunpack.c.l.b16 %v576
      %v2153 = vunpack.c.l.b16 %v577
      %v2154 = vunpack.c.l.b16 %v578
      %v2155 = vunpack.c.l.b16 %v579
      %v2156 = vpack.c.b16 %v2148, %v2148
      %v2157 = vpack.c.b16 %v2149, %v2149
      %v2158 = vpack.c.b16 %v2150, %v2150
      %v2159 = vpack.c.b16 %v2151, %v2151
      %v2160 = vpack.c.b16 %v2152, %v2152
      %v2161 = vpack.c.b16 %v2153, %v2153
      %v2162 = vpack.c.b16 %v2154, %v2154
      %v2163 = vpack.c.b16 %v2155, %v2155
      %v2165 = vshrl.u32 %v2156, 16
      %v2167 = vrot.slane %v2165, 7
      %v2168 = vshll.u32 %v2156, 16
      %v2170 = vor.u32 %v2167, %v2168
      %v2172 = vshrl.u32 %v2157, 16
      %v2174 = vrot.slane %v2172, 7
      %v2175 = vshll.u32 %v2157, 16
      %v2177 = vor.u32 %v2174, %v2175
      %v2179 = vshrl.u32 %v2158, 16
      %v2181 = vrot.slane %v2179, 7
      %v2182 = vshll.u32 %v2158, 16
      %v2184 = vor.u32 %v2181, %v2182
      %v2186 = vshrl.u32 %v2159, 16
      %v2188 = vrot.slane %v2186, 7
      %v2189 = vshll.u32 %v2159, 16
      %v2191 = vor.u32 %v2188, %v2189
      %v2193 = vshrl.u32 %v2160, 16
      %v2195 = vrot.slane %v2193, 7
      %v2196 = vshll.u32 %v2160, 16
      %v2198 = vor.u32 %v2195, %v2196
      %v2200 = vshrl.u32 %v2161, 16
      %v2202 = vrot.slane %v2200, 7
      %v2203 = vshll.u32 %v2161, 16
      %v2205 = vor.u32 %v2202, %v2203
      %v2207 = vshrl.u32 %v2162, 16
      %v2209 = vrot.slane %v2207, 7
      %v2210 = vshll.u32 %v2162, 16
      %v2212 = vor.u32 %v2209, %v2210
      %v2214 = vshrl.u32 %v2163, 16
      %v2216 = vrot.slane %v2214, 7
      %v2217 = vshll.u32 %v2163, 16
      %v2219 = vor.u32 %v2216, %v2217
      %2220 = vrot.lane.b32.xlu0 %v2170, 80
      %v2221 = vpop.permute.xlu0 %2220
      %2222 = vrot.lane.b32.xlu0 %v2177, 80
      %v2223 = vpop.permute.xlu0 %2222
      %2224 = vrot.lane.b32.xlu0 %v2184, 80
      %v2225 = vpop.permute.xlu0 %2224
      %2226 = vrot.lane.b32.xlu0 %v2191, 80
      %v2227 = vpop.permute.xlu0 %2226
      %2228 = vrot.lane.b32.xlu0 %v2198, 80
      %v2229 = vpop.permute.xlu0 %2228
      %2230 = vrot.lane.b32.xlu0 %v2205, 80
      %v2231 = vpop.permute.xlu0 %2230
      %2232 = vrot.lane.b32.xlu0 %v2212, 80
      %v2233 = vpop.permute.xlu0 %2232
      %2234 = vrot.lane.b32.xlu0 %v2219, 80
      %v2235 = vpop.permute.xlu0 %2234
      %v2244 = vunpack.c.l.b16 %v580
      %v2245 = vunpack.c.l.b16 %v581
      %v2246 = vunpack.c.l.b16 %v582
      %v2247 = vunpack.c.l.b16 %v583
      %v2248 = vunpack.c.l.b16 %v584
      %v2249 = vunpack.c.l.b16 %v585
      %v2250 = vunpack.c.l.b16 %v586
      %v2251 = vunpack.c.l.b16 %v587
      %v2252 = vpack.c.b16 %v2244, %v2148
      %v2253 = vpack.c.b16 %v2245, %v2149
      %v2254 = vpack.c.b16 %v2246, %v2150
      %v2255 = vpack.c.b16 %v2247, %v2151
      %v2256 = vpack.c.b16 %v2248, %v2152
      %v2257 = vpack.c.b16 %v2249, %v2153
      %v2258 = vpack.c.b16 %v2250, %v2154
      %v2259 = vpack.c.b16 %v2251, %v2155
      %2260 = vrot.lane.b32.xlu0 %v2252, 96
      %v2261 = vpop.permute.xlu0 %2260
      %2262 = vrot.lane.b32.xlu0 %v2253, 96
      %v2263 = vpop.permute.xlu0 %2262
      %2264 = vrot.lane.b32.xlu0 %v2254, 96
      %v2265 = vpop.permute.xlu0 %2264
      %2266 = vrot.lane.b32.xlu0 %v2255, 96
      %v2267 = vpop.permute.xlu0 %2266
      %2268 = vrot.lane.b32.xlu0 %v2256, 96
      %v2269 = vpop.permute.xlu0 %2268
      %2270 = vrot.lane.b32.xlu0 %v2257, 96
      %v2271 = vpop.permute.xlu0 %2270
      %2272 = vrot.lane.b32.xlu0 %v2258, 96
      %v2273 = vpop.permute.xlu0 %2272
      %2274 = vrot.lane.b32.xlu0 %v2259, 96
      %v2275 = vpop.permute.xlu0 %2274
      %v2284 = vunpack.c.l.b16 %v588
      %v2285 = vunpack.c.l.b16 %v589
      %v2286 = vunpack.c.l.b16 %v590
      %v2287 = vunpack.c.l.b16 %v591
      %v2288 = vunpack.c.l.b16 %v592
      %v2289 = vunpack.c.l.b16 %v593
      %v2290 = vunpack.c.l.b16 %v594
      %v2291 = vunpack.c.l.b16 %v595
      %v2292 = vpack.c.b16 %v2244, %v2284
      %v2293 = vpack.c.b16 %v2245, %v2285
      %v2294 = vpack.c.b16 %v2246, %v2286
      %v2295 = vpack.c.b16 %v2247, %v2287
      %v2296 = vpack.c.b16 %v2248, %v2288
      %v2297 = vpack.c.b16 %v2249, %v2289
      %v2298 = vpack.c.b16 %v2250, %v2290
      %v2299 = vpack.c.b16 %v2251, %v2291
      %v2301 = vshrl.u32 %v2292, 16
      %v2303 = vshll.u32 %v2292, 16
      %v2305 = vrot.slane %v2303, 1
      %v2306 = vor.u32 %v2301, %v2305
      %v2308 = vshrl.u32 %v2293, 16
      %v2310 = vshll.u32 %v2293, 16
      %v2312 = vrot.slane %v2310, 1
      %v2313 = vor.u32 %v2308, %v2312
      %v2315 = vshrl.u32 %v2294, 16
      %v2317 = vshll.u32 %v2294, 16
      %v2319 = vrot.slane %v2317, 1
      %v2320 = vor.u32 %v2315, %v2319
      %v2322 = vshrl.u32 %v2295, 16
      %v2324 = vshll.u32 %v2295, 16
      %v2326 = vrot.slane %v2324, 1
      %v2327 = vor.u32 %v2322, %v2326
      %v2329 = vshrl.u32 %v2296, 16
      %v2331 = vshll.u32 %v2296, 16
      %v2333 = vrot.slane %v2331, 1
      %v2334 = vor.u32 %v2329, %v2333
      %v2336 = vshrl.u32 %v2297, 16
      %v2338 = vshll.u32 %v2297, 16
      %v2340 = vrot.slane %v2338, 1
      %v2341 = vor.u32 %v2336, %v2340
      %v2343 = vshrl.u32 %v2298, 16
      %v2345 = vshll.u32 %v2298, 16
      %v2347 = vrot.slane %v2345, 1
      %v2348 = vor.u32 %v2343, %v2347
      %v2350 = vshrl.u32 %v2299, 16
      %v2352 = vshll.u32 %v2299, 16
      %v2354 = vrot.slane %v2352, 1
      %v2355 = vor.u32 %v2350, %v2354
      %2356 = vrot.lane.b32.xlu0 %v2306, 112
      %v2357 = vpop.permute.xlu0 %2356
      %2358 = vrot.lane.b32.xlu0 %v2313, 112
      %v2359 = vpop.permute.xlu0 %2358
      %2360 = vrot.lane.b32.xlu0 %v2320, 112
      %v2361 = vpop.permute.xlu0 %2360
      %2362 = vrot.lane.b32.xlu0 %v2327, 112
      %v2363 = vpop.permute.xlu0 %2362
      %2364 = vrot.lane.b32.xlu0 %v2334, 112
      %v2365 = vpop.permute.xlu0 %2364
      %2366 = vrot.lane.b32.xlu0 %v2341, 112
      %v2367 = vpop.permute.xlu0 %2366
      %2368 = vrot.lane.b32.xlu0 %v2348, 112
      %v2369 = vpop.permute.xlu0 %2368
      %2370 = vrot.lane.b32.xlu0 %v2355, 112
      %v2371 = vpop.permute.xlu0 %2370
      %v2380 = vunpack.c.l.b16 %v597
      %v2381 = vunpack.c.l.b16 %v598
      %v2382 = vunpack.c.l.b16 %v599
      %v2383 = vunpack.c.l.b16 %v600
      %v2384 = vunpack.c.l.b16 %v601
      %v2385 = vunpack.c.l.b16 %v602
      %v2386 = vunpack.c.l.b16 %v603
      %v2387 = vunpack.c.l.b16 %v604
      %v2388 = vpack.c.b16 %v2380, %v2380
      %v2389 = vpack.c.b16 %v2381, %v2381
      %v2390 = vpack.c.b16 %v2382, %v2382
      %v2391 = vpack.c.b16 %v2383, %v2383
      %v2392 = vpack.c.b16 %v2384, %v2384
      %v2393 = vpack.c.b16 %v2385, %v2385
      %v2394 = vpack.c.b16 %v2386, %v2386
      %v2395 = vpack.c.b16 %v2387, %v2387
      %v2397 = vshrl.u32 %v2388, 16
      %v2399 = vrot.slane %v2397, 7
      %v2400 = vshll.u32 %v2388, 16
      %v2402 = vor.u32 %v2399, %v2400
      %v2404 = vshrl.u32 %v2389, 16
      %v2406 = vrot.slane %v2404, 7
      %v2407 = vshll.u32 %v2389, 16
      %v2409 = vor.u32 %v2406, %v2407
      %v2411 = vshrl.u32 %v2390, 16
      %v2413 = vrot.slane %v2411, 7
      %v2414 = vshll.u32 %v2390, 16
      %v2416 = vor.u32 %v2413, %v2414
      %v2418 = vshrl.u32 %v2391, 16
      %v2420 = vrot.slane %v2418, 7
      %v2421 = vshll.u32 %v2391, 16
      %v2423 = vor.u32 %v2420, %v2421
      %v2425 = vshrl.u32 %v2392, 16
      %v2427 = vrot.slane %v2425, 7
      %v2428 = vshll.u32 %v2392, 16
      %v2430 = vor.u32 %v2427, %v2428
      %v2432 = vshrl.u32 %v2393, 16
      %v2434 = vrot.slane %v2432, 7
      %v2435 = vshll.u32 %v2393, 16
      %v2437 = vor.u32 %v2434, %v2435
      %v2439 = vshrl.u32 %v2394, 16
      %v2441 = vrot.slane %v2439, 7
      %v2442 = vshll.u32 %v2394, 16
      %v2444 = vor.u32 %v2441, %v2442
      %v2446 = vshrl.u32 %v2395, 16
      %v2448 = vrot.slane %v2446, 7
      %v2449 = vshll.u32 %v2395, 16
      %v2451 = vor.u32 %v2448, %v2449
      %v2460 = vunpack.c.l.b16 %v605
      %v2461 = vunpack.c.l.b16 %v606
      %v2462 = vunpack.c.l.b16 %v607
      %v2463 = vunpack.c.l.b16 %v608
      %v2464 = vunpack.c.l.b16 %v609
      %v2465 = vunpack.c.l.b16 %v610
      %v2466 = vunpack.c.l.b16 %v611
      %v2467 = vunpack.c.l.b16 %v612
      %v2468 = vpack.c.b16 %v2460, %v2380
      %v2469 = vpack.c.b16 %v2461, %v2381
      %v2470 = vpack.c.b16 %v2462, %v2382
      %v2471 = vpack.c.b16 %v2463, %v2383
      %v2472 = vpack.c.b16 %v2464, %v2384
      %v2473 = vpack.c.b16 %v2465, %v2385
      %v2474 = vpack.c.b16 %v2466, %v2386
      %v2475 = vpack.c.b16 %v2467, %v2387
      %2476 = vrot.lane.b32.xlu0 %v2468, 16
      %v2477 = vpop.permute.xlu0 %2476
      %2478 = vrot.lane.b32.xlu0 %v2469, 16
      %v2479 = vpop.permute.xlu0 %2478
      %2480 = vrot.lane.b32.xlu0 %v2470, 16
      %v2481 = vpop.permute.xlu0 %2480
      %2482 = vrot.lane.b32.xlu0 %v2471, 16
      %v2483 = vpop.permute.xlu0 %2482
      %2484 = vrot.lane.b32.xlu0 %v2472, 16
      %v2485 = vpop.permute.xlu0 %2484
      %2486 = vrot.lane.b32.xlu0 %v2473, 16
      %v2487 = vpop.permute.xlu0 %2486
      %2488 = vrot.lane.b32.xlu0 %v2474, 16
      %v2489 = vpop.permute.xlu0 %2488
      %2490 = vrot.lane.b32.xlu0 %v2475, 16
      %v2491 = vpop.permute.xlu0 %2490
      %v2500 = vunpack.c.l.b16 %v613
      %v2501 = vunpack.c.l.b16 %v614
      %v2502 = vunpack.c.l.b16 %v615
      %v2503 = vunpack.c.l.b16 %v616
      %v2504 = vunpack.c.l.b16 %v617
      %v2505 = vunpack.c.l.b16 %v618
      %v2506 = vunpack.c.l.b16 %v619
      %v2507 = vunpack.c.l.b16 %v620
      %v2508 = vpack.c.b16 %v2460, %v2500
      %v2509 = vpack.c.b16 %v2461, %v2501
      %v2510 = vpack.c.b16 %v2462, %v2502
      %v2511 = vpack.c.b16 %v2463, %v2503
      %v2512 = vpack.c.b16 %v2464, %v2504
      %v2513 = vpack.c.b16 %v2465, %v2505
      %v2514 = vpack.c.b16 %v2466, %v2506
      %v2515 = vpack.c.b16 %v2467, %v2507
      %v2517 = vshrl.u32 %v2508, 16
      %v2519 = vshll.u32 %v2508, 16
      %v2521 = vrot.slane %v2519, 1
      %v2522 = vor.u32 %v2517, %v2521
      %v2524 = vshrl.u32 %v2509, 16
      %v2526 = vshll.u32 %v2509, 16
      %v2528 = vrot.slane %v2526, 1
      %v2529 = vor.u32 %v2524, %v2528
      %v2531 = vshrl.u32 %v2510, 16
      %v2533 = vshll.u32 %v2510, 16
      %v2535 = vrot.slane %v2533, 1
      %v2536 = vor.u32 %v2531, %v2535
      %v2538 = vshrl.u32 %v2511, 16
      %v2540 = vshll.u32 %v2511, 16
      %v2542 = vrot.slane %v2540, 1
      %v2543 = vor.u32 %v2538, %v2542
      %v2545 = vshrl.u32 %v2512, 16
      %v2547 = vshll.u32 %v2512, 16
      %v2549 = vrot.slane %v2547, 1
      %v2550 = vor.u32 %v2545, %v2549
      %v2552 = vshrl.u32 %v2513, 16
      %v2554 = vshll.u32 %v2513, 16
      %v2556 = vrot.slane %v2554, 1
      %v2557 = vor.u32 %v2552, %v2556
      %v2559 = vshrl.u32 %v2514, 16
      %v2561 = vshll.u32 %v2514, 16
      %v2563 = vrot.slane %v2561, 1
      %v2564 = vor.u32 %v2559, %v2563
      %v2566 = vshrl.u32 %v2515, 16
      %v2568 = vshll.u32 %v2515, 16
      %v2570 = vrot.slane %v2568, 1
      %v2571 = vor.u32 %v2566, %v2570
      %2572 = vrot.lane.b32.xlu0 %v2522, 32
      %v2573 = vpop.permute.xlu0 %2572
      %2574 = vrot.lane.b32.xlu0 %v2529, 32
      %v2575 = vpop.permute.xlu0 %2574
      %2576 = vrot.lane.b32.xlu0 %v2536, 32
      %v2577 = vpop.permute.xlu0 %2576
      %2578 = vrot.lane.b32.xlu0 %v2543, 32
      %v2579 = vpop.permute.xlu0 %2578
      %2580 = vrot.lane.b32.xlu0 %v2550, 32
      %v2581 = vpop.permute.xlu0 %2580
      %2582 = vrot.lane.b32.xlu0 %v2557, 32
      %v2583 = vpop.permute.xlu0 %2582
      %2584 = vrot.lane.b32.xlu0 %v2564, 32
      %v2585 = vpop.permute.xlu0 %2584
      %2586 = vrot.lane.b32.xlu0 %v2571, 32
      %v2587 = vpop.permute.xlu0 %2586
      %v2590 = vsel %vm1541, %v1804, %v1893
      %v2593 = vsel %vm1541, %v1805, %v1895
      %v2596 = vsel %vm1541, %v1806, %v1897
      %v2599 = vsel %vm1541, %v1807, %v1899
      %v2602 = vsel %vm1541, %v1808, %v1901
      %v2605 = vsel %vm1541, %v1809, %v1903
      %v2608 = vsel %vm1541, %v1810, %v1905
      %v2611 = vsel %vm1541, %v1811, %v1907
      %v2613 = vsel %vm1566, %v2590, %v1989
      %v2615 = vsel %vm1566, %v2593, %v1991
      %v2617 = vsel %vm1566, %v2596, %v1993
      %v2619 = vsel %vm1566, %v2599, %v1995
      %v2621 = vsel %vm1566, %v2602, %v1997
      %v2623 = vsel %vm1566, %v2605, %v1999
      %v2625 = vsel %vm1566, %v2608, %v2001
      %v2627 = vsel %vm1566, %v2611, %v2003
      %v2629 = vsel %vm1583, %v2613, %v2029
      %v2631 = vsel %vm1583, %v2615, %v2031
      %v2633 = vsel %vm1583, %v2617, %v2033
      %v2635 = vsel %vm1583, %v2619, %v2035
      %v2637 = vsel %vm1583, %v2621, %v2037
      %v2639 = vsel %vm1583, %v2623, %v2039
      %v2641 = vsel %vm1583, %v2625, %v2041
      %v2643 = vsel %vm1583, %v2627, %v2043
      %v2645 = vsel %vm1600, %v2629, %v2125
      %v2647 = vsel %vm1600, %v2631, %v2127
      %v2649 = vsel %vm1600, %v2633, %v2129
      %v2651 = vsel %vm1600, %v2635, %v2131
      %v2653 = vsel %vm1600, %v2637, %v2133
      %v2655 = vsel %vm1600, %v2639, %v2135
      %v2657 = vsel %vm1600, %v2641, %v2137
      %v2659 = vsel %vm1600, %v2643, %v2139
      %v2661 = vsel %vm1617, %v2645, %v2221
      %v2663 = vsel %vm1617, %v2647, %v2223
      %v2665 = vsel %vm1617, %v2649, %v2225
      %v2667 = vsel %vm1617, %v2651, %v2227
      %v2669 = vsel %vm1617, %v2653, %v2229
      %v2671 = vsel %vm1617, %v2655, %v2231
      %v2673 = vsel %vm1617, %v2657, %v2233
      %v2675 = vsel %vm1617, %v2659, %v2235
      %v2677 = vsel %vm1634, %v2661, %v2261
      %v2679 = vsel %vm1634, %v2663, %v2263
      %v2681 = vsel %vm1634, %v2665, %v2265
      %v2683 = vsel %vm1634, %v2667, %v2267
      %v2685 = vsel %vm1634, %v2669, %v2269
      %v2687 = vsel %vm1634, %v2671, %v2271
      %v2689 = vsel %vm1634, %v2673, %v2273
      %v2691 = vsel %vm1634, %v2675, %v2275
      %v2693 = vsel %vm1651, %v2677, %v2357
      %v2695 = vsel %vm1651, %v2679, %v2359
      %v2697 = vsel %vm1651, %v2681, %v2361
      %v2699 = vsel %vm1651, %v2683, %v2363
      %v2701 = vsel %vm1651, %v2685, %v2365
      %v2703 = vsel %vm1651, %v2687, %v2367
      %v2705 = vsel %vm1651, %v2689, %v2369
      %v2707 = vsel %vm1651, %v2691, %v2371
      %v2710 = vsel %vm1541, %v2402, %v2477
      %v2713 = vsel %vm1541, %v2409, %v2479
      %v2716 = vsel %vm1541, %v2416, %v2481
      %v2719 = vsel %vm1541, %v2423, %v2483
      %v2722 = vsel %vm1541, %v2430, %v2485
      %v2725 = vsel %vm1541, %v2437, %v2487
      %v2728 = vsel %vm1541, %v2444, %v2489
      %v2731 = vsel %vm1541, %v2451, %v2491
      %v2733 = vsel %vm1566, %v2710, %v2573
      %v2735 = vsel %vm1566, %v2713, %v2575
      %v2737 = vsel %vm1566, %v2716, %v2577
      %v2739 = vsel %vm1566, %v2719, %v2579
      %v2741 = vsel %vm1566, %v2722, %v2581
      %v2743 = vsel %vm1566, %v2725, %v2583
      %v2745 = vsel %vm1566, %v2728, %v2585
      %v2747 = vsel %vm1566, %v2731, %v2587
      %v2748 = vshrl.u32 %v2693, 16
      %v2750 = vshll.u32 %v2693, 16
      %v2752 = vrot.slane %v2750, 1
      %v2753 = vor.u32 %v2748, %v2752
      %v2754 = vshrl.u32 %v2733, 16
      %v2756 = vshll.u32 %v2733, 16
      %v2758 = vrot.slane %v2756, 1
      %v2759 = vor.u32 %v2754, %v2758
      %v2760 = vshrl.u32 %v2695, 16
      %v2762 = vshll.u32 %v2695, 16
      %v2764 = vrot.slane %v2762, 1
      %v2765 = vor.u32 %v2760, %v2764
      %v2766 = vshrl.u32 %v2735, 16
      %v2768 = vshll.u32 %v2735, 16
      %v2770 = vrot.slane %v2768, 1
      %v2771 = vor.u32 %v2766, %v2770
      %v2772 = vshrl.u32 %v2697, 16
      %v2774 = vshll.u32 %v2697, 16
      %v2776 = vrot.slane %v2774, 1
      %v2777 = vor.u32 %v2772, %v2776
      %v2778 = vshrl.u32 %v2737, 16
      %v2780 = vshll.u32 %v2737, 16
      %v2782 = vrot.slane %v2780, 1
      %v2783 = vor.u32 %v2778, %v2782
      %v2784 = vshrl.u32 %v2699, 16
      %v2786 = vshll.u32 %v2699, 16
      %v2788 = vrot.slane %v2786, 1
      %v2789 = vor.u32 %v2784, %v2788
      %v2790 = vshrl.u32 %v2739, 16
      %v2792 = vshll.u32 %v2739, 16
      %v2794 = vrot.slane %v2792, 1
      %v2795 = vor.u32 %v2790, %v2794
      %v2796 = vshrl.u32 %v2701, 16
      %v2798 = vshll.u32 %v2701, 16
      %v2800 = vrot.slane %v2798, 1
      %v2801 = vor.u32 %v2796, %v2800
      %v2802 = vshrl.u32 %v2741, 16
      %v2804 = vshll.u32 %v2741, 16
      %v2806 = vrot.slane %v2804, 1
      %v2807 = vor.u32 %v2802, %v2806
      %v2808 = vshrl.u32 %v2703, 16
      %v2810 = vshll.u32 %v2703, 16
      %v2812 = vrot.slane %v2810, 1
      %v2813 = vor.u32 %v2808, %v2812
      %v2814 = vshrl.u32 %v2743, 16
      %v2816 = vshll.u32 %v2743, 16
      %v2818 = vrot.slane %v2816, 1
      %v2819 = vor.u32 %v2814, %v2818
      %v2820 = vshrl.u32 %v2705, 16
      %v2822 = vshll.u32 %v2705, 16
      %v2824 = vrot.slane %v2822, 1
      %v2825 = vor.u32 %v2820, %v2824
      %v2826 = vshrl.u32 %v2745, 16
      %v2828 = vshll.u32 %v2745, 16
      %v2830 = vrot.slane %v2828, 1
      %v2831 = vor.u32 %v2826, %v2830
      %v2832 = vshrl.u32 %v2707, 16
      %v2834 = vshll.u32 %v2707, 16
      %v2836 = vrot.slane %v2834, 1
      %v2837 = vor.u32 %v2832, %v2836
      %v2838 = vshrl.u32 %v2747, 16
      %v2840 = vshll.u32 %v2747, 16
      %v2842 = vrot.slane %v2840, 1
      %v2843 = vor.u32 %v2838, %v2842
      %v2860 = vunpack.c.l.b16 %v1653
      %v2861 = vunpack.c.l.b16 %v1773
      %v2862 = vunpack.c.l.b16 %v2753
      %v2863 = vunpack.c.l.b16 %v2759
      %v2864 = vunpack.c.l.b16 %v1655
      %v2865 = vunpack.c.l.b16 %v1775
      %v2866 = vunpack.c.l.b16 %v2765
      %v2867 = vunpack.c.l.b16 %v2771
      %v2868 = vunpack.c.l.b16 %v1657
      %v2869 = vunpack.c.l.b16 %v1777
      %v2870 = vunpack.c.l.b16 %v2777
      %v2871 = vunpack.c.l.b16 %v2783
      %v2872 = vunpack.c.l.b16 %v1659
      %v2873 = vunpack.c.l.b16 %v1779
      %v2874 = vunpack.c.l.b16 %v2789
      %v2875 = vunpack.c.l.b16 %v2795
      %v2876 = vunpack.c.l.b16 %v1661
      %v2877 = vunpack.c.l.b16 %v1781
      %v2878 = vunpack.c.l.b16 %v2801
      %v2879 = vunpack.c.l.b16 %v2807
      %v2880 = vunpack.c.l.b16 %v1663
      %v2881 = vunpack.c.l.b16 %v1783
      %v2882 = vunpack.c.l.b16 %v2813
      %v2883 = vunpack.c.l.b16 %v2819
      %v2884 = vunpack.c.l.b16 %v1665
      %v2885 = vunpack.c.l.b16 %v1785
      %v2886 = vunpack.c.l.b16 %v2825
      %v2887 = vunpack.c.l.b16 %v2831
      %v2888 = vunpack.c.l.b16 %v1667
      %v2889 = vunpack.c.l.b16 %v1787
      %v2890 = vunpack.c.l.b16 %v2837
      %v2891 = vunpack.c.l.b16 %v2843
      %v2893 = vlaneseq
      %v2894 = vshrl.u32 %v2893, 7
      %v2895 = vsub.s32 0, %v2894
      %v2896 = vrot.slane %v398, %v2895
      %v2898 = vpack.c.b16 %v2864, %v2860
      %v2899 = vpack.c.b16 %v2865, %v2861
      %v2900 = vpack.c.b16 %v2866, %v2862
      %v2901 = vpack.c.b16 %v2867, %v2863
      %v2902 = vpack.c.b16 %v2872, %v2868
      %v2903 = vpack.c.b16 %v2873, %v2869
      %v2904 = vpack.c.b16 %v2874, %v2870
      %v2905 = vpack.c.b16 %v2875, %v2871
      %v2906 = vpack.c.b16 %v2880, %v2876
      %v2907 = vpack.c.b16 %v2881, %v2877
      %v2908 = vpack.c.b16 %v2882, %v2878
      %v2909 = vpack.c.b16 %v2883, %v2879
      %v2910 = vpack.c.b16 %v2888, %v2884
      %v2911 = vpack.c.b16 %v2889, %v2885
      %v2912 = vpack.c.b16 %v2890, %v2886
      %v2913 = vpack.c.b16 %v2891, %v2887
      %v2980 = vunpack.c.l.b16 %v344
      %v2981 = vunpack.c.l.b16 %v345
      %v2982 = vunpack.c.l.b16 %v346
      %v2983 = vunpack.c.l.b16 %v347
      %v2984 = vunpack.c.l.b16 %v348
      %v2985 = vunpack.c.l.b16 %v349
      %v2986 = vunpack.c.l.b16 %v350
      %v2987 = vunpack.c.l.b16 %v351
      %v2988 = vunpack.c.l.b16 %v352
      %v2989 = vunpack.c.l.b16 %v353
      %v2990 = vunpack.c.l.b16 %v354
      %v2991 = vunpack.c.l.b16 %v355
      %v2992 = vunpack.c.l.b16 %v356
      %v2993 = vunpack.c.l.b16 %v357
      %v2994 = vunpack.c.l.b16 %v358
      %v2995 = vunpack.c.l.b16 %v359
      %v2996 = vunpack.c.l.b16 %v360
      %v2997 = vunpack.c.l.b16 %v361
      %v2998 = vunpack.c.l.b16 %v362
      %v2999 = vunpack.c.l.b16 %v363
      %v3000 = vunpack.c.l.b16 %v364
      %v3001 = vunpack.c.l.b16 %v365
      %v3002 = vunpack.c.l.b16 %v366
      %v3003 = vunpack.c.l.b16 %v367
      %v3004 = vunpack.c.l.b16 %v368
      %v3005 = vunpack.c.l.b16 %v369
      %v3006 = vunpack.c.l.b16 %v370
      %v3007 = vunpack.c.l.b16 %v371
      %v3008 = vunpack.c.l.b16 %v372
      %v3009 = vunpack.c.l.b16 %v373
      %v3010 = vunpack.c.l.b16 %v374
      %v3011 = vunpack.c.l.b16 %v375
      %v3012 = vunpack.c.l.b16 %v376
      %v3013 = vunpack.c.l.b16 %v377
      %v3014 = vunpack.c.l.b16 %v378
      %v3015 = vunpack.c.l.b16 %v379
      %v3016 = vunpack.c.l.b16 %v380
      %v3017 = vunpack.c.l.b16 %v381
      %v3018 = vunpack.c.l.b16 %v382
      %v3019 = vunpack.c.l.b16 %v383
      %v3020 = vunpack.c.l.b16 %v384
      %v3021 = vunpack.c.l.b16 %v385
      %v3022 = vunpack.c.l.b16 %v386
      %v3023 = vunpack.c.l.b16 %v387
      %v3024 = vunpack.c.l.b16 %v388
      %v3025 = vunpack.c.l.b16 %v389
      %v3026 = vunpack.c.l.b16 %v390
      %v3027 = vunpack.c.l.b16 %v391
      %v3028 = vunpack.c.l.b16 %v392
      %v3029 = vunpack.c.l.b16 %v393
      %v3030 = vunpack.c.l.b16 %v394
      %v3031 = vunpack.c.l.b16 %v395
      %v3032 = vunpack.c.l.b16 %v396
      %v3033 = vunpack.c.l.b16 %v397
      %v3034 = vpack.c.b16 %v2981, %v2980
      %v3035 = vpack.c.b16 %v2983, %v2982
      %v3036 = vpack.c.b16 %v2985, %v2984
      %v3037 = vpack.c.b16 %v2987, %v2986
      %v3038 = vpack.c.b16 %v2989, %v2988
      %v3039 = vpack.c.b16 %v2991, %v2990
      %v3040 = vpack.c.b16 %v2993, %v2992
      %v3041 = vpack.c.b16 %v2995, %v2994
      %v3042 = vpack.c.b16 %v2997, %v2996
      %v3043 = vpack.c.b16 %v2999, %v2998
      %v3044 = vpack.c.b16 %v3001, %v3000
      %v3045 = vpack.c.b16 %v3003, %v3002
      %v3046 = vpack.c.b16 %v3005, %v3004
      %v3047 = vpack.c.b16 %v3007, %v3006
      %v3048 = vpack.c.b16 %v3009, %v3008
      %v3049 = vpack.c.b16 %v3011, %v3010
      %v3050 = vpack.c.b16 %v3013, %v3012
      %v3051 = vpack.c.b16 %v3015, %v3014
      %v3052 = vpack.c.b16 %v3017, %v3016
      %v3053 = vpack.c.b16 %v3019, %v3018
      %v3054 = vpack.c.b16 %v3021, %v3020
      %v3055 = vpack.c.b16 %v3023, %v3022
      %v3056 = vpack.c.b16 %v3025, %v3024
      %v3057 = vpack.c.b16 %v3027, %v3026
      %v3058 = vpack.c.b16 %v3029, %v3028
      %v3059 = vpack.c.b16 %v3031, %v3030
      %v3060 = vpack.c.b16 %v3033, %v3032
      %v3089 = vsel %vm1583, %v2901, 0
      %v3092 = vsel %vm1583, %v2905, 0
      %v3095 = vsel %vm1583, %v2909, 0
      %v3098 = vsel %vm1583, %v2913, 0
      %3100 = vmatprep.subr.bf16.mxu0 0
      %3101 = vmatpush1.bf16.msra.mxu0 %v3034
      %3102 = vmatprep.subr.bf16.mxu0 0
      %3103 = vmatpush1.bf16.msra.mxu0 %v3035
      %3104 = vmatprep.subr.bf16.mxu0 0
      %3105 = vmatpush1.bf16.msra.mxu0 %v3036
      %3106 = vmatprep.subr.bf16.mxu0 0
      %3107 = vmatpush1.bf16.msra.mxu0 %v3037
      %3108 = vmatprep.subr.bf16.mxu0 0
      %3109 = vmatpush1.bf16.msra.mxu0 %v3038
      %3110 = vmatprep.subr.bf16.mxu0 0
      %3111 = vmatpush1.bf16.msra.mxu0 %v3039
      %3112 = vmatprep.subr.bf16.mxu0 0
      %3113 = vmatpush1.bf16.msra.mxu0 %v3040
      %3114 = vmatprep.subr.bf16.mxu0 0
      %3115 = vmatpush1.bf16.msra.mxu0 %v3041
      %3116 = vmatprep.subr.bf16.mxu0 0
      %3117 = vmatpush1.bf16.msra.mxu0 %v3042
      %3118 = vmatprep.subr.bf16.mxu0 0
      %3119 = vmatpush1.bf16.msra.mxu0 %v3043
      %3120 = vmatprep.subr.bf16.mxu0 0
      %3121 = vmatpush1.bf16.msra.mxu0 %v3044
      %3122 = vmatprep.subr.bf16.mxu0 0
      %3123 = vmatpush1.bf16.msra.mxu0 %v3045
      %3124 = vmatprep.subr.bf16.mxu0 0
      %3125 = vmatpush1.bf16.msra.mxu0 %v3046
      %3126 = vmatprep.subr.bf16.mxu0 0
      %3127 = vmatpush1.bf16.msra.mxu0 %v3047
      %3128 = vmatprep.subr.bf16.mxu0 0
      %3129 = vmatpush1.bf16.msra.mxu0 %v3048
      %3130 = vmatprep.subr.bf16.mxu0 0
      %3131 = vmatpush1.bf16.msra.mxu0 %v3049
      %3132 = vmatprep.mubr.bf16.mxu0 %v2899
      %3133 = vmatmul.mubr.bf16.gmra.mrb[0].mxu0 %v2898
      %v3134 = vpop.f32.mrb[0].mxu0
      %v3135 = vadd.f32 %v2896, %v3134
      %v3136 = vpop.f32.mrb[0].mxu0
      %v3137 = vpop.f32.mrb[0].mxu0
      %v3138 = vadd.f32 %v2896, %v3137
      %v3139 = vpop.f32.mrb[0].mxu0
      %3140 = vmatprep.mubr.bf16.mxu0 %v2903
      %3141 = vmatmul.mubr.bf16.gmra.mrb[0].mxu0 %v2902
      %v3142 = vpop.f32.mrb[0].mxu0
      %v3143 = vadd.f32 %v2896, %v3142
      %v3144 = vpop.f32.mrb[0].mxu0
      %v3145 = vpop.f32.mrb[0].mxu0
      %v3146 = vadd.f32 %v2896, %v3145
      %v3147 = vpop.f32.mrb[0].mxu0
      %3148 = vmatprep.mubr.bf16.mxu0 %v2907
      %3149 = vmatmul.mubr.bf16.gmra.mrb[0].mxu0 %v2906
      %v3150 = vpop.f32.mrb[0].mxu0
      %v3151 = vadd.f32 %v2896, %v3150
      %v3152 = vpop.f32.mrb[0].mxu0
      %v3153 = vpop.f32.mrb[0].mxu0
      %v3154 = vadd.f32 %v2896, %v3153
      %v3155 = vpop.f32.mrb[0].mxu0
      %3156 = vmatprep.mubr.bf16.mxu0 %v2911
      %3157 = vmatmul.mubr.bf16.gmra.mrb[0].mxu0 %v2910
      %v3158 = vpop.f32.mrb[0].mxu0
      %v3159 = vadd.f32 %v2896, %v3158
      %v3160 = vpop.f32.mrb[0].mxu0
      %v3161 = vpop.f32.mrb[0].mxu0
      %v3162 = vadd.f32 %v2896, %v3161
      %v3163 = vpop.f32.mrb[0].mxu0
      %3164 = vdwg.mxu0
      %3165 = vmatprep.subr.bf16.mxu0 0
      %3166 = vmatpush1.bf16.msra.mxu0 %v3050
      %3167 = vmatprep.subr.bf16.mxu0 0
      %3168 = vmatpush1.bf16.msra.mxu0 %v3051
      %3169 = vmatprep.subr.bf16.mxu0 0
      %3170 = vmatpush1.bf16.msra.mxu0 %v3052
      %3171 = vmatprep.subr.bf16.mxu0 0
      %3172 = vmatpush1.bf16.msra.mxu0 %v3053
      %3173 = vmatprep.subr.bf16.mxu0 0
      %3174 = vmatpush1.bf16.msra.mxu0 %v3054
      %3175 = vmatprep.subr.bf16.mxu0 0
      %3176 = vmatpush1.bf16.msra.mxu0 %v3055
      %3177 = vmatprep.subr.bf16.mxu0 0
      %3178 = vmatpush1.bf16.msra.mxu0 %v3056
      %3179 = vmatprep.subr.bf16.mxu0 0
      %3180 = vmatpush1.bf16.msra.mxu0 %v3057
      %3181 = vmatprep.subr.bf16.mxu0 0
      %3182 = vmatpush1.bf16.msra.mxu0 %v3058
      %3183 = vmatprep.subr.bf16.mxu0 0
      %3184 = vmatpush1.bf16.msra.mxu0 %v3059
      %3185 = vmatprep.subr.bf16.mxu0 0
      %3186 = vmatpush1.bf16.msra.mxu0 %v3060
      %3187 = vmatprep.subr.bf16.mxu0 0
      %3188 = vmatpush1.bf16.msra.mxu0 0
      %3189 = vmatprep.subr.bf16.mxu0 0
      %3190 = vmatpush1.bf16.msra.mxu0 0
      %3191 = vmatprep.subr.bf16.mxu0 0
      %3192 = vmatpush1.bf16.msra.mxu0 0
      %3193 = vmatprep.subr.bf16.mxu0 0
      %3194 = vmatpush1.bf16.msra.mxu0 0
      %3195 = vmatprep.subr.bf16.mxu0 0
      %3196 = vmatpush1.bf16.msra.mxu0 0
      %3197 = vmatprep.mubr.bf16.mxu0 %v3089
      %3198 = vmatmul.mubr.bf16.gmra.mrb[0].mxu0 %v2900
      %v3199 = vpop.f32.mrb[0].mxu0
      %v3200 = vadd.f32 %v3135, %v3199
      %v3201 = vpop.f32.mrb[0].mxu0
      %v3202 = vpop.f32.mrb[0].mxu0
      %v3203 = vadd.f32 %v3138, %v3202
      %v3204 = vpop.f32.mrb[0].mxu0
      %3205 = vmatprep.mubr.bf16.mxu0 %v3092
      %3206 = vmatmul.mubr.bf16.gmra.mrb[0].mxu0 %v2904
      %v3207 = vpop.f32.mrb[0].mxu0
      %v3208 = vadd.f32 %v3143, %v3207
      %v3209 = vpop.f32.mrb[0].mxu0
      %v3210 = vpop.f32.mrb[0].mxu0
      %v3211 = vadd.f32 %v3146, %v3210
      %v3212 = vpop.f32.mrb[0].mxu0
      %3213 = vmatprep.mubr.bf16.mxu0 %v3095
      %3214 = vmatmul.mubr.bf16.gmra.mrb[0].mxu0 %v2908
      %v3215 = vpop.f32.mrb[0].mxu0
      %v3216 = vadd.f32 %v3151, %v3215
      %v3217 = vpop.f32.mrb[0].mxu0
      %v3218 = vpop.f32.mrb[0].mxu0
      %v3219 = vadd.f32 %v3154, %v3218
      %v3220 = vpop.f32.mrb[0].mxu0
      %3221 = vmatprep.mubr.bf16.mxu0 %v3098
      %3222 = vmatmul.mubr.bf16.gmra.mrb[0].mxu0 %v2912
      %v3223 = vpop.f32.mrb[0].mxu0
      %v3224 = vadd.f32 %v3159, %v3223
      %v3225 = vpop.f32.mrb[0].mxu0
      %v3226 = vpop.f32.mrb[0].mxu0
      %v3227 = vadd.f32 %v3162, %v3226
      %v3228 = vpop.f32.mrb[0].mxu0
      %3229 = vdwg.mxu0
      %3230 = vst [vmem:[%s342] sm:$0xff] %v3200
      %3231 = vst [vmem:[%s342 + $0x8] sm:$0xff] %v3203
      %3232 = vst [vmem:[%s342 + $0x10] sm:$0xff] %v3208
      %3233 = vst [vmem:[%s342 + $0x18] sm:$0xff] %v3211
      %3234 = vst [vmem:[%s342 + $0x20] sm:$0xff] %v3216
      %3235 = vst [vmem:[%s342 + $0x28] sm:$0xff] %v3219
      %3236 = vst [vmem:[%s342 + $0x30] sm:$0xff] %v3224
      %3237 = vst [vmem:[%s342 + $0x38] sm:$0xff] %v3227
      %p3238 = scmp.lt.s32.totalorder %s20, 1
      %s3239 = scalar_select %p3238, %s20, 1
      %p3240 = scmp.lt.s32.totalorder %s21, 7
      %s3241 = scalar_select %p3240, %s21, 7
      %s3242 = smul.addr %s3241, 8
      %s3243 = smul.addr %s3239, 64
      %s3244 = sadd.s32 %s3242, %s3243
      %s3245 = smul.addr %s3244, 8
      %s3246 = scalar_lea.vmem %s5, %s3245
      // Predicated region
      $region41: #{convd_forward.4} parent=39 // pred_check
        %p3247 = pneg %p178
      $region42: #{convd_forward.4} parent=39 // pred_check_branch
        %3249 = sbr.rel (%p3247) target = $region44
      $region43: #{convd_forward.4} parent=39 // pred_region
        _
      $region44: #{convd_forward.4} parent=39 // pred_fallthru
        _
    $region40: #{convd_forward.4} parent=5 // pred_fallthru
      _
    %p3250 = scmp.le.s32.totalorder 2, %s11
    // Predicated region
    $region45: #{convd_forward.4} parent=5 // pred_check
      %p3251 = pneg %p3250
    $region46: #{convd_forward.4} parent=5 // pred_check_branch
      %3253 = sbr.rel (%p3251) target = $region48
    $region47: #{convd_forward.4} parent=5 // pred_region
      %s3254 = ssub.s32 %s11, 2
      // Predicated region
      $region49: #{convd_forward.4} parent=47 // pred_check
        %p3255 = pneg %p184
      $region50: #{convd_forward.4} parent=47 // pred_check_branch
        %3257 = sbr.rel (%p3255) target = $region52
      $region51: #{convd_forward.4} parent=47 // pred_region
        %p3258 = scmp.lt.s32.totalorder %s22, 1
        %s3259 = scalar_select %p3258, %s22, 1
        %p3260 = scmp.lt.s32.totalorder %s23, 7
        %s3261 = scalar_select %p3260, %s23, 7
        %s3262 = smul.addr %s3261, 8
        %s3263 = smul.addr %s3259, 64
        %s3264 = sadd.s32 %s3262, %s3263
        %s3265 = smul.addr %s3264, 8
        %s3266 = scalar_lea.vmem %s5, %s3265
      $region52: #{convd_forward.4} parent=47 // pred_fallthru
        _
    $region48: #{convd_forward.4} parent=5 // pred_fallthru
      _
  $region6: #{convd_forward.4} parent=0 // loop_footer
    %s15 = sadd.s32 1, %s11
  $region7: #{convd_forward.4} parent=0 // loop_footer_branch
    %10 = sbr.rel target = $region3
  $region8: #{convd_forward.4} parent=0 // loop_exit
    _

</llo_original>
